<compile_context>
chip_gen: v7x
topology: tpu7x:2x2x1
jax: 0.10.0
libtpu: 0.0.40
codegen_flags: <defaults>
</compile_context>

<pallas_src>
import functools

import jax
import jax.numpy as jnp
from jax.experimental import pallas as pl
from jax.experimental.pallas import tpu as pltpu


# ----------------------------- LIF step (snnTorch Leaky semantics) -----------
def _lif_step(cur, mem, beta, threshold, reset_mechanism):
    base = beta * mem + cur
    if reset_mechanism == "subtract":
        new_mem = jnp.where(mem > threshold, base - threshold, base)
    elif reset_mechanism == "zero":
        new_mem = jnp.where(mem > threshold, jnp.zeros_like(base), base)
    elif reset_mechanism == "none":
        new_mem = base
    else:
        raise ValueError(f"unknown reset mechanism {reset_mechanism}")
    spk = jnp.where(new_mem > threshold, 1.0, 0.0).astype(new_mem.dtype)
    return spk, new_mem


# ----------------------------- Pallas kernel ---------------------------------
def _snn_kernel(tt, hidden_threshold, output_threshold, hidden_reset, output_reset,
                # inputs
                x_ref, w1_ref, w2_ref, w3_ref, w4_ref,
                b1_ref, b2_ref, b3_ref, b4_ref,
                # outputs: records laid out (time*batch, feature)
                spk1_ref, spk2_ref, spk3_ref, spk4_ref, mem4_ref,
                # scratch: membrane potentials persist across grid (time-chunk) steps
                m1_s, m2_s, m3_s, m4_s):
    c = pl.program_id(0)

    @pl.when(c == 0)
    def _():
        m1_s[...] = jnp.zeros_like(m1_s)
        m2_s[...] = jnp.zeros_like(m2_s)
        m3_s[...] = jnp.zeros_like(m3_s)
        m4_s[...] = jnp.zeros_like(m4_s)

    B, H = m1_s.shape
    OUT = m4_s.shape[1]

    # Hoist loads / scaling / broadcasts out of the time loop (JAX does not CSE
    # broadcast_in_dim, so in-loop broadcasts would be re-emitted every step).
    xs = x_ref[...] / 15.0                         # (TT, B, IN); module does input_t / 15
    w1 = w1_ref[...]
    w2 = w2_ref[...]
    w3 = w3_ref[...]
    w4 = w4_ref[...]
    b1 = jnp.broadcast_to(b1_ref[...], (B, H))
    b2 = jnp.broadcast_to(b2_ref[...], (B, H))
    b3 = jnp.broadcast_to(b3_ref[...], (B, H))
    b4 = jnp.broadcast_to(b4_ref[...], (B, OUT))

    m1 = m1_s[...]
    m2 = m2_s[...]
    m3 = m3_s[...]
    m4 = m4_s[...]

    # Fully unrolled inner time loop: static record-store offsets, cross-step
    # instruction-level parallelism for the four tiny matmuls per step.
    for step in range(tt):
        x_t = xs[step]                                                     # (B, IN)
        cur1 = jnp.dot(x_t, w1, preferred_element_type=jnp.float32)
        spk1, m1 = _lif_step(cur1, m1, b1, hidden_threshold, hidden_reset)
        cur2 = jnp.dot(spk1, w2, preferred_element_type=jnp.float32)
        spk2, m2 = _lif_step(cur2, m2, b2, hidden_threshold, hidden_reset)
        cur3 = jnp.dot(spk2, w3, preferred_element_type=jnp.float32)
        spk3, m3 = _lif_step(cur3, m3, b3, hidden_threshold, hidden_reset)
        cur4 = jnp.dot(spk3, w4, preferred_element_type=jnp.float32)
        spk4, m4 = _lif_step(cur4, m4, b4, output_threshold, output_reset)

        r = pl.ds(step * B, B)            # static row window inside the (TT*B, .) block
        spk1_ref[r, :] = spk1
        spk2_ref[r, :] = spk2
        spk3_ref[r, :] = spk3
        spk4_ref[r, :] = spk4
        mem4_ref[r, :] = m4

    # carry membranes into the next time chunk
    m1_s[...] = m1
    m2_s[...] = m2
    m3_s[...] = m3
    m4_s[...] = m4


# ----------------------------- wrapper ---------------------------------------
def snn_forward(x_bti, params, *, hidden_threshold, output_threshold,
                hidden_reset="subtract", output_reset="subtract", time_tile=8):
    """x_bti: (B, T, input_size), like the PyTorch module.

    Returns (spk1, spk2, spk3, spk4, mem4), each shaped (T, B, features), i.e.
    the same layout as torch.stack(..., dim=0) in the reference forward.
    """
    w1, w2, w3, w4, b1, b2, b3, b4 = params
    B, T, IN = x_bti.shape
    H = w1.shape[1]
    OUT = w4.shape[1]

    TT = time_tile
    n_chunks = pl.cdiv(T, TT)
    T_pad = n_chunks * TT

    x = jnp.transpose(x_bti, (1, 0, 2)).astype(jnp.float32)    # (T, B, IN) time-major
    if T_pad != T:
        x = jnp.pad(x, ((0, T_pad - T), (0, 0), (0, 0)))       # extra steps sliced off below

    kernel = functools.partial(
        _snn_kernel, TT, float(hidden_threshold), float(output_threshold),
        hidden_reset, output_reset)

    const2 = lambda c: (0, 0)
    in_specs = [
        pl.BlockSpec((TT, B, IN), lambda c: (c, 0, 0)),  # x: one DMA per TT timesteps
        pl.BlockSpec((IN, H), const2),                   # w1 (pre-transposed (in, out))
        pl.BlockSpec((H, H), const2),                    # w2
        pl.BlockSpec((H, H), const2),                    # w3
        pl.BlockSpec((H, OUT), const2),                  # w4
        pl.BlockSpec((1, H), const2),                    # beta_hidden_1
        pl.BlockSpec((1, H), const2),                    # beta_hidden_2
        pl.BlockSpec((1, H), const2),                    # beta_hidden_3
        pl.BlockSpec((1, OUT), const2),                  # beta_output
    ]
    # Records as (T_pad*B, feat): sublane-dense blocks, one block write-back per
    # chunk instead of T tiny masked stores into a padded (T, B, feat) layout.
    out_shapes = (
        jax.ShapeDtypeStruct((T_pad * B, H), jnp.float32),
        jax.ShapeDtypeStruct((T_pad * B, H), jnp.float32),
        jax.ShapeDtypeStruct((T_pad * B, H), jnp.float32),
        jax.ShapeDtypeStruct((T_pad * B, OUT), jnp.float32),
        jax.ShapeDtypeStruct((T_pad * B, OUT), jnp.float32),
    )
    row_map = lambda c: (c, 0)
    out_specs = (
        pl.BlockSpec((TT * B, H), row_map),
        pl.BlockSpec((TT * B, H), row_map),
        pl.BlockSpec((TT * B, H), row_map),
        pl.BlockSpec((TT * B, OUT), row_map),
        pl.BlockSpec((TT * B, OUT), row_map),
    )
    scratch = [
        pltpu.VMEM((B, H), jnp.float32),    # mem1
        pltpu.VMEM((B, H), jnp.float32),    # mem2
        pltpu.VMEM((B, H), jnp.float32),    # mem3
        pltpu.VMEM((B, OUT), jnp.float32),  # mem4
    ]

    outs = pl.pallas_call(
        kernel,
        out_shape=out_shapes,
        grid_spec=pltpu.PrefetchScalarGridSpec(
            num_scalar_prefetch=0,
            grid=(n_chunks,),
            in_specs=in_specs,
            out_specs=out_specs,
            scratch_shapes=scratch,
        ),
        compiler_params=pltpu.CompilerParams(
            dimension_semantics=("arbitrary",)),   # recurrent over time
    )(x, w1, w2, w3, w4, b1, b2, b3, b4)

    def unflatten(a, feat):
        return a.reshape(T_pad, B, feat)[:T]       # row t*B + b  ->  (t, b)

    spk1, spk2, spk3, spk4, mem4 = outs
    return (unflatten(spk1, H), unflatten(spk2, H), unflatten(spk3, H),
            unflatten(spk4, OUT), unflatten(mem4, OUT))


# ----------------------------- parameter construction ------------------------
def fake_quantize(w, bits, w_min, w_max):
    """FakeQuantize.forward in eval mode (values identical to training forward)."""
    levels = 2 ** bits
    wc = jnp.clip(w, w_min, w_max)
    scale = (w_max - w_min) / (levels - 1)
    return jnp.round((wc - w_min) / scale) * scale + w_min


def make_params(key, input_size, hidden_size, output_size, bits=5):
    ks = jax.random.split(key, 8)

    def qw(k, i, o, w_min, w_max):
        # QuantLinear: init U(w_min, w_max), then fake-quantized; stored (in, out).
        w = jax.random.uniform(k, (i, o), jnp.float32, w_min, w_max)
        return fake_quantize(w, bits=bits, w_min=w_min, w_max=w_max)

    w1 = qw(ks[0], input_size, hidden_size, -0.5, 0.5)   # fc1: w_min=-0.5, w_max=0.5
    w2 = qw(ks[1], hidden_size, hidden_size, 0.001, 1.0)
    w3 = qw(ks[2], hidden_size, hidden_size, 0.001, 1.0)
    w4 = qw(ks[3], hidden_size, output_size, 0.001, 1.0)
    # per-neuron leak factors in (0, 1) (snnTorch clamps beta to [0, 1])
    b1 = jax.random.uniform(ks[4], (1, hidden_size), jnp.float32, 0.3, 0.95)
    b2 = jax.random.uniform(ks[5], (1, hidden_size), jnp.float32, 0.3, 0.95)
    b3 = jax.random.uniform(ks[6], (1, hidden_size), jnp.float32, 0.3, 0.95)
    b4 = jax.random.uniform(ks[7], (1, output_size), jnp.float32, 0.3, 0.95)
    return (w1, w2, w3, w4, b1, b2, b3, b4)


if __name__ == "__main__":
    B, T = 2, 40
    INPUT_SIZE, HIDDEN_SIZE, OUTPUT_SIZE = 16, 32, 10
    HIDDEN_THR, OUTPUT_THR = 1.0, 1.0
    BITS = 5
    # fast_sigmoid_slope only affects the surrogate gradient (backward pass);
    # it has no effect on the forward values implemented here.

    key = jax.random.PRNGKey(0)
    kx, kp = jax.random.split(key)
    params = make_params(kp, INPUT_SIZE, HIDDEN_SIZE, OUTPUT_SIZE, bits=BITS)
    # (batch, time, input_size) as in the PyTorch module; scaled so some neurons spike.
    x = jax.random.normal(kx, (B, T, INPUT_SIZE), jnp.float32) * 15.0

    outs = snn_forward(
        x, params,
        hidden_threshold=HIDDEN_THR, output_threshold=OUTPUT_THR,
        hidden_reset="subtract", output_reset="subtract",
        time_tile=8,
    )
    outs = jax.block_until_ready(outs)

    spk1, spk2, spk3, spk4, mem4 = outs
    assert spk1.shape == (T, B, HIDDEN_SIZE)
    assert spk2.shape == (T, B, HIDDEN_SIZE)
    assert spk3.shape == (T, B, HIDDEN_SIZE)
    assert spk4.shape == (T, B, OUTPUT_SIZE)
    assert mem4.shape == (T, B, OUTPUT_SIZE)
    print("KERNEL_OK")
</pallas_src>

<mosaic_0001>
module attributes {stable_mosaic.version = 11 : i64} {
  func.func @_snn_kernel(%arg0: i32, %arg1: memref<8x2x16xf32, #tpu.memory_space<vmem>>, %arg2: memref<16x32xf32, #tpu.memory_space<vmem>>, %arg3: memref<32x32xf32, #tpu.memory_space<vmem>>, %arg4: memref<32x32xf32, #tpu.memory_space<vmem>>, %arg5: memref<32x10xf32, #tpu.memory_space<vmem>>, %arg6: memref<1x32xf32, #tpu.memory_space<vmem>>, %arg7: memref<1x32xf32, #tpu.memory_space<vmem>>, %arg8: memref<1x32xf32, #tpu.memory_space<vmem>>, %arg9: memref<1x10xf32, #tpu.memory_space<vmem>>, %arg10: memref<16x32xf32, #tpu.memory_space<vmem>>, %arg11: memref<16x32xf32, #tpu.memory_space<vmem>>, %arg12: memref<16x32xf32, #tpu.memory_space<vmem>>, %arg13: memref<16x10xf32, #tpu.memory_space<vmem>>, %arg14: memref<16x10xf32, #tpu.memory_space<vmem>>, %arg15: memref<2x32xf32, #tpu.memory_space<vmem>>, %arg16: memref<2x32xf32, #tpu.memory_space<vmem>>, %arg17: memref<2x32xf32, #tpu.memory_space<vmem>>, %arg18: memref<2x10xf32, #tpu.memory_space<vmem>>) attributes {dimension_semantics = [#tpu.dimension_semantics<arbitrary>], iteration_bounds = array<i64: 5>, scalar_prefetch = 0 : i64, scratch_operands = 4 : i64, tpu.core_type = #tpu.core_type<tc>, window_params = [{transform_indices = @transform_0, window_bounds = array<i64: 8, 2, 16>}, {pipeline_mode = #tpu.pipeline_mode<synchronous>, transform_indices = @transform_1, window_bounds = array<i64: 16, 32>}, {pipeline_mode = #tpu.pipeline_mode<synchronous>, transform_indices = @transform_2, window_bounds = array<i64: 32, 32>}, {pipeline_mode = #tpu.pipeline_mode<synchronous>, transform_indices = @transform_3, window_bounds = array<i64: 32, 32>}, {pipeline_mode = #tpu.pipeline_mode<synchronous>, transform_indices = @transform_4, window_bounds = array<i64: 32, 10>}, {pipeline_mode = #tpu.pipeline_mode<synchronous>, transform_indices = @transform_5, window_bounds = array<i64: 1, 32>}, {pipeline_mode = #tpu.pipeline_mode<synchronous>, transform_indices = @transform_6, window_bounds = array<i64: 1, 32>}, {pipeline_mode = #tpu.pipeline_mode<synchronous>, transform_indices = @transform_7, window_bounds = array<i64: 1, 32>}, {pipeline_mode = #tpu.pipeline_mode<synchronous>, transform_indices = @transform_8, window_bounds = array<i64: 1, 10>}, {transform_indices = @transform_9, window_bounds = array<i64: 16, 32>}, {transform_indices = @transform_10, window_bounds = array<i64: 16, 32>}, {transform_indices = @transform_11, window_bounds = array<i64: 16, 32>}, {transform_indices = @transform_12, window_bounds = array<i64: 16, 10>}, {transform_indices = @transform_13, window_bounds = array<i64: 16, 10>}]} {
    %c0_i32 = arith.constant 0 : i32
    %0 = arith.cmpi eq, %arg0, %c0_i32 : i32
    %1 = arith.extui %0 : i1 to i32
    %c0_i32_0 = arith.constant 0 : i32
    %2 = arith.cmpi ne, %1, %c0_i32_0 : i32
    scf.if %2 {
      %cst_300 = arith.constant 0.000000e+00 : f32
      %502 = vector.broadcast %cst_300 : f32 to vector<2x32xf32>
      %c0_301 = arith.constant 0 : index
      %c0_302 = arith.constant 0 : index
      %503 = vector.load %arg15[%c0_301, %c0_302] : memref<2x32xf32, #tpu.memory_space<vmem>>, vector<2x32xf32>
      tpu.vector_store %arg15[%c0_301, %c0_302], %502 {strides = array<i32>} : memref<2x32xf32, #tpu.memory_space<vmem>>, vector<2x32xf32>,
      %cst_303 = arith.constant 0.000000e+00 : f32
      %504 = vector.broadcast %cst_303 : f32 to vector<2x32xf32>
      %c0_304 = arith.constant 0 : index
      %c0_305 = arith.constant 0 : index
      %505 = vector.load %arg16[%c0_304, %c0_305] : memref<2x32xf32, #tpu.memory_space<vmem>>, vector<2x32xf32>
      tpu.vector_store %arg16[%c0_304, %c0_305], %504 {strides = array<i32>} : memref<2x32xf32, #tpu.memory_space<vmem>>, vector<2x32xf32>,
      %cst_306 = arith.constant 0.000000e+00 : f32
      %506 = vector.broadcast %cst_306 : f32 to vector<2x32xf32>
      %c0_307 = arith.constant 0 : index
      %c0_308 = arith.constant 0 : index
      %507 = vector.load %arg17[%c0_307, %c0_308] : memref<2x32xf32, #tpu.memory_space<vmem>>, vector<2x32xf32>
      tpu.vector_store %arg17[%c0_307, %c0_308], %506 {strides = array<i32>} : memref<2x32xf32, #tpu.memory_space<vmem>>, vector<2x32xf32>,
      %cst_309 = arith.constant 0.000000e+00 : f32
      %508 = vector.broadcast %cst_309 : f32 to vector<2x10xf32>
      %c0_310 = arith.constant 0 : index
      %c0_311 = arith.constant 0 : index
      %509 = vector.load %arg18[%c0_310, %c0_311] : memref<2x10xf32, #tpu.memory_space<vmem>>, vector<2x10xf32>
      tpu.vector_store %arg18[%c0_310, %c0_311], %508 {strides = array<i32>} : memref<2x10xf32, #tpu.memory_space<vmem>>, vector<2x10xf32>,
    } else {
    }
    %c0 = arith.constant 0 : index
    %c0_1 = arith.constant 0 : index
    %c0_2 = arith.constant 0 : index
    %3 = vector.load %arg1[%c0, %c0_1, %c0_2] : memref<8x2x16xf32, #tpu.memory_space<vmem>>, vector<8x2x16xf32>
    %cst = arith.constant 1.500000e+01 : f32
    %4 = vector.broadcast %cst : f32 to vector<8x2x16xf32>
    %5 = arith.divf %3, %4 : vector<8x2x16xf32>
    %c0_3 = arith.constant 0 : index
    %c0_4 = arith.constant 0 : index
    %6 = vector.load %arg2[%c0_3, %c0_4] : memref<16x32xf32, #tpu.memory_space<vmem>>, vector<16x32xf32>
    %c0_5 = arith.constant 0 : index
    %c0_6 = arith.constant 0 : index
    %7 = vector.load %arg3[%c0_5, %c0_6] : memref<32x32xf32, #tpu.memory_space<vmem>>, vector<32x32xf32>
    %c0_7 = arith.constant 0 : index
    %c0_8 = arith.constant 0 : index
    %8 = vector.load %arg4[%c0_7, %c0_8] : memref<32x32xf32, #tpu.memory_space<vmem>>, vector<32x32xf32>
    %c0_9 = arith.constant 0 : index
    %c0_10 = arith.constant 0 : index
    %9 = vector.load %arg5[%c0_9, %c0_10] : memref<32x10xf32, #tpu.memory_space<vmem>>, vector<32x10xf32>
    %c0_11 = arith.constant 0 : index
    %c0_12 = arith.constant 0 : index
    %10 = vector.load %arg6[%c0_11, %c0_12] : memref<1x32xf32, #tpu.memory_space<vmem>>, vector<1x32xf32>
    %11 = vector.shape_cast %10 : vector<1x32xf32> to vector<1x32xf32>
    %12 = vector.broadcast %11 : vector<1x32xf32> to vector<2x32xf32>
    %c0_13 = arith.constant 0 : index
    %c0_14 = arith.constant 0 : index
    %13 = vector.load %arg7[%c0_13, %c0_14] : memref<1x32xf32, #tpu.memory_space<vmem>>, vector<1x32xf32>
    %14 = vector.shape_cast %13 : vector<1x32xf32> to vector<1x32xf32>
    %15 = vector.broadcast %14 : vector<1x32xf32> to vector<2x32xf32>
    %c0_15 = arith.constant 0 : index
    %c0_16 = arith.constant 0 : index
    %16 = vector.load %arg8[%c0_15, %c0_16] : memref<1x32xf32, #tpu.memory_space<vmem>>, vector<1x32xf32>
    %17 = vector.shape_cast %16 : vector<1x32xf32> to vector<1x32xf32>
    %18 = vector.broadcast %17 : vector<1x32xf32> to vector<2x32xf32>
    %c0_17 = arith.constant 0 : index
    %c0_18 = arith.constant 0 : index
    %19 = vector.load %arg9[%c0_17, %c0_18] : memref<1x10xf32, #tpu.memory_space<vmem>>, vector<1x10xf32>
    %20 = vector.shape_cast %19 : vector<1x10xf32> to vector<1x10xf32>
    %21 = vector.broadcast %20 : vector<1x10xf32> to vector<2x10xf32>
    %c0_19 = arith.constant 0 : index
    %c0_20 = arith.constant 0 : index
    %22 = vector.load %arg15[%c0_19, %c0_20] : memref<2x32xf32, #tpu.memory_space<vmem>>, vector<2x32xf32>
    %c0_21 = arith.constant 0 : index
    %c0_22 = arith.constant 0 : index
    %23 = vector.load %arg16[%c0_21, %c0_22] : memref<2x32xf32, #tpu.memory_space<vmem>>, vector<2x32xf32>
    %c0_23 = arith.constant 0 : index
    %c0_24 = arith.constant 0 : index
    %24 = vector.load %arg17[%c0_23, %c0_24] : memref<2x32xf32, #tpu.memory_space<vmem>>, vector<2x32xf32>
    %c0_25 = arith.constant 0 : index
    %c0_26 = arith.constant 0 : index
    %25 = vector.load %arg18[%c0_25, %c0_26] : memref<2x10xf32, #tpu.memory_space<vmem>>, vector<2x10xf32>
    %26 = vector.extract_strided_slice %5 {offsets = [0, 0, 0], sizes = [1, 2, 16], strides = [1, 1, 1]} : vector<8x2x16xf32> to vector<1x2x16xf32>
    %27 = vector.shape_cast %26 : vector<1x2x16xf32> to vector<2x16xf32>
    %cst_27 = arith.constant dense<0.000000e+00> : vector<2x32xf32>
    %28 = tpu.matmul %27, %6, %cst_27 {dimension_numbers = #tpu.dot_dimension_numbers<[1], [0], [0], [1], [0, 0, 1, 1], [], []>} : vector<2x16xf32>, vector<16x32xf32>, vector<2x32xf32> -> vector<2x32xf32>
    %29 = arith.mulf %12, %22 : vector<2x32xf32>
    %30 = arith.addf %29, %28 : vector<2x32xf32>
    %cst_28 = arith.constant 1.000000e+00 : f32
    %31 = vector.broadcast %cst_28 : f32 to vector<2x32xf32>
    %32 = arith.cmpf ogt, %22, %31 : vector<2x32xf32>
    %cst_29 = arith.constant 1.000000e+00 : f32
    %33 = vector.broadcast %cst_29 : f32 to vector<2x32xf32>
    %34 = arith.subf %30, %33 : vector<2x32xf32>
    %35 = arith.select %32, %34, %30 : vector<2x32xi1>, vector<2x32xf32>
    %cst_30 = arith.constant 1.000000e+00 : f32
    %36 = vector.broadcast %cst_30 : f32 to vector<2x32xf32>
    %37 = arith.cmpf ogt, %35, %36 : vector<2x32xf32>
    %cst_31 = arith.constant 1.000000e+00 : f32
    %cst_32 = arith.constant 0.000000e+00 : f32
    %38 = vector.broadcast %cst_31 : f32 to vector<2x32xf32>
    %39 = vector.broadcast %cst_32 : f32 to vector<2x32xf32>
    %40 = arith.select %37, %38, %39 : vector<2x32xi1>, vector<2x32xf32>
    %cst_33 = arith.constant dense<0.000000e+00> : vector<2x32xf32>
    %41 = tpu.matmul %40, %7, %cst_33 {dimension_numbers = #tpu.dot_dimension_numbers<[1], [0], [0], [1], [0, 0, 1, 1], [], []>} : vector<2x32xf32>, vector<32x32xf32>, vector<2x32xf32> -> vector<2x32xf32>
    %42 = arith.mulf %15, %23 : vector<2x32xf32>
    %43 = arith.addf %42, %41 : vector<2x32xf32>
    %cst_34 = arith.constant 1.000000e+00 : f32
    %44 = vector.broadcast %cst_34 : f32 to vector<2x32xf32>
    %45 = arith.cmpf ogt, %23, %44 : vector<2x32xf32>
    %cst_35 = arith.constant 1.000000e+00 : f32
    %46 = vector.broadcast %cst_35 : f32 to vector<2x32xf32>
    %47 = arith.subf %43, %46 : vector<2x32xf32>
    %48 = arith.select %45, %47, %43 : vector<2x32xi1>, vector<2x32xf32>
    %cst_36 = arith.constant 1.000000e+00 : f32
    %49 = vector.broadcast %cst_36 : f32 to vector<2x32xf32>
    %50 = arith.cmpf ogt, %48, %49 : vector<2x32xf32>
    %cst_37 = arith.constant 1.000000e+00 : f32
    %cst_38 = arith.constant 0.000000e+00 : f32
    %51 = vector.broadcast %cst_37 : f32 to vector<2x32xf32>
    %52 = vector.broadcast %cst_38 : f32 to vector<2x32xf32>
    %53 = arith.select %50, %51, %52 : vector<2x32xi1>, vector<2x32xf32>
    %cst_39 = arith.constant dense<0.000000e+00> : vector<2x32xf32>
    %54 = tpu.matmul %53, %8, %cst_39 {dimension_numbers = #tpu.dot_dimension_numbers<[1], [0], [0], [1], [0, 0, 1, 1], [], []>} : vector<2x32xf32>, vector<32x32xf32>, vector<2x32xf32> -> vector<2x32xf32>
    %55 = arith.mulf %18, %24 : vector<2x32xf32>
    %56 = arith.addf %55, %54 : vector<2x32xf32>
    %cst_40 = arith.constant 1.000000e+00 : f32
    %57 = vector.broadcast %cst_40 : f32 to vector<2x32xf32>
    %58 = arith.cmpf ogt, %24, %57 : vector<2x32xf32>
    %cst_41 = arith.constant 1.000000e+00 : f32
    %59 = vector.broadcast %cst_41 : f32 to vector<2x32xf32>
    %60 = arith.subf %56, %59 : vector<2x32xf32>
    %61 = arith.select %58, %60, %56 : vector<2x32xi1>, vector<2x32xf32>
    %cst_42 = arith.constant 1.000000e+00 : f32
    %62 = vector.broadcast %cst_42 : f32 to vector<2x32xf32>
    %63 = arith.cmpf ogt, %61, %62 : vector<2x32xf32>
    %cst_43 = arith.constant 1.000000e+00 : f32
    %cst_44 = arith.constant 0.000000e+00 : f32
    %64 = vector.broadcast %cst_43 : f32 to vector<2x32xf32>
    %65 = vector.broadcast %cst_44 : f32 to vector<2x32xf32>
    %66 = arith.select %63, %64, %65 : vector<2x32xi1>, vector<2x32xf32>
    %cst_45 = arith.constant dense<0.000000e+00> : vector<2x10xf32>
    %67 = tpu.matmul %66, %9, %cst_45 {dimension_numbers = #tpu.dot_dimension_numbers<[1], [0], [0], [1], [0, 0, 1, 1], [], []>} : vector<2x32xf32>, vector<32x10xf32>, vector<2x10xf32> -> vector<2x10xf32>
    %68 = arith.mulf %21, %25 : vector<2x10xf32>
    %69 = arith.addf %68, %67 : vector<2x10xf32>
    %cst_46 = arith.constant 1.000000e+00 : f32
    %70 = vector.broadcast %cst_46 : f32 to vector<2x10xf32>
    %71 = arith.cmpf ogt, %25, %70 : vector<2x10xf32>
    %cst_47 = arith.constant 1.000000e+00 : f32
    %72 = vector.broadcast %cst_47 : f32 to vector<2x10xf32>
    %73 = arith.subf %69, %72 : vector<2x10xf32>
    %74 = arith.select %71, %73, %69 : vector<2x10xi1>, vector<2x10xf32>
    %cst_48 = arith.constant 1.000000e+00 : f32
    %75 = vector.broadcast %cst_48 : f32 to vector<2x10xf32>
    %76 = arith.cmpf ogt, %74, %75 : vector<2x10xf32>
    %cst_49 = arith.constant 1.000000e+00 : f32
    %cst_50 = arith.constant 0.000000e+00 : f32
    %77 = vector.broadcast %cst_49 : f32 to vector<2x10xf32>
    %78 = vector.broadcast %cst_50 : f32 to vector<2x10xf32>
    %79 = arith.select %76, %77, %78 : vector<2x10xi1>, vector<2x10xf32>
    %c0_51 = arith.constant 0 : index
    %c0_52 = arith.constant 0 : index
    %80 = vector.load %arg10[%c0_51, %c0_52] : memref<16x32xf32, #tpu.memory_space<vmem>>, vector<2x32xf32>
    tpu.vector_store %arg10[%c0_51, %c0_52], %40 {strides = array<i32>} : memref<16x32xf32, #tpu.memory_space<vmem>>, vector<2x32xf32>,
    %c0_53 = arith.constant 0 : index
    %c0_54 = arith.constant 0 : index
    %81 = vector.load %arg11[%c0_53, %c0_54] : memref<16x32xf32, #tpu.memory_space<vmem>>, vector<2x32xf32>
    tpu.vector_store %arg11[%c0_53, %c0_54], %53 {strides = array<i32>} : memref<16x32xf32, #tpu.memory_space<vmem>>, vector<2x32xf32>,
    %c0_55 = arith.constant 0 : index
    %c0_56 = arith.constant 0 : index
    %82 = vector.load %arg12[%c0_55, %c0_56] : memref<16x32xf32, #tpu.memory_space<vmem>>, vector<2x32xf32>
    tpu.vector_store %arg12[%c0_55, %c0_56], %66 {strides = array<i32>} : memref<16x32xf32, #tpu.memory_space<vmem>>, vector<2x32xf32>,
    %c0_57 = arith.constant 0 : index
    %c0_58 = arith.constant 0 : index
    %83 = vector.load %arg13[%c0_57, %c0_58] : memref<16x10xf32, #tpu.memory_space<vmem>>, vector<2x10xf32>
    tpu.vector_store %arg13[%c0_57, %c0_58], %79 {strides = array<i32>} : memref<16x10xf32, #tpu.memory_space<vmem>>, vector<2x10xf32>,
    %c0_59 = arith.constant 0 : index
    %c0_60 = arith.constant 0 : index
    %84 = vector.load %arg14[%c0_59, %c0_60] : memref<16x10xf32, #tpu.memory_space<vmem>>, vector<2x10xf32>
    tpu.vector_store %arg14[%c0_59, %c0_60], %74 {strides = array<i32>} : memref<16x10xf32, #tpu.memory_space<vmem>>, vector<2x10xf32>,
    %85 = vector.extract_strided_slice %5 {offsets = [1, 0, 0], sizes = [1, 2, 16], strides = [1, 1, 1]} : vector<8x2x16xf32> to vector<1x2x16xf32>
    %86 = vector.shape_cast %85 : vector<1x2x16xf32> to vector<2x16xf32>
    %cst_61 = arith.constant dense<0.000000e+00> : vector<2x32xf32>
    %87 = tpu.matmul %86, %6, %cst_61 {dimension_numbers = #tpu.dot_dimension_numbers<[1], [0], [0], [1], [0, 0, 1, 1], [], []>} : vector<2x16xf32>, vector<16x32xf32>, vector<2x32xf32> -> vector<2x32xf32>
    %88 = arith.mulf %12, %35 : vector<2x32xf32>
    %89 = arith.addf %88, %87 : vector<2x32xf32>
    %cst_62 = arith.constant 1.000000e+00 : f32
    %90 = vector.broadcast %cst_62 : f32 to vector<2x32xf32>
    %91 = arith.cmpf ogt, %35, %90 : vector<2x32xf32>
    %cst_63 = arith.constant 1.000000e+00 : f32
    %92 = vector.broadcast %cst_63 : f32 to vector<2x32xf32>
    %93 = arith.subf %89, %92 : vector<2x32xf32>
    %94 = arith.select %91, %93, %89 : vector<2x32xi1>, vector<2x32xf32>
    %cst_64 = arith.constant 1.000000e+00 : f32
    %95 = vector.broadcast %cst_64 : f32 to vector<2x32xf32>
    %96 = arith.cmpf ogt, %94, %95 : vector<2x32xf32>
    %cst_65 = arith.constant 1.000000e+00 : f32
    %cst_66 = arith.constant 0.000000e+00 : f32
    %97 = vector.broadcast %cst_65 : f32 to vector<2x32xf32>
    %98 = vector.broadcast %cst_66 : f32 to vector<2x32xf32>
    %99 = arith.select %96, %97, %98 : vector<2x32xi1>, vector<2x32xf32>
    %cst_67 = arith.constant dense<0.000000e+00> : vector<2x32xf32>
    %100 = tpu.matmul %99, %7, %cst_67 {dimension_numbers = #tpu.dot_dimension_numbers<[1], [0], [0], [1], [0, 0, 1, 1], [], []>} : vector<2x32xf32>, vector<32x32xf32>, vector<2x32xf32> -> vector<2x32xf32>
    %101 = arith.mulf %15, %48 : vector<2x32xf32>
    %102 = arith.addf %101, %100 : vector<2x32xf32>
    %cst_68 = arith.constant 1.000000e+00 : f32
    %103 = vector.broadcast %cst_68 : f32 to vector<2x32xf32>
    %104 = arith.cmpf ogt, %48, %103 : vector<2x32xf32>
    %cst_69 = arith.constant 1.000000e+00 : f32
    %105 = vector.broadcast %cst_69 : f32 to vector<2x32xf32>
    %106 = arith.subf %102, %105 : vector<2x32xf32>
    %107 = arith.select %104, %106, %102 : vector<2x32xi1>, vector<2x32xf32>
    %cst_70 = arith.constant 1.000000e+00 : f32
    %108 = vector.broadcast %cst_70 : f32 to vector<2x32xf32>
    %109 = arith.cmpf ogt, %107, %108 : vector<2x32xf32>
    %cst_71 = arith.constant 1.000000e+00 : f32
    %cst_72 = arith.constant 0.000000e+00 : f32
    %110 = vector.broadcast %cst_71 : f32 to vector<2x32xf32>
    %111 = vector.broadcast %cst_72 : f32 to vector<2x32xf32>
    %112 = arith.select %109, %110, %111 : vector<2x32xi1>, vector<2x32xf32>
    %cst_73 = arith.constant dense<0.000000e+00> : vector<2x32xf32>
    %113 = tpu.matmul %112, %8, %cst_73 {dimension_numbers = #tpu.dot_dimension_numbers<[1], [0], [0], [1], [0, 0, 1, 1], [], []>} : vector<2x32xf32>, vector<32x32xf32>, vector<2x32xf32> -> vector<2x32xf32>
    %114 = arith.mulf %18, %61 : vector<2x32xf32>
    %115 = arith.addf %114, %113 : vector<2x32xf32>
    %cst_74 = arith.constant 1.000000e+00 : f32
    %116 = vector.broadcast %cst_74 : f32 to vector<2x32xf32>
    %117 = arith.cmpf ogt, %61, %116 : vector<2x32xf32>
    %cst_75 = arith.constant 1.000000e+00 : f32
    %118 = vector.broadcast %cst_75 : f32 to vector<2x32xf32>
    %119 = arith.subf %115, %118 : vector<2x32xf32>
    %120 = arith.select %117, %119, %115 : vector<2x32xi1>, vector<2x32xf32>
    %cst_76 = arith.constant 1.000000e+00 : f32
    %121 = vector.broadcast %cst_76 : f32 to vector<2x32xf32>
    %122 = arith.cmpf ogt, %120, %121 : vector<2x32xf32>
    %cst_77 = arith.constant 1.000000e+00 : f32
    %cst_78 = arith.constant 0.000000e+00 : f32
    %123 = vector.broadcast %cst_77 : f32 to vector<2x32xf32>
    %124 = vector.broadcast %cst_78 : f32 to vector<2x32xf32>
    %125 = arith.select %122, %123, %124 : vector<2x32xi1>, vector<2x32xf32>
    %cst_79 = arith.constant dense<0.000000e+00> : vector<2x10xf32>
    %126 = tpu.matmul %125, %9, %cst_79 {dimension_numbers = #tpu.dot_dimension_numbers<[1], [0], [0], [1], [0, 0, 1, 1], [], []>} : vector<2x32xf32>, vector<32x10xf32>, vector<2x10xf32> -> vector<2x10xf32>
    %127 = arith.mulf %21, %74 : vector<2x10xf32>
    %128 = arith.addf %127, %126 : vector<2x10xf32>
    %cst_80 = arith.constant 1.000000e+00 : f32
    %129 = vector.broadcast %cst_80 : f32 to vector<2x10xf32>
    %130 = arith.cmpf ogt, %74, %129 : vector<2x10xf32>
    %cst_81 = arith.constant 1.000000e+00 : f32
    %131 = vector.broadcast %cst_81 : f32 to vector<2x10xf32>
    %132 = arith.subf %128, %131 : vector<2x10xf32>
    %133 = arith.select %130, %132, %128 : vector<2x10xi1>, vector<2x10xf32>
    %cst_82 = arith.constant 1.000000e+00 : f32
    %134 = vector.broadcast %cst_82 : f32 to vector<2x10xf32>
    %135 = arith.cmpf ogt, %133, %134 : vector<2x10xf32>
    %cst_83 = arith.constant 1.000000e+00 : f32
    %cst_84 = arith.constant 0.000000e+00 : f32
    %136 = vector.broadcast %cst_83 : f32 to vector<2x10xf32>
    %137 = vector.broadcast %cst_84 : f32 to vector<2x10xf32>
    %138 = arith.select %135, %136, %137 : vector<2x10xi1>, vector<2x10xf32>
    %c2 = arith.constant 2 : index
    %c0_85 = arith.constant 0 : index
    %139 = vector.load %arg10[%c2, %c0_85] : memref<16x32xf32, #tpu.memory_space<vmem>>, vector<2x32xf32>
    tpu.vector_store %arg10[%c2, %c0_85], %99 {strides = array<i32>} : memref<16x32xf32, #tpu.memory_space<vmem>>, vector<2x32xf32>,
    %c2_86 = arith.constant 2 : index
    %c0_87 = arith.constant 0 : index
    %140 = vector.load %arg11[%c2_86, %c0_87] : memref<16x32xf32, #tpu.memory_space<vmem>>, vector<2x32xf32>
    tpu.vector_store %arg11[%c2_86, %c0_87], %112 {strides = array<i32>} : memref<16x32xf32, #tpu.memory_space<vmem>>, vector<2x32xf32>,
    %c2_88 = arith.constant 2 : index
    %c0_89 = arith.constant 0 : index
    %141 = vector.load %arg12[%c2_88, %c0_89] : memref<16x32xf32, #tpu.memory_space<vmem>>, vector<2x32xf32>
    tpu.vector_store %arg12[%c2_88, %c0_89], %125 {strides = array<i32>} : memref<16x32xf32, #tpu.memory_space<vmem>>, vector<2x32xf32>,
    %c2_90 = arith.constant 2 : index
    %c0_91 = arith.constant 0 : index
    %142 = vector.load %arg13[%c2_90, %c0_91] : memref<16x10xf32, #tpu.memory_space<vmem>>, vector<2x10xf32>
    tpu.vector_store %arg13[%c2_90, %c0_91], %138 {strides = array<i32>} : memref<16x10xf32, #tpu.memory_space<vmem>>, vector<2x10xf32>,
    %c2_92 = arith.constant 2 : index
    %c0_93 = arith.constant 0 : index
    %143 = vector.load %arg14[%c2_92, %c0_93] : memref<16x10xf32, #tpu.memory_space<vmem>>, vector<2x10xf32>
    tpu.vector_store %arg14[%c2_92, %c0_93], %133 {strides = array<i32>} : memref<16x10xf32, #tpu.memory_space<vmem>>, vector<2x10xf32>,
    %144 = vector.extract_strided_slice %5 {offsets = [2, 0, 0], sizes = [1, 2, 16], strides = [1, 1, 1]} : vector<8x2x16xf32> to vector<1x2x16xf32>
    %145 = vector.shape_cast %144 : vector<1x2x16xf32> to vector<2x16xf32>
    %cst_94 = arith.constant dense<0.000000e+00> : vector<2x32xf32>
    %146 = tpu.matmul %145, %6, %cst_94 {dimension_numbers = #tpu.dot_dimension_numbers<[1], [0], [0], [1], [0, 0, 1, 1], [], []>} : vector<2x16xf32>, vector<16x32xf32>, vector<2x32xf32> -> vector<2x32xf32>
    %147 = arith.mulf %12, %94 : vector<2x32xf32>
    %148 = arith.addf %147, %146 : vector<2x32xf32>
    %cst_95 = arith.constant 1.000000e+00 : f32
    %149 = vector.broadcast %cst_95 : f32 to vector<2x32xf32>
    %150 = arith.cmpf ogt, %94, %149 : vector<2x32xf32>
    %cst_96 = arith.constant 1.000000e+00 : f32
    %151 = vector.broadcast %cst_96 : f32 to vector<2x32xf32>
    %152 = arith.subf %148, %151 : vector<2x32xf32>
    %153 = arith.select %150, %152, %148 : vector<2x32xi1>, vector<2x32xf32>
    %cst_97 = arith.constant 1.000000e+00 : f32
    %154 = vector.broadcast %cst_97 : f32 to vector<2x32xf32>
    %155 = arith.cmpf ogt, %153, %154 : vector<2x32xf32>
    %cst_98 = arith.constant 1.000000e+00 : f32
    %cst_99 = arith.constant 0.000000e+00 : f32
    %156 = vector.broadcast %cst_98 : f32 to vector<2x32xf32>
    %157 = vector.broadcast %cst_99 : f32 to vector<2x32xf32>
    %158 = arith.select %155, %156, %157 : vector<2x32xi1>, vector<2x32xf32>
    %cst_100 = arith.constant dense<0.000000e+00> : vector<2x32xf32>
    %159 = tpu.matmul %158, %7, %cst_100 {dimension_numbers = #tpu.dot_dimension_numbers<[1], [0], [0], [1], [0, 0, 1, 1], [], []>} : vector<2x32xf32>, vector<32x32xf32>, vector<2x32xf32> -> vector<2x32xf32>
    %160 = arith.mulf %15, %107 : vector<2x32xf32>
    %161 = arith.addf %160, %159 : vector<2x32xf32>
    %cst_101 = arith.constant 1.000000e+00 : f32
    %162 = vector.broadcast %cst_101 : f32 to vector<2x32xf32>
    %163 = arith.cmpf ogt, %107, %162 : vector<2x32xf32>
    %cst_102 = arith.constant 1.000000e+00 : f32
    %164 = vector.broadcast %cst_102 : f32 to vector<2x32xf32>
    %165 = arith.subf %161, %164 : vector<2x32xf32>
    %166 = arith.select %163, %165, %161 : vector<2x32xi1>, vector<2x32xf32>
    %cst_103 = arith.constant 1.000000e+00 : f32
    %167 = vector.broadcast %cst_103 : f32 to vector<2x32xf32>
    %168 = arith.cmpf ogt, %166, %167 : vector<2x32xf32>
    %cst_104 = arith.constant 1.000000e+00 : f32
    %cst_105 = arith.constant 0.000000e+00 : f32
    %169 = vector.broadcast %cst_104 : f32 to vector<2x32xf32>
    %170 = vector.broadcast %cst_105 : f32 to vector<2x32xf32>
    %171 = arith.select %168, %169, %170 : vector<2x32xi1>, vector<2x32xf32>
    %cst_106 = arith.constant dense<0.000000e+00> : vector<2x32xf32>
    %172 = tpu.matmul %171, %8, %cst_106 {dimension_numbers = #tpu.dot_dimension_numbers<[1], [0], [0], [1], [0, 0, 1, 1], [], []>} : vector<2x32xf32>, vector<32x32xf32>, vector<2x32xf32> -> vector<2x32xf32>
    %173 = arith.mulf %18, %120 : vector<2x32xf32>
    %174 = arith.addf %173, %172 : vector<2x32xf32>
    %cst_107 = arith.constant 1.000000e+00 : f32
    %175 = vector.broadcast %cst_107 : f32 to vector<2x32xf32>
    %176 = arith.cmpf ogt, %120, %175 : vector<2x32xf32>
    %cst_108 = arith.constant 1.000000e+00 : f32
    %177 = vector.broadcast %cst_108 : f32 to vector<2x32xf32>
    %178 = arith.subf %174, %177 : vector<2x32xf32>
    %179 = arith.select %176, %178, %174 : vector<2x32xi1>, vector<2x32xf32>
    %cst_109 = arith.constant 1.000000e+00 : f32
    %180 = vector.broadcast %cst_109 : f32 to vector<2x32xf32>
    %181 = arith.cmpf ogt, %179, %180 : vector<2x32xf32>
    %cst_110 = arith.constant 1.000000e+00 : f32
    %cst_111 = arith.constant 0.000000e+00 : f32
    %182 = vector.broadcast %cst_110 : f32 to vector<2x32xf32>
    %183 = vector.broadcast %cst_111 : f32 to vector<2x32xf32>
    %184 = arith.select %181, %182, %183 : vector<2x32xi1>, vector<2x32xf32>
    %cst_112 = arith.constant dense<0.000000e+00> : vector<2x10xf32>
    %185 = tpu.matmul %184, %9, %cst_112 {dimension_numbers = #tpu.dot_dimension_numbers<[1], [0], [0], [1], [0, 0, 1, 1], [], []>} : vector<2x32xf32>, vector<32x10xf32>, vector<2x10xf32> -> vector<2x10xf32>
    %186 = arith.mulf %21, %133 : vector<2x10xf32>
    %187 = arith.addf %186, %185 : vector<2x10xf32>
    %cst_113 = arith.constant 1.000000e+00 : f32
    %188 = vector.broadcast %cst_113 : f32 to vector<2x10xf32>
    %189 = arith.cmpf ogt, %133, %188 : vector<2x10xf32>
    %cst_114 = arith.constant 1.000000e+00 : f32
    %190 = vector.broadcast %cst_114 : f32 to vector<2x10xf32>
    %191 = arith.subf %187, %190 : vector<2x10xf32>
    %192 = arith.select %189, %191, %187 : vector<2x10xi1>, vector<2x10xf32>
    %cst_115 = arith.constant 1.000000e+00 : f32
    %193 = vector.broadcast %cst_115 : f32 to vector<2x10xf32>
    %194 = arith.cmpf ogt, %192, %193 : vector<2x10xf32>
    %cst_116 = arith.constant 1.000000e+00 : f32
    %cst_117 = arith.constant 0.000000e+00 : f32
    %195 = vector.broadcast %cst_116 : f32 to vector<2x10xf32>
    %196 = vector.broadcast %cst_117 : f32 to vector<2x10xf32>
    %197 = arith.select %194, %195, %196 : vector<2x10xi1>, vector<2x10xf32>
    %c4 = arith.constant 4 : index
    %c0_118 = arith.constant 0 : index
    %198 = vector.load %arg10[%c4, %c0_118] : memref<16x32xf32, #tpu.memory_space<vmem>>, vector<2x32xf32>
    tpu.vector_store %arg10[%c4, %c0_118], %158 {strides = array<i32>} : memref<16x32xf32, #tpu.memory_space<vmem>>, vector<2x32xf32>,
    %c4_119 = arith.constant 4 : index
    %c0_120 = arith.constant 0 : index
    %199 = vector.load %arg11[%c4_119, %c0_120] : memref<16x32xf32, #tpu.memory_space<vmem>>, vector<2x32xf32>
    tpu.vector_store %arg11[%c4_119, %c0_120], %171 {strides = array<i32>} : memref<16x32xf32, #tpu.memory_space<vmem>>, vector<2x32xf32>,
    %c4_121 = arith.constant 4 : index
    %c0_122 = arith.constant 0 : index
    %200 = vector.load %arg12[%c4_121, %c0_122] : memref<16x32xf32, #tpu.memory_space<vmem>>, vector<2x32xf32>
    tpu.vector_store %arg12[%c4_121, %c0_122], %184 {strides = array<i32>} : memref<16x32xf32, #tpu.memory_space<vmem>>, vector<2x32xf32>,
    %c4_123 = arith.constant 4 : index
    %c0_124 = arith.constant 0 : index
    %201 = vector.load %arg13[%c4_123, %c0_124] : memref<16x10xf32, #tpu.memory_space<vmem>>, vector<2x10xf32>
    tpu.vector_store %arg13[%c4_123, %c0_124], %197 {strides = array<i32>} : memref<16x10xf32, #tpu.memory_space<vmem>>, vector<2x10xf32>,
    %c4_125 = arith.constant 4 : index
    %c0_126 = arith.constant 0 : index
    %202 = vector.load %arg14[%c4_125, %c0_126] : memref<16x10xf32, #tpu.memory_space<vmem>>, vector<2x10xf32>
    tpu.vector_store %arg14[%c4_125, %c0_126], %192 {strides = array<i32>} : memref<16x10xf32, #tpu.memory_space<vmem>>, vector<2x10xf32>,
    %203 = vector.extract_strided_slice %5 {offsets = [3, 0, 0], sizes = [1, 2, 16], strides = [1, 1, 1]} : vector<8x2x16xf32> to vector<1x2x16xf32>
    %204 = vector.shape_cast %203 : vector<1x2x16xf32> to vector<2x16xf32>
    %cst_127 = arith.constant dense<0.000000e+00> : vector<2x32xf32>
    %205 = tpu.matmul %204, %6, %cst_127 {dimension_numbers = #tpu.dot_dimension_numbers<[1], [0], [0], [1], [0, 0, 1, 1], [], []>} : vector<2x16xf32>, vector<16x32xf32>, vector<2x32xf32> -> vector<2x32xf32>
    %206 = arith.mulf %12, %153 : vector<2x32xf32>
    %207 = arith.addf %206, %205 : vector<2x32xf32>
    %cst_128 = arith.constant 1.000000e+00 : f32
    %208 = vector.broadcast %cst_128 : f32 to vector<2x32xf32>
    %209 = arith.cmpf ogt, %153, %208 : vector<2x32xf32>
    %cst_129 = arith.constant 1.000000e+00 : f32
    %210 = vector.broadcast %cst_129 : f32 to vector<2x32xf32>
    %211 = arith.subf %207, %210 : vector<2x32xf32>
    %212 = arith.select %209, %211, %207 : vector<2x32xi1>, vector<2x32xf32>
    %cst_130 = arith.constant 1.000000e+00 : f32
    %213 = vector.broadcast %cst_130 : f32 to vector<2x32xf32>
    %214 = arith.cmpf ogt, %212, %213 : vector<2x32xf32>
    %cst_131 = arith.constant 1.000000e+00 : f32
    %cst_132 = arith.constant 0.000000e+00 : f32
    %215 = vector.broadcast %cst_131 : f32 to vector<2x32xf32>
    %216 = vector.broadcast %cst_132 : f32 to vector<2x32xf32>
    %217 = arith.select %214, %215, %216 : vector<2x32xi1>, vector<2x32xf32>
    %cst_133 = arith.constant dense<0.000000e+00> : vector<2x32xf32>
    %218 = tpu.matmul %217, %7, %cst_133 {dimension_numbers = #tpu.dot_dimension_numbers<[1], [0], [0], [1], [0, 0, 1, 1], [], []>} : vector<2x32xf32>, vector<32x32xf32>, vector<2x32xf32> -> vector<2x32xf32>
    %219 = arith.mulf %15, %166 : vector<2x32xf32>
    %220 = arith.addf %219, %218 : vector<2x32xf32>
    %cst_134 = arith.constant 1.000000e+00 : f32
    %221 = vector.broadcast %cst_134 : f32 to vector<2x32xf32>
    %222 = arith.cmpf ogt, %166, %221 : vector<2x32xf32>
    %cst_135 = arith.constant 1.000000e+00 : f32
    %223 = vector.broadcast %cst_135 : f32 to vector<2x32xf32>
    %224 = arith.subf %220, %223 : vector<2x32xf32>
    %225 = arith.select %222, %224, %220 : vector<2x32xi1>, vector<2x32xf32>
    %cst_136 = arith.constant 1.000000e+00 : f32
    %226 = vector.broadcast %cst_136 : f32 to vector<2x32xf32>
    %227 = arith.cmpf ogt, %225, %226 : vector<2x32xf32>
    %cst_137 = arith.constant 1.000000e+00 : f32
    %cst_138 = arith.constant 0.000000e+00 : f32
    %228 = vector.broadcast %cst_137 : f32 to vector<2x32xf32>
    %229 = vector.broadcast %cst_138 : f32 to vector<2x32xf32>
    %230 = arith.select %227, %228, %229 : vector<2x32xi1>, vector<2x32xf32>
    %cst_139 = arith.constant dense<0.000000e+00> : vector<2x32xf32>
    %231 = tpu.matmul %230, %8, %cst_139 {dimension_numbers = #tpu.dot_dimension_numbers<[1], [0], [0], [1], [0, 0, 1, 1], [], []>} : vector<2x32xf32>, vector<32x32xf32>, vector<2x32xf32> -> vector<2x32xf32>
    %232 = arith.mulf %18, %179 : vector<2x32xf32>
    %233 = arith.addf %232, %231 : vector<2x32xf32>
    %cst_140 = arith.constant 1.000000e+00 : f32
    %234 = vector.broadcast %cst_140 : f32 to vector<2x32xf32>
    %235 = arith.cmpf ogt, %179, %234 : vector<2x32xf32>
    %cst_141 = arith.constant 1.000000e+00 : f32
    %236 = vector.broadcast %cst_141 : f32 to vector<2x32xf32>
    %237 = arith.subf %233, %236 : vector<2x32xf32>
    %238 = arith.select %235, %237, %233 : vector<2x32xi1>, vector<2x32xf32>
    %cst_142 = arith.constant 1.000000e+00 : f32
    %239 = vector.broadcast %cst_142 : f32 to vector<2x32xf32>
    %240 = arith.cmpf ogt, %238, %239 : vector<2x32xf32>
    %cst_143 = arith.constant 1.000000e+00 : f32
    %cst_144 = arith.constant 0.000000e+00 : f32
    %241 = vector.broadcast %cst_143 : f32 to vector<2x32xf32>
    %242 = vector.broadcast %cst_144 : f32 to vector<2x32xf32>
    %243 = arith.select %240, %241, %242 : vector<2x32xi1>, vector<2x32xf32>
    %cst_145 = arith.constant dense<0.000000e+00> : vector<2x10xf32>
    %244 = tpu.matmul %243, %9, %cst_145 {dimension_numbers = #tpu.dot_dimension_numbers<[1], [0], [0], [1], [0, 0, 1, 1], [], []>} : vector<2x32xf32>, vector<32x10xf32>, vector<2x10xf32> -> vector<2x10xf32>
    %245 = arith.mulf %21, %192 : vector<2x10xf32>
    %246 = arith.addf %245, %244 : vector<2x10xf32>
    %cst_146 = arith.constant 1.000000e+00 : f32
    %247 = vector.broadcast %cst_146 : f32 to vector<2x10xf32>
    %248 = arith.cmpf ogt, %192, %247 : vector<2x10xf32>
    %cst_147 = arith.constant 1.000000e+00 : f32
    %249 = vector.broadcast %cst_147 : f32 to vector<2x10xf32>
    %250 = arith.subf %246, %249 : vector<2x10xf32>
    %251 = arith.select %248, %250, %246 : vector<2x10xi1>, vector<2x10xf32>
    %cst_148 = arith.constant 1.000000e+00 : f32
    %252 = vector.broadcast %cst_148 : f32 to vector<2x10xf32>
    %253 = arith.cmpf ogt, %251, %252 : vector<2x10xf32>
    %cst_149 = arith.constant 1.000000e+00 : f32
    %cst_150 = arith.constant 0.000000e+00 : f32
    %254 = vector.broadcast %cst_149 : f32 to vector<2x10xf32>
    %255 = vector.broadcast %cst_150 : f32 to vector<2x10xf32>
    %256 = arith.select %253, %254, %255 : vector<2x10xi1>, vector<2x10xf32>
    %c6 = arith.constant 6 : index
    %c0_151 = arith.constant 0 : index
    %257 = vector.load %arg10[%c6, %c0_151] : memref<16x32xf32, #tpu.memory_space<vmem>>, vector<2x32xf32>
    tpu.vector_store %arg10[%c6, %c0_151], %217 {strides = array<i32>} : memref<16x32xf32, #tpu.memory_space<vmem>>, vector<2x32xf32>,
    %c6_152 = arith.constant 6 : index
    %c0_153 = arith.constant 0 : index
    %258 = vector.load %arg11[%c6_152, %c0_153] : memref<16x32xf32, #tpu.memory_space<vmem>>, vector<2x32xf32>
    tpu.vector_store %arg11[%c6_152, %c0_153], %230 {strides = array<i32>} : memref<16x32xf32, #tpu.memory_space<vmem>>, vector<2x32xf32>,
    %c6_154 = arith.constant 6 : index
    %c0_155 = arith.constant 0 : index
    %259 = vector.load %arg12[%c6_154, %c0_155] : memref<16x32xf32, #tpu.memory_space<vmem>>, vector<2x32xf32>
    tpu.vector_store %arg12[%c6_154, %c0_155], %243 {strides = array<i32>} : memref<16x32xf32, #tpu.memory_space<vmem>>, vector<2x32xf32>,
    %c6_156 = arith.constant 6 : index
    %c0_157 = arith.constant 0 : index
    %260 = vector.load %arg13[%c6_156, %c0_157] : memref<16x10xf32, #tpu.memory_space<vmem>>, vector<2x10xf32>
    tpu.vector_store %arg13[%c6_156, %c0_157], %256 {strides = array<i32>} : memref<16x10xf32, #tpu.memory_space<vmem>>, vector<2x10xf32>,
    %c6_158 = arith.constant 6 : index
    %c0_159 = arith.constant 0 : index
    %261 = vector.load %arg14[%c6_158, %c0_159] : memref<16x10xf32, #tpu.memory_space<vmem>>, vector<2x10xf32>
    tpu.vector_store %arg14[%c6_158, %c0_159], %251 {strides = array<i32>} : memref<16x10xf32, #tpu.memory_space<vmem>>, vector<2x10xf32>,
    %262 = vector.extract_strided_slice %5 {offsets = [4, 0, 0], sizes = [1, 2, 16], strides = [1, 1, 1]} : vector<8x2x16xf32> to vector<1x2x16xf32>
    %263 = vector.shape_cast %262 : vector<1x2x16xf32> to vector<2x16xf32>
    %cst_160 = arith.constant dense<0.000000e+00> : vector<2x32xf32>
    %264 = tpu.matmul %263, %6, %cst_160 {dimension_numbers = #tpu.dot_dimension_numbers<[1], [0], [0], [1], [0, 0, 1, 1], [], []>} : vector<2x16xf32>, vector<16x32xf32>, vector<2x32xf32> -> vector<2x32xf32>
    %265 = arith.mulf %12, %212 : vector<2x32xf32>
    %266 = arith.addf %265, %264 : vector<2x32xf32>
    %cst_161 = arith.constant 1.000000e+00 : f32
    %267 = vector.broadcast %cst_161 : f32 to vector<2x32xf32>
    %268 = arith.cmpf ogt, %212, %267 : vector<2x32xf32>
    %cst_162 = arith.constant 1.000000e+00 : f32
    %269 = vector.broadcast %cst_162 : f32 to vector<2x32xf32>
    %270 = arith.subf %266, %269 : vector<2x32xf32>
    %271 = arith.select %268, %270, %266 : vector<2x32xi1>, vector<2x32xf32>
    %cst_163 = arith.constant 1.000000e+00 : f32
    %272 = vector.broadcast %cst_163 : f32 to vector<2x32xf32>
    %273 = arith.cmpf ogt, %271, %272 : vector<2x32xf32>
    %cst_164 = arith.constant 1.000000e+00 : f32
    %cst_165 = arith.constant 0.000000e+00 : f32
    %274 = vector.broadcast %cst_164 : f32 to vector<2x32xf32>
    %275 = vector.broadcast %cst_165 : f32 to vector<2x32xf32>
    %276 = arith.select %273, %274, %275 : vector<2x32xi1>, vector<2x32xf32>
    %cst_166 = arith.constant dense<0.000000e+00> : vector<2x32xf32>
    %277 = tpu.matmul %276, %7, %cst_166 {dimension_numbers = #tpu.dot_dimension_numbers<[1], [0], [0], [1], [0, 0, 1, 1], [], []>} : vector<2x32xf32>, vector<32x32xf32>, vector<2x32xf32> -> vector<2x32xf32>
    %278 = arith.mulf %15, %225 : vector<2x32xf32>
    %279 = arith.addf %278, %277 : vector<2x32xf32>
    %cst_167 = arith.constant 1.000000e+00 : f32
    %280 = vector.broadcast %cst_167 : f32 to vector<2x32xf32>
    %281 = arith.cmpf ogt, %225, %280 : vector<2x32xf32>
    %cst_168 = arith.constant 1.000000e+00 : f32
    %282 = vector.broadcast %cst_168 : f32 to vector<2x32xf32>
    %283 = arith.subf %279, %282 : vector<2x32xf32>
    %284 = arith.select %281, %283, %279 : vector<2x32xi1>, vector<2x32xf32>
    %cst_169 = arith.constant 1.000000e+00 : f32
    %285 = vector.broadcast %cst_169 : f32 to vector<2x32xf32>
    %286 = arith.cmpf ogt, %284, %285 : vector<2x32xf32>
    %cst_170 = arith.constant 1.000000e+00 : f32
    %cst_171 = arith.constant 0.000000e+00 : f32
    %287 = vector.broadcast %cst_170 : f32 to vector<2x32xf32>
    %288 = vector.broadcast %cst_171 : f32 to vector<2x32xf32>
    %289 = arith.select %286, %287, %288 : vector<2x32xi1>, vector<2x32xf32>
    %cst_172 = arith.constant dense<0.000000e+00> : vector<2x32xf32>
    %290 = tpu.matmul %289, %8, %cst_172 {dimension_numbers = #tpu.dot_dimension_numbers<[1], [0], [0], [1], [0, 0, 1, 1], [], []>} : vector<2x32xf32>, vector<32x32xf32>, vector<2x32xf32> -> vector<2x32xf32>
    %291 = arith.mulf %18, %238 : vector<2x32xf32>
    %292 = arith.addf %291, %290 : vector<2x32xf32>
    %cst_173 = arith.constant 1.000000e+00 : f32
    %293 = vector.broadcast %cst_173 : f32 to vector<2x32xf32>
    %294 = arith.cmpf ogt, %238, %293 : vector<2x32xf32>
    %cst_174 = arith.constant 1.000000e+00 : f32
    %295 = vector.broadcast %cst_174 : f32 to vector<2x32xf32>
    %296 = arith.subf %292, %295 : vector<2x32xf32>
    %297 = arith.select %294, %296, %292 : vector<2x32xi1>, vector<2x32xf32>
    %cst_175 = arith.constant 1.000000e+00 : f32
    %298 = vector.broadcast %cst_175 : f32 to vector<2x32xf32>
    %299 = arith.cmpf ogt, %297, %298 : vector<2x32xf32>
    %cst_176 = arith.constant 1.000000e+00 : f32
    %cst_177 = arith.constant 0.000000e+00 : f32
    %300 = vector.broadcast %cst_176 : f32 to vector<2x32xf32>
    %301 = vector.broadcast %cst_177 : f32 to vector<2x32xf32>
    %302 = arith.select %299, %300, %301 : vector<2x32xi1>, vector<2x32xf32>
    %cst_178 = arith.constant dense<0.000000e+00> : vector<2x10xf32>
    %303 = tpu.matmul %302, %9, %cst_178 {dimension_numbers = #tpu.dot_dimension_numbers<[1], [0], [0], [1], [0, 0, 1, 1], [], []>} : vector<2x32xf32>, vector<32x10xf32>, vector<2x10xf32> -> vector<2x10xf32>
    %304 = arith.mulf %21, %251 : vector<2x10xf32>
    %305 = arith.addf %304, %303 : vector<2x10xf32>
    %cst_179 = arith.constant 1.000000e+00 : f32
    %306 = vector.broadcast %cst_179 : f32 to vector<2x10xf32>
    %307 = arith.cmpf ogt, %251, %306 : vector<2x10xf32>
    %cst_180 = arith.constant 1.000000e+00 : f32
    %308 = vector.broadcast %cst_180 : f32 to vector<2x10xf32>
    %309 = arith.subf %305, %308 : vector<2x10xf32>
    %310 = arith.select %307, %309, %305 : vector<2x10xi1>, vector<2x10xf32>
    %cst_181 = arith.constant 1.000000e+00 : f32
    %311 = vector.broadcast %cst_181 : f32 to vector<2x10xf32>
    %312 = arith.cmpf ogt, %310, %311 : vector<2x10xf32>
    %cst_182 = arith.constant 1.000000e+00 : f32
    %cst_183 = arith.constant 0.000000e+00 : f32
    %313 = vector.broadcast %cst_182 : f32 to vector<2x10xf32>
    %314 = vector.broadcast %cst_183 : f32 to vector<2x10xf32>
    %315 = arith.select %312, %313, %314 : vector<2x10xi1>, vector<2x10xf32>
    %c8 = arith.constant 8 : index
    %c0_184 = arith.constant 0 : index
    %316 = vector.load %arg10[%c8, %c0_184] : memref<16x32xf32, #tpu.memory_space<vmem>>, vector<2x32xf32>
    tpu.vector_store %arg10[%c8, %c0_184], %276 {strides = array<i32>} : memref<16x32xf32, #tpu.memory_space<vmem>>, vector<2x32xf32>,
    %c8_185 = arith.constant 8 : index
    %c0_186 = arith.constant 0 : index
    %317 = vector.load %arg11[%c8_185, %c0_186] : memref<16x32xf32, #tpu.memory_space<vmem>>, vector<2x32xf32>
    tpu.vector_store %arg11[%c8_185, %c0_186], %289 {strides = array<i32>} : memref<16x32xf32, #tpu.memory_space<vmem>>, vector<2x32xf32>,
    %c8_187 = arith.constant 8 : index
    %c0_188 = arith.constant 0 : index
    %318 = vector.load %arg12[%c8_187, %c0_188] : memref<16x32xf32, #tpu.memory_space<vmem>>, vector<2x32xf32>
    tpu.vector_store %arg12[%c8_187, %c0_188], %302 {strides = array<i32>} : memref<16x32xf32, #tpu.memory_space<vmem>>, vector<2x32xf32>,
    %c8_189 = arith.constant 8 : index
    %c0_190 = arith.constant 0 : index
    %319 = vector.load %arg13[%c8_189, %c0_190] : memref<16x10xf32, #tpu.memory_space<vmem>>, vector<2x10xf32>
    tpu.vector_store %arg13[%c8_189, %c0_190], %315 {strides = array<i32>} : memref<16x10xf32, #tpu.memory_space<vmem>>, vector<2x10xf32>,
    %c8_191 = arith.constant 8 : index
    %c0_192 = arith.constant 0 : index
    %320 = vector.load %arg14[%c8_191, %c0_192] : memref<16x10xf32, #tpu.memory_space<vmem>>, vector<2x10xf32>
    tpu.vector_store %arg14[%c8_191, %c0_192], %310 {strides = array<i32>} : memref<16x10xf32, #tpu.memory_space<vmem>>, vector<2x10xf32>,
    %321 = vector.extract_strided_slice %5 {offsets = [5, 0, 0], sizes = [1, 2, 16], strides = [1, 1, 1]} : vector<8x2x16xf32> to vector<1x2x16xf32>
    %322 = vector.shape_cast %321 : vector<1x2x16xf32> to vector<2x16xf32>
    %cst_193 = arith.constant dense<0.000000e+00> : vector<2x32xf32>
    %323 = tpu.matmul %322, %6, %cst_193 {dimension_numbers = #tpu.dot_dimension_numbers<[1], [0], [0], [1], [0, 0, 1, 1], [], []>} : vector<2x16xf32>, vector<16x32xf32>, vector<2x32xf32> -> vector<2x32xf32>
    %324 = arith.mulf %12, %271 : vector<2x32xf32>
    %325 = arith.addf %324, %323 : vector<2x32xf32>
    %cst_194 = arith.constant 1.000000e+00 : f32
    %326 = vector.broadcast %cst_194 : f32 to vector<2x32xf32>
    %327 = arith.cmpf ogt, %271, %326 : vector<2x32xf32>
    %cst_195 = arith.constant 1.000000e+00 : f32
    %328 = vector.broadcast %cst_195 : f32 to vector<2x32xf32>
    %329 = arith.subf %325, %328 : vector<2x32xf32>
    %330 = arith.select %327, %329, %325 : vector<2x32xi1>, vector<2x32xf32>
    %cst_196 = arith.constant 1.000000e+00 : f32
    %331 = vector.broadcast %cst_196 : f32 to vector<2x32xf32>
    %332 = arith.cmpf ogt, %330, %331 : vector<2x32xf32>
    %cst_197 = arith.constant 1.000000e+00 : f32
    %cst_198 = arith.constant 0.000000e+00 : f32
    %333 = vector.broadcast %cst_197 : f32 to vector<2x32xf32>
    %334 = vector.broadcast %cst_198 : f32 to vector<2x32xf32>
    %335 = arith.select %332, %333, %334 : vector<2x32xi1>, vector<2x32xf32>
    %cst_199 = arith.constant dense<0.000000e+00> : vector<2x32xf32>
    %336 = tpu.matmul %335, %7, %cst_199 {dimension_numbers = #tpu.dot_dimension_numbers<[1], [0], [0], [1], [0, 0, 1, 1], [], []>} : vector<2x32xf32>, vector<32x32xf32>, vector<2x32xf32> -> vector<2x32xf32>
    %337 = arith.mulf %15, %284 : vector<2x32xf32>
    %338 = arith.addf %337, %336 : vector<2x32xf32>
    %cst_200 = arith.constant 1.000000e+00 : f32
    %339 = vector.broadcast %cst_200 : f32 to vector<2x32xf32>
    %340 = arith.cmpf ogt, %284, %339 : vector<2x32xf32>
    %cst_201 = arith.constant 1.000000e+00 : f32
    %341 = vector.broadcast %cst_201 : f32 to vector<2x32xf32>
    %342 = arith.subf %338, %341 : vector<2x32xf32>
    %343 = arith.select %340, %342, %338 : vector<2x32xi1>, vector<2x32xf32>
    %cst_202 = arith.constant 1.000000e+00 : f32
    %344 = vector.broadcast %cst_202 : f32 to vector<2x32xf32>
    %345 = arith.cmpf ogt, %343, %344 : vector<2x32xf32>
    %cst_203 = arith.constant 1.000000e+00 : f32
    %cst_204 = arith.constant 0.000000e+00 : f32
    %346 = vector.broadcast %cst_203 : f32 to vector<2x32xf32>
    %347 = vector.broadcast %cst_204 : f32 to vector<2x32xf32>
    %348 = arith.select %345, %346, %347 : vector<2x32xi1>, vector<2x32xf32>
    %cst_205 = arith.constant dense<0.000000e+00> : vector<2x32xf32>
    %349 = tpu.matmul %348, %8, %cst_205 {dimension_numbers = #tpu.dot_dimension_numbers<[1], [0], [0], [1], [0, 0, 1, 1], [], []>} : vector<2x32xf32>, vector<32x32xf32>, vector<2x32xf32> -> vector<2x32xf32>
    %350 = arith.mulf %18, %297 : vector<2x32xf32>
    %351 = arith.addf %350, %349 : vector<2x32xf32>
    %cst_206 = arith.constant 1.000000e+00 : f32
    %352 = vector.broadcast %cst_206 : f32 to vector<2x32xf32>
    %353 = arith.cmpf ogt, %297, %352 : vector<2x32xf32>
    %cst_207 = arith.constant 1.000000e+00 : f32
    %354 = vector.broadcast %cst_207 : f32 to vector<2x32xf32>
    %355 = arith.subf %351, %354 : vector<2x32xf32>
    %356 = arith.select %353, %355, %351 : vector<2x32xi1>, vector<2x32xf32>
    %cst_208 = arith.constant 1.000000e+00 : f32
    %357 = vector.broadcast %cst_208 : f32 to vector<2x32xf32>
    %358 = arith.cmpf ogt, %356, %357 : vector<2x32xf32>
    %cst_209 = arith.constant 1.000000e+00 : f32
    %cst_210 = arith.constant 0.000000e+00 : f32
    %359 = vector.broadcast %cst_209 : f32 to vector<2x32xf32>
    %360 = vector.broadcast %cst_210 : f32 to vector<2x32xf32>
    %361 = arith.select %358, %359, %360 : vector<2x32xi1>, vector<2x32xf32>
    %cst_211 = arith.constant dense<0.000000e+00> : vector<2x10xf32>
    %362 = tpu.matmul %361, %9, %cst_211 {dimension_numbers = #tpu.dot_dimension_numbers<[1], [0], [0], [1], [0, 0, 1, 1], [], []>} : vector<2x32xf32>, vector<32x10xf32>, vector<2x10xf32> -> vector<2x10xf32>
    %363 = arith.mulf %21, %310 : vector<2x10xf32>
    %364 = arith.addf %363, %362 : vector<2x10xf32>
    %cst_212 = arith.constant 1.000000e+00 : f32
    %365 = vector.broadcast %cst_212 : f32 to vector<2x10xf32>
    %366 = arith.cmpf ogt, %310, %365 : vector<2x10xf32>
    %cst_213 = arith.constant 1.000000e+00 : f32
    %367 = vector.broadcast %cst_213 : f32 to vector<2x10xf32>
    %368 = arith.subf %364, %367 : vector<2x10xf32>
    %369 = arith.select %366, %368, %364 : vector<2x10xi1>, vector<2x10xf32>
    %cst_214 = arith.constant 1.000000e+00 : f32
    %370 = vector.broadcast %cst_214 : f32 to vector<2x10xf32>
    %371 = arith.cmpf ogt, %369, %370 : vector<2x10xf32>
    %cst_215 = arith.constant 1.000000e+00 : f32
    %cst_216 = arith.constant 0.000000e+00 : f32
    %372 = vector.broadcast %cst_215 : f32 to vector<2x10xf32>
    %373 = vector.broadcast %cst_216 : f32 to vector<2x10xf32>
    %374 = arith.select %371, %372, %373 : vector<2x10xi1>, vector<2x10xf32>
    %c10 = arith.constant 10 : index
    %c0_217 = arith.constant 0 : index
    %375 = vector.load %arg10[%c10, %c0_217] : memref<16x32xf32, #tpu.memory_space<vmem>>, vector<2x32xf32>
    tpu.vector_store %arg10[%c10, %c0_217], %335 {strides = array<i32>} : memref<16x32xf32, #tpu.memory_space<vmem>>, vector<2x32xf32>,
    %c10_218 = arith.constant 10 : index
    %c0_219 = arith.constant 0 : index
    %376 = vector.load %arg11[%c10_218, %c0_219] : memref<16x32xf32, #tpu.memory_space<vmem>>, vector<2x32xf32>
    tpu.vector_store %arg11[%c10_218, %c0_219], %348 {strides = array<i32>} : memref<16x32xf32, #tpu.memory_space<vmem>>, vector<2x32xf32>,
    %c10_220 = arith.constant 10 : index
    %c0_221 = arith.constant 0 : index
    %377 = vector.load %arg12[%c10_220, %c0_221] : memref<16x32xf32, #tpu.memory_space<vmem>>, vector<2x32xf32>
    tpu.vector_store %arg12[%c10_220, %c0_221], %361 {strides = array<i32>} : memref<16x32xf32, #tpu.memory_space<vmem>>, vector<2x32xf32>,
    %c10_222 = arith.constant 10 : index
    %c0_223 = arith.constant 0 : index
    %378 = vector.load %arg13[%c10_222, %c0_223] : memref<16x10xf32, #tpu.memory_space<vmem>>, vector<2x10xf32>
    tpu.vector_store %arg13[%c10_222, %c0_223], %374 {strides = array<i32>} : memref<16x10xf32, #tpu.memory_space<vmem>>, vector<2x10xf32>,
    %c10_224 = arith.constant 10 : index
    %c0_225 = arith.constant 0 : index
    %379 = vector.load %arg14[%c10_224, %c0_225] : memref<16x10xf32, #tpu.memory_space<vmem>>, vector<2x10xf32>
    tpu.vector_store %arg14[%c10_224, %c0_225], %369 {strides = array<i32>} : memref<16x10xf32, #tpu.memory_space<vmem>>, vector<2x10xf32>,
    %380 = vector.extract_strided_slice %5 {offsets = [6, 0, 0], sizes = [1, 2, 16], strides = [1, 1, 1]} : vector<8x2x16xf32> to vector<1x2x16xf32>
    %381 = vector.shape_cast %380 : vector<1x2x16xf32> to vector<2x16xf32>
    %cst_226 = arith.constant dense<0.000000e+00> : vector<2x32xf32>
    %382 = tpu.matmul %381, %6, %cst_226 {dimension_numbers = #tpu.dot_dimension_numbers<[1], [0], [0], [1], [0, 0, 1, 1], [], []>} : vector<2x16xf32>, vector<16x32xf32>, vector<2x32xf32> -> vector<2x32xf32>
    %383 = arith.mulf %12, %330 : vector<2x32xf32>
    %384 = arith.addf %383, %382 : vector<2x32xf32>
    %cst_227 = arith.constant 1.000000e+00 : f32
    %385 = vector.broadcast %cst_227 : f32 to vector<2x32xf32>
    %386 = arith.cmpf ogt, %330, %385 : vector<2x32xf32>
    %cst_228 = arith.constant 1.000000e+00 : f32
    %387 = vector.broadcast %cst_228 : f32 to vector<2x32xf32>
    %388 = arith.subf %384, %387 : vector<2x32xf32>
    %389 = arith.select %386, %388, %384 : vector<2x32xi1>, vector<2x32xf32>
    %cst_229 = arith.constant 1.000000e+00 : f32
    %390 = vector.broadcast %cst_229 : f32 to vector<2x32xf32>
    %391 = arith.cmpf ogt, %389, %390 : vector<2x32xf32>
    %cst_230 = arith.constant 1.000000e+00 : f32
    %cst_231 = arith.constant 0.000000e+00 : f32
    %392 = vector.broadcast %cst_230 : f32 to vector<2x32xf32>
    %393 = vector.broadcast %cst_231 : f32 to vector<2x32xf32>
    %394 = arith.select %391, %392, %393 : vector<2x32xi1>, vector<2x32xf32>
    %cst_232 = arith.constant dense<0.000000e+00> : vector<2x32xf32>
    %395 = tpu.matmul %394, %7, %cst_232 {dimension_numbers = #tpu.dot_dimension_numbers<[1], [0], [0], [1], [0, 0, 1, 1], [], []>} : vector<2x32xf32>, vector<32x32xf32>, vector<2x32xf32> -> vector<2x32xf32>
    %396 = arith.mulf %15, %343 : vector<2x32xf32>
    %397 = arith.addf %396, %395 : vector<2x32xf32>
    %cst_233 = arith.constant 1.000000e+00 : f32
    %398 = vector.broadcast %cst_233 : f32 to vector<2x32xf32>
    %399 = arith.cmpf ogt, %343, %398 : vector<2x32xf32>
    %cst_234 = arith.constant 1.000000e+00 : f32
    %400 = vector.broadcast %cst_234 : f32 to vector<2x32xf32>
    %401 = arith.subf %397, %400 : vector<2x32xf32>
    %402 = arith.select %399, %401, %397 : vector<2x32xi1>, vector<2x32xf32>
    %cst_235 = arith.constant 1.000000e+00 : f32
    %403 = vector.broadcast %cst_235 : f32 to vector<2x32xf32>
    %404 = arith.cmpf ogt, %402, %403 : vector<2x32xf32>
    %cst_236 = arith.constant 1.000000e+00 : f32
    %cst_237 = arith.constant 0.000000e+00 : f32
    %405 = vector.broadcast %cst_236 : f32 to vector<2x32xf32>
    %406 = vector.broadcast %cst_237 : f32 to vector<2x32xf32>
    %407 = arith.select %404, %405, %406 : vector<2x32xi1>, vector<2x32xf32>
    %cst_238 = arith.constant dense<0.000000e+00> : vector<2x32xf32>
    %408 = tpu.matmul %407, %8, %cst_238 {dimension_numbers = #tpu.dot_dimension_numbers<[1], [0], [0], [1], [0, 0, 1, 1], [], []>} : vector<2x32xf32>, vector<32x32xf32>, vector<2x32xf32> -> vector<2x32xf32>
    %409 = arith.mulf %18, %356 : vector<2x32xf32>
    %410 = arith.addf %409, %408 : vector<2x32xf32>
    %cst_239 = arith.constant 1.000000e+00 : f32
    %411 = vector.broadcast %cst_239 : f32 to vector<2x32xf32>
    %412 = arith.cmpf ogt, %356, %411 : vector<2x32xf32>
    %cst_240 = arith.constant 1.000000e+00 : f32
    %413 = vector.broadcast %cst_240 : f32 to vector<2x32xf32>
    %414 = arith.subf %410, %413 : vector<2x32xf32>
    %415 = arith.select %412, %414, %410 : vector<2x32xi1>, vector<2x32xf32>
    %cst_241 = arith.constant 1.000000e+00 : f32
    %416 = vector.broadcast %cst_241 : f32 to vector<2x32xf32>
    %417 = arith.cmpf ogt, %415, %416 : vector<2x32xf32>
    %cst_242 = arith.constant 1.000000e+00 : f32
    %cst_243 = arith.constant 0.000000e+00 : f32
    %418 = vector.broadcast %cst_242 : f32 to vector<2x32xf32>
    %419 = vector.broadcast %cst_243 : f32 to vector<2x32xf32>
    %420 = arith.select %417, %418, %419 : vector<2x32xi1>, vector<2x32xf32>
    %cst_244 = arith.constant dense<0.000000e+00> : vector<2x10xf32>
    %421 = tpu.matmul %420, %9, %cst_244 {dimension_numbers = #tpu.dot_dimension_numbers<[1], [0], [0], [1], [0, 0, 1, 1], [], []>} : vector<2x32xf32>, vector<32x10xf32>, vector<2x10xf32> -> vector<2x10xf32>
    %422 = arith.mulf %21, %369 : vector<2x10xf32>
    %423 = arith.addf %422, %421 : vector<2x10xf32>
    %cst_245 = arith.constant 1.000000e+00 : f32
    %424 = vector.broadcast %cst_245 : f32 to vector<2x10xf32>
    %425 = arith.cmpf ogt, %369, %424 : vector<2x10xf32>
    %cst_246 = arith.constant 1.000000e+00 : f32
    %426 = vector.broadcast %cst_246 : f32 to vector<2x10xf32>
    %427 = arith.subf %423, %426 : vector<2x10xf32>
    %428 = arith.select %425, %427, %423 : vector<2x10xi1>, vector<2x10xf32>
    %cst_247 = arith.constant 1.000000e+00 : f32
    %429 = vector.broadcast %cst_247 : f32 to vector<2x10xf32>
    %430 = arith.cmpf ogt, %428, %429 : vector<2x10xf32>
    %cst_248 = arith.constant 1.000000e+00 : f32
    %cst_249 = arith.constant 0.000000e+00 : f32
    %431 = vector.broadcast %cst_248 : f32 to vector<2x10xf32>
    %432 = vector.broadcast %cst_249 : f32 to vector<2x10xf32>
    %433 = arith.select %430, %431, %432 : vector<2x10xi1>, vector<2x10xf32>
    %c12 = arith.constant 12 : index
    %c0_250 = arith.constant 0 : index
    %434 = vector.load %arg10[%c12, %c0_250] : memref<16x32xf32, #tpu.memory_space<vmem>>, vector<2x32xf32>
    tpu.vector_store %arg10[%c12, %c0_250], %394 {strides = array<i32>} : memref<16x32xf32, #tpu.memory_space<vmem>>, vector<2x32xf32>,
    %c12_251 = arith.constant 12 : index
    %c0_252 = arith.constant 0 : index
    %435 = vector.load %arg11[%c12_251, %c0_252] : memref<16x32xf32, #tpu.memory_space<vmem>>, vector<2x32xf32>
    tpu.vector_store %arg11[%c12_251, %c0_252], %407 {strides = array<i32>} : memref<16x32xf32, #tpu.memory_space<vmem>>, vector<2x32xf32>,
    %c12_253 = arith.constant 12 : index
    %c0_254 = arith.constant 0 : index
    %436 = vector.load %arg12[%c12_253, %c0_254] : memref<16x32xf32, #tpu.memory_space<vmem>>, vector<2x32xf32>
    tpu.vector_store %arg12[%c12_253, %c0_254], %420 {strides = array<i32>} : memref<16x32xf32, #tpu.memory_space<vmem>>, vector<2x32xf32>,
    %c12_255 = arith.constant 12 : index
    %c0_256 = arith.constant 0 : index
    %437 = vector.load %arg13[%c12_255, %c0_256] : memref<16x10xf32, #tpu.memory_space<vmem>>, vector<2x10xf32>
    tpu.vector_store %arg13[%c12_255, %c0_256], %433 {strides = array<i32>} : memref<16x10xf32, #tpu.memory_space<vmem>>, vector<2x10xf32>,
    %c12_257 = arith.constant 12 : index
    %c0_258 = arith.constant 0 : index
    %438 = vector.load %arg14[%c12_257, %c0_258] : memref<16x10xf32, #tpu.memory_space<vmem>>, vector<2x10xf32>
    tpu.vector_store %arg14[%c12_257, %c0_258], %428 {strides = array<i32>} : memref<16x10xf32, #tpu.memory_space<vmem>>, vector<2x10xf32>,
    %439 = vector.extract_strided_slice %5 {offsets = [7, 0, 0], sizes = [1, 2, 16], strides = [1, 1, 1]} : vector<8x2x16xf32> to vector<1x2x16xf32>
    %440 = vector.shape_cast %439 : vector<1x2x16xf32> to vector<2x16xf32>
    %cst_259 = arith.constant dense<0.000000e+00> : vector<2x32xf32>
    %441 = tpu.matmul %440, %6, %cst_259 {dimension_numbers = #tpu.dot_dimension_numbers<[1], [0], [0], [1], [0, 0, 1, 1], [], []>} : vector<2x16xf32>, vector<16x32xf32>, vector<2x32xf32> -> vector<2x32xf32>
    %442 = arith.mulf %12, %389 : vector<2x32xf32>
    %443 = arith.addf %442, %441 : vector<2x32xf32>
    %cst_260 = arith.constant 1.000000e+00 : f32
    %444 = vector.broadcast %cst_260 : f32 to vector<2x32xf32>
    %445 = arith.cmpf ogt, %389, %444 : vector<2x32xf32>
    %cst_261 = arith.constant 1.000000e+00 : f32
    %446 = vector.broadcast %cst_261 : f32 to vector<2x32xf32>
    %447 = arith.subf %443, %446 : vector<2x32xf32>
    %448 = arith.select %445, %447, %443 : vector<2x32xi1>, vector<2x32xf32>
    %cst_262 = arith.constant 1.000000e+00 : f32
    %449 = vector.broadcast %cst_262 : f32 to vector<2x32xf32>
    %450 = arith.cmpf ogt, %448, %449 : vector<2x32xf32>
    %cst_263 = arith.constant 1.000000e+00 : f32
    %cst_264 = arith.constant 0.000000e+00 : f32
    %451 = vector.broadcast %cst_263 : f32 to vector<2x32xf32>
    %452 = vector.broadcast %cst_264 : f32 to vector<2x32xf32>
    %453 = arith.select %450, %451, %452 : vector<2x32xi1>, vector<2x32xf32>
    %cst_265 = arith.constant dense<0.000000e+00> : vector<2x32xf32>
    %454 = tpu.matmul %453, %7, %cst_265 {dimension_numbers = #tpu.dot_dimension_numbers<[1], [0], [0], [1], [0, 0, 1, 1], [], []>} : vector<2x32xf32>, vector<32x32xf32>, vector<2x32xf32> -> vector<2x32xf32>
    %455 = arith.mulf %15, %402 : vector<2x32xf32>
    %456 = arith.addf %455, %454 : vector<2x32xf32>
    %cst_266 = arith.constant 1.000000e+00 : f32
    %457 = vector.broadcast %cst_266 : f32 to vector<2x32xf32>
    %458 = arith.cmpf ogt, %402, %457 : vector<2x32xf32>
    %cst_267 = arith.constant 1.000000e+00 : f32
    %459 = vector.broadcast %cst_267 : f32 to vector<2x32xf32>
    %460 = arith.subf %456, %459 : vector<2x32xf32>
    %461 = arith.select %458, %460, %456 : vector<2x32xi1>, vector<2x32xf32>
    %cst_268 = arith.constant 1.000000e+00 : f32
    %462 = vector.broadcast %cst_268 : f32 to vector<2x32xf32>
    %463 = arith.cmpf ogt, %461, %462 : vector<2x32xf32>
    %cst_269 = arith.constant 1.000000e+00 : f32
    %cst_270 = arith.constant 0.000000e+00 : f32
    %464 = vector.broadcast %cst_269 : f32 to vector<2x32xf32>
    %465 = vector.broadcast %cst_270 : f32 to vector<2x32xf32>
    %466 = arith.select %463, %464, %465 : vector<2x32xi1>, vector<2x32xf32>
    %cst_271 = arith.constant dense<0.000000e+00> : vector<2x32xf32>
    %467 = tpu.matmul %466, %8, %cst_271 {dimension_numbers = #tpu.dot_dimension_numbers<[1], [0], [0], [1], [0, 0, 1, 1], [], []>} : vector<2x32xf32>, vector<32x32xf32>, vector<2x32xf32> -> vector<2x32xf32>
    %468 = arith.mulf %18, %415 : vector<2x32xf32>
    %469 = arith.addf %468, %467 : vector<2x32xf32>
    %cst_272 = arith.constant 1.000000e+00 : f32
    %470 = vector.broadcast %cst_272 : f32 to vector<2x32xf32>
    %471 = arith.cmpf ogt, %415, %470 : vector<2x32xf32>
    %cst_273 = arith.constant 1.000000e+00 : f32
    %472 = vector.broadcast %cst_273 : f32 to vector<2x32xf32>
    %473 = arith.subf %469, %472 : vector<2x32xf32>
    %474 = arith.select %471, %473, %469 : vector<2x32xi1>, vector<2x32xf32>
    %cst_274 = arith.constant 1.000000e+00 : f32
    %475 = vector.broadcast %cst_274 : f32 to vector<2x32xf32>
    %476 = arith.cmpf ogt, %474, %475 : vector<2x32xf32>
    %cst_275 = arith.constant 1.000000e+00 : f32
    %cst_276 = arith.constant 0.000000e+00 : f32
    %477 = vector.broadcast %cst_275 : f32 to vector<2x32xf32>
    %478 = vector.broadcast %cst_276 : f32 to vector<2x32xf32>
    %479 = arith.select %476, %477, %478 : vector<2x32xi1>, vector<2x32xf32>
    %cst_277 = arith.constant dense<0.000000e+00> : vector<2x10xf32>
    %480 = tpu.matmul %479, %9, %cst_277 {dimension_numbers = #tpu.dot_dimension_numbers<[1], [0], [0], [1], [0, 0, 1, 1], [], []>} : vector<2x32xf32>, vector<32x10xf32>, vector<2x10xf32> -> vector<2x10xf32>
    %481 = arith.mulf %21, %428 : vector<2x10xf32>
    %482 = arith.addf %481, %480 : vector<2x10xf32>
    %cst_278 = arith.constant 1.000000e+00 : f32
    %483 = vector.broadcast %cst_278 : f32 to vector<2x10xf32>
    %484 = arith.cmpf ogt, %428, %483 : vector<2x10xf32>
    %cst_279 = arith.constant 1.000000e+00 : f32
    %485 = vector.broadcast %cst_279 : f32 to vector<2x10xf32>
    %486 = arith.subf %482, %485 : vector<2x10xf32>
    %487 = arith.select %484, %486, %482 : vector<2x10xi1>, vector<2x10xf32>
    %cst_280 = arith.constant 1.000000e+00 : f32
    %488 = vector.broadcast %cst_280 : f32 to vector<2x10xf32>
    %489 = arith.cmpf ogt, %487, %488 : vector<2x10xf32>
    %cst_281 = arith.constant 1.000000e+00 : f32
    %cst_282 = arith.constant 0.000000e+00 : f32
    %490 = vector.broadcast %cst_281 : f32 to vector<2x10xf32>
    %491 = vector.broadcast %cst_282 : f32 to vector<2x10xf32>
    %492 = arith.select %489, %490, %491 : vector<2x10xi1>, vector<2x10xf32>
    %c14 = arith.constant 14 : index
    %c0_283 = arith.constant 0 : index
    %493 = vector.load %arg10[%c14, %c0_283] : memref<16x32xf32, #tpu.memory_space<vmem>>, vector<2x32xf32>
    tpu.vector_store %arg10[%c14, %c0_283], %453 {strides = array<i32>} : memref<16x32xf32, #tpu.memory_space<vmem>>, vector<2x32xf32>,
    %c14_284 = arith.constant 14 : index
    %c0_285 = arith.constant 0 : index
    %494 = vector.load %arg11[%c14_284, %c0_285] : memref<16x32xf32, #tpu.memory_space<vmem>>, vector<2x32xf32>
    tpu.vector_store %arg11[%c14_284, %c0_285], %466 {strides = array<i32>} : memref<16x32xf32, #tpu.memory_space<vmem>>, vector<2x32xf32>,
    %c14_286 = arith.constant 14 : index
    %c0_287 = arith.constant 0 : index
    %495 = vector.load %arg12[%c14_286, %c0_287] : memref<16x32xf32, #tpu.memory_space<vmem>>, vector<2x32xf32>
    tpu.vector_store %arg12[%c14_286, %c0_287], %479 {strides = array<i32>} : memref<16x32xf32, #tpu.memory_space<vmem>>, vector<2x32xf32>,
    %c14_288 = arith.constant 14 : index
    %c0_289 = arith.constant 0 : index
    %496 = vector.load %arg13[%c14_288, %c0_289] : memref<16x10xf32, #tpu.memory_space<vmem>>, vector<2x10xf32>
    tpu.vector_store %arg13[%c14_288, %c0_289], %492 {strides = array<i32>} : memref<16x10xf32, #tpu.memory_space<vmem>>, vector<2x10xf32>,
    %c14_290 = arith.constant 14 : index
    %c0_291 = arith.constant 0 : index
    %497 = vector.load %arg14[%c14_290, %c0_291] : memref<16x10xf32, #tpu.memory_space<vmem>>, vector<2x10xf32>
    tpu.vector_store %arg14[%c14_290, %c0_291], %487 {strides = array<i32>} : memref<16x10xf32, #tpu.memory_space<vmem>>, vector<2x10xf32>,
    %c0_292 = arith.constant 0 : index
    %c0_293 = arith.constant 0 : index
    %498 = vector.load %arg15[%c0_292, %c0_293] : memref<2x32xf32, #tpu.memory_space<vmem>>, vector<2x32xf32>
    tpu.vector_store %arg15[%c0_292, %c0_293], %448 {strides = array<i32>} : memref<2x32xf32, #tpu.memory_space<vmem>>, vector<2x32xf32>,
    %c0_294 = arith.constant 0 : index
    %c0_295 = arith.constant 0 : index
    %499 = vector.load %arg16[%c0_294, %c0_295] : memref<2x32xf32, #tpu.memory_space<vmem>>, vector<2x32xf32>
    tpu.vector_store %arg16[%c0_294, %c0_295], %461 {strides = array<i32>} : memref<2x32xf32, #tpu.memory_space<vmem>>, vector<2x32xf32>,
    %c0_296 = arith.constant 0 : index
    %c0_297 = arith.constant 0 : index
    %500 = vector.load %arg17[%c0_296, %c0_297] : memref<2x32xf32, #tpu.memory_space<vmem>>, vector<2x32xf32>
    tpu.vector_store %arg17[%c0_296, %c0_297], %474 {strides = array<i32>} : memref<2x32xf32, #tpu.memory_space<vmem>>, vector<2x32xf32>,
    %c0_298 = arith.constant 0 : index
    %c0_299 = arith.constant 0 : index
    %501 = vector.load %arg18[%c0_298, %c0_299] : memref<2x10xf32, #tpu.memory_space<vmem>>, vector<2x10xf32>
    tpu.vector_store %arg18[%c0_298, %c0_299], %487 {strides = array<i32>} : memref<2x10xf32, #tpu.memory_space<vmem>>, vector<2x10xf32>,
    return
  }
  func.func @transform_0(%arg0: i32) -> (i32, i32, i32) {
    %c0_i32 = arith.constant 0 : i32
    %c0_i32_0 = arith.constant 0 : i32
    %c0_i32_1 = arith.constant 0 : i32
    return %arg0, %c0_i32, %c0_i32_0 : i32, i32, i32
  }
  func.func @transform_1(%arg0: i32) -> (i32, i32) {
    %c0_i32 = arith.constant 0 : i32
    %c0_i32_0 = arith.constant 0 : i32
    %c0_i32_1 = arith.constant 0 : i32
    return %c0_i32, %c0_i32_0 : i32, i32
  }
  func.func @transform_2(%arg0: i32) -> (i32, i32) {
    %c0_i32 = arith.constant 0 : i32
    %c0_i32_0 = arith.constant 0 : i32
    %c0_i32_1 = arith.constant 0 : i32
    return %c0_i32, %c0_i32_0 : i32, i32
  }
  func.func @transform_3(%arg0: i32) -> (i32, i32) {
    %c0_i32 = arith.constant 0 : i32
    %c0_i32_0 = arith.constant 0 : i32
    %c0_i32_1 = arith.constant 0 : i32
    return %c0_i32, %c0_i32_0 : i32, i32
  }
  func.func @transform_4(%arg0: i32) -> (i32, i32) {
    %c0_i32 = arith.constant 0 : i32
    %c0_i32_0 = arith.constant 0 : i32
    %c0_i32_1 = arith.constant 0 : i32
    return %c0_i32, %c0_i32_0 : i32, i32
  }
  func.func @transform_5(%arg0: i32) -> (i32, i32) {
    %c0_i32 = arith.constant 0 : i32
    %c0_i32_0 = arith.constant 0 : i32
    %c0_i32_1 = arith.constant 0 : i32
    return %c0_i32, %c0_i32_0 : i32, i32
  }
  func.func @transform_6(%arg0: i32) -> (i32, i32) {
    %c0_i32 = arith.constant 0 : i32
    %c0_i32_0 = arith.constant 0 : i32
    %c0_i32_1 = arith.constant 0 : i32
    return %c0_i32, %c0_i32_0 : i32, i32
  }
  func.func @transform_7(%arg0: i32) -> (i32, i32) {
    %c0_i32 = arith.constant 0 : i32
    %c0_i32_0 = arith.constant 0 : i32
    %c0_i32_1 = arith.constant 0 : i32
    return %c0_i32, %c0_i32_0 : i32, i32
  }
  func.func @transform_8(%arg0: i32) -> (i32, i32) {
    %c0_i32 = arith.constant 0 : i32
    %c0_i32_0 = arith.constant 0 : i32
    %c0_i32_1 = arith.constant 0 : i32
    return %c0_i32, %c0_i32_0 : i32, i32
  }
  func.func @transform_9(%arg0: i32) -> (i32, i32) {
    %c0_i32 = arith.constant 0 : i32
    %c0_i32_0 = arith.constant 0 : i32
    return %arg0, %c0_i32 : i32, i32
  }
  func.func @transform_10(%arg0: i32) -> (i32, i32) {
    %c0_i32 = arith.constant 0 : i32
    %c0_i32_0 = arith.constant 0 : i32
    return %arg0, %c0_i32 : i32, i32
  }
  func.func @transform_11(%arg0: i32) -> (i32, i32) {
    %c0_i32 = arith.constant 0 : i32
    %c0_i32_0 = arith.constant 0 : i32
    return %arg0, %c0_i32 : i32, i32
  }
  func.func @transform_12(%arg0: i32) -> (i32, i32) {
    %c0_i32 = arith.constant 0 : i32
    %c0_i32_0 = arith.constant 0 : i32
    return %arg0, %c0_i32 : i32, i32
  }
  func.func @transform_13(%arg0: i32) -> (i32, i32) {
    %c0_i32 = arith.constant 0 : i32
    %c0_i32_0 = arith.constant 0 : i32
    return %arg0, %c0_i32 : i32, i32
  }
}

</mosaic_0001>

<llo_original>
// kernel: tpu_custom_call.1
$region0: #{tpu_custom_call.1}
  #allocation0 [shape = 'u32[]', space=smem, size = 0x4, offset = 0x4, fixed_abs, tag = 'smem constant byte address 0x4 - core index']
  #allocation1 [shape = 'u32[144,128]{1,0:T(1,128)}', space=vmem, size = 0x12000, scoped, tag = 'internal scratch']
  #allocation2 [shape = 'f32[2,32]{1,0:T(2,128)}', space=vmem, size = 0x400, scoped, tag = 'scratch operand']
  #allocation3 [shape = 'f32[2,32]{1,0:T(2,128)}', space=vmem, size = 0x400, scoped, tag = 'scratch operand']
  #allocation4 [shape = 'f32[2,32]{1,0:T(2,128)}', space=vmem, size = 0x400, scoped, tag = 'scratch operand']
  #allocation5 [shape = 'f32[2,10]{1,0:T(2,128)}', space=vmem, size = 0x400, scoped, tag = 'scratch operand']
  %s0 = inlined_call_operand.vmem [shape: f32[40,2,16], index: 0, kind: input, shape index: {}]
  %s1 = inlined_call_operand.vmem [shape: f32[16,32], index: 1, kind: input, shape index: {}]
  %s2 = inlined_call_operand.vmem [shape: f32[32,32], index: 2, kind: input, shape index: {}]
  %s3 = inlined_call_operand.vmem [shape: f32[32,32], index: 3, kind: input, shape index: {}]
  %s4 = inlined_call_operand.vmem [shape: f32[32,10], index: 4, kind: input, shape index: {}]
  %s5 = inlined_call_operand.vmem [shape: f32[1,32], index: 5, kind: input, shape index: {}]
  %s6 = inlined_call_operand.vmem [shape: f32[1,32], index: 6, kind: input, shape index: {}]
  %s7 = inlined_call_operand.vmem [shape: f32[1,32], index: 7, kind: input, shape index: {}]
  %s8 = inlined_call_operand.vmem [shape: f32[1,10], index: 8, kind: input, shape index: {}]
  %s9 = inlined_call_operand.vmem [shape: f32[80,32], index: 9, kind: output, shape index: {0}]
  %s10 = inlined_call_operand.vmem [shape: f32[80,32], index: 10, kind: output, shape index: {1}]
  %s11 = inlined_call_operand.vmem [shape: f32[80,32], index: 11, kind: output, shape index: {2}]
  %s12 = inlined_call_operand.vmem [shape: f32[80,10], index: 12, kind: output, shape index: {3}]
  %s13 = inlined_call_operand.vmem [shape: f32[80,10], index: 13, kind: output, shape index: {4}]
  %14 = xla_tuple %s9, %s10, %s11, %s12, %s13
  %s15 = sld [smem:[#allocation0]]
  $region105: #{tpu_custom_call.1} parent=0
    _
  %s17 = ssub.s32 1, %s15
  %s18 = scalar_select 0, %s17, %s15
  loop: start=0, step=1, limit=7
  $region2: #{tpu_custom_call.1} parent=0 // loop_pre_header
    _
  $region3: #{tpu_custom_call.1} parent=0 // loop_header
    %s20 = sphi 0, %s24
    %p21 = scmp.ge.s32.totalorder %s20, 7
    %s30 = sphi 0, %s32
    %s33 = sphi 0, %s30
    %s34 = sphi 0, %s33
    %s50 = sphi 0, %s34
    %s54 = sphi 0, %s54
    %s56 = sphi 0, %s54
    %s57 = sphi 0, %s56
    %s71 = sphi 0, %s57
    %s75 = sphi 0, %s75
    %s77 = sphi 0, %s75
    %s78 = sphi 0, %s77
    %s92 = sphi 0, %s78
    %s96 = sphi 0, %s96
    %s98 = sphi 0, %s96
    %s99 = sphi 0, %s98
    %s113 = sphi 0, %s99
    %s117 = sphi 0, %s117
    %s119 = sphi 0, %s117
    %s120 = sphi 0, %s119
    %s134 = sphi 0, %s120
    %s138 = sphi 0, %s138
    %s140 = sphi 0, %s138
    %s141 = sphi 0, %s140
    %s155 = sphi 0, %s141
    %s159 = sphi 0, %s159
    %s161 = sphi 0, %s159
    %s162 = sphi 0, %s161
    %s176 = sphi 0, %s162
    %s180 = sphi 0, %s180
    %s182 = sphi 0, %s180
    %s183 = sphi 0, %s182
    %s197 = sphi 0, %s183
    %s201 = sphi 0, %s201
    %s203 = sphi 0, %s201
    %s204 = sphi 0, %s203
    %s218 = sphi 0, %s204
    %s224 = sphi 0, %s226
    %s227 = sphi 0, %s224
    %s228 = sphi 0, %s227
    %s244 = sphi 0, %s228
    %s250 = sphi 0, %s252
    %s253 = sphi 0, %s250
    %s254 = sphi 0, %s253
    %s270 = sphi 0, %s254
    %s276 = sphi 0, %s278
    %s279 = sphi 0, %s276
    %s280 = sphi 0, %s279
    %s296 = sphi 0, %s280
    %s302 = sphi 0, %s304
    %s305 = sphi 0, %s302
    %s306 = sphi 0, %s305
    %s322 = sphi 0, %s306
    %s328 = sphi 0, %s330
    %s331 = sphi 0, %s328
    %s332 = sphi 0, %s331
    %s348 = sphi 0, %s332
  $region4: #{tpu_custom_call.1} parent=0 // loop_header_branch
    %23 = sbr.rel (%p21) target = $region8
  $region5: #{tpu_custom_call.1} parent=0 // loop_body
    %s25 = ssub.s32 %s20, 1
    %s26 = ssub.s32 %s20, 2
    %s27 = sadd.s32 %s20, 1
    %s28 = ssub.s32 %s20, %s27
    %p29 = scmp.eq.s32.totalorder %s28, 0
    %s31 = sadd.s32 %s30, 1
    %s32 = scalar_select %p29, %s30, %s31
    %p35 = pneg %p29
    %p36 = scmp.eq.s32.totalorder %s20, 4
    %p37 = por %p35, %p36
    %p38 = scmp.ne.s32.totalorder %s30, %s33
    %p39 = scmp.eq.s32.totalorder %s20, 0
    %p40 = por %p38, %p39
    %p41 = scmp.ne.s32.totalorder %s30, %s33
    %p42 = scmp.eq.s32.totalorder %s25, 4
    %p43 = por %p41, %p42
    %p44 = scmp.ne.s32.totalorder %s33, %s34
    %p45 = scmp.eq.s32.totalorder %s25, 0
    %p46 = por %p44, %p45
    %p47 = scmp.ne.s32.totalorder %s33, %s34
    %p48 = scmp.eq.s32.totalorder %s26, 4
    %p49 = por %p47, %p48
    %p51 = scmp.ne.s32.totalorder %s34, %s50
    %p52 = scmp.eq.s32.totalorder %s26, 0
    %p53 = por %p51, %p52
    %s55 = sadd.s32 %s54, 1
    %p58 = scmp.eq.s32.totalorder %s20, 4
    %p59 = scmp.ne.s32.totalorder %s54, %s56
    %p60 = scmp.eq.s32.totalorder %s20, 0
    %p61 = por %p59, %p60
    %p62 = scmp.ne.s32.totalorder %s54, %s56
    %p63 = scmp.eq.s32.totalorder %s25, 4
    %p64 = por %p62, %p63
    %p65 = scmp.ne.s32.totalorder %s56, %s57
    %p66 = scmp.eq.s32.totalorder %s25, 0
    %p67 = por %p65, %p66
    %p68 = scmp.ne.s32.totalorder %s56, %s57
    %p69 = scmp.eq.s32.totalorder %s26, 4
    %p70 = por %p68, %p69
    %p72 = scmp.ne.s32.totalorder %s57, %s71
    %p73 = scmp.eq.s32.totalorder %s26, 0
    %p74 = por %p72, %p73
    %s76 = sadd.s32 %s75, 1
    %p79 = scmp.eq.s32.totalorder %s20, 4
    %p80 = scmp.ne.s32.totalorder %s75, %s77
    %p81 = scmp.eq.s32.totalorder %s20, 0
    %p82 = por %p80, %p81
    %p83 = scmp.ne.s32.totalorder %s75, %s77
    %p84 = scmp.eq.s32.totalorder %s25, 4
    %p85 = por %p83, %p84
    %p86 = scmp.ne.s32.totalorder %s77, %s78
    %p87 = scmp.eq.s32.totalorder %s25, 0
    %p88 = por %p86, %p87
    %p89 = scmp.ne.s32.totalorder %s77, %s78
    %p90 = scmp.eq.s32.totalorder %s26, 4
    %p91 = por %p89, %p90
    %p93 = scmp.ne.s32.totalorder %s78, %s92
    %p94 = scmp.eq.s32.totalorder %s26, 0
    %p95 = por %p93, %p94
    %s97 = sadd.s32 %s96, 1
    %p100 = scmp.eq.s32.totalorder %s20, 4
    %p101 = scmp.ne.s32.totalorder %s96, %s98
    %p102 = scmp.eq.s32.totalorder %s20, 0
    %p103 = por %p101, %p102
    %p104 = scmp.ne.s32.totalorder %s96, %s98
    %p105 = scmp.eq.s32.totalorder %s25, 4
    %p106 = por %p104, %p105
    %p107 = scmp.ne.s32.totalorder %s98, %s99
    %p108 = scmp.eq.s32.totalorder %s25, 0
    %p109 = por %p107, %p108
    %p110 = scmp.ne.s32.totalorder %s98, %s99
    %p111 = scmp.eq.s32.totalorder %s26, 4
    %p112 = por %p110, %p111
    %p114 = scmp.ne.s32.totalorder %s99, %s113
    %p115 = scmp.eq.s32.totalorder %s26, 0
    %p116 = por %p114, %p115
    %s118 = sadd.s32 %s117, 1
    %p121 = scmp.eq.s32.totalorder %s20, 4
    %p122 = scmp.ne.s32.totalorder %s117, %s119
    %p123 = scmp.eq.s32.totalorder %s20, 0
    %p124 = por %p122, %p123
    %p125 = scmp.ne.s32.totalorder %s117, %s119
    %p126 = scmp.eq.s32.totalorder %s25, 4
    %p127 = por %p125, %p126
    %p128 = scmp.ne.s32.totalorder %s119, %s120
    %p129 = scmp.eq.s32.totalorder %s25, 0
    %p130 = por %p128, %p129
    %p131 = scmp.ne.s32.totalorder %s119, %s120
    %p132 = scmp.eq.s32.totalorder %s26, 4
    %p133 = por %p131, %p132
    %p135 = scmp.ne.s32.totalorder %s120, %s134
    %p136 = scmp.eq.s32.totalorder %s26, 0
    %p137 = por %p135, %p136
    %s139 = sadd.s32 %s138, 1
    %p142 = scmp.eq.s32.totalorder %s20, 4
    %p143 = scmp.ne.s32.totalorder %s138, %s140
    %p144 = scmp.eq.s32.totalorder %s20, 0
    %p145 = por %p143, %p144
    %p146 = scmp.ne.s32.totalorder %s138, %s140
    %p147 = scmp.eq.s32.totalorder %s25, 4
    %p148 = por %p146, %p147
    %p149 = scmp.ne.s32.totalorder %s140, %s141
    %p150 = scmp.eq.s32.totalorder %s25, 0
    %p151 = por %p149, %p150
    %p152 = scmp.ne.s32.totalorder %s140, %s141
    %p153 = scmp.eq.s32.totalorder %s26, 4
    %p154 = por %p152, %p153
    %p156 = scmp.ne.s32.totalorder %s141, %s155
    %p157 = scmp.eq.s32.totalorder %s26, 0
    %p158 = por %p156, %p157
    %s160 = sadd.s32 %s159, 1
    %p163 = scmp.eq.s32.totalorder %s20, 4
    %p164 = scmp.ne.s32.totalorder %s159, %s161
    %p165 = scmp.eq.s32.totalorder %s20, 0
    %p166 = por %p164, %p165
    %p167 = scmp.ne.s32.totalorder %s159, %s161
    %p168 = scmp.eq.s32.totalorder %s25, 4
    %p169 = por %p167, %p168
    %p170 = scmp.ne.s32.totalorder %s161, %s162
    %p171 = scmp.eq.s32.totalorder %s25, 0
    %p172 = por %p170, %p171
    %p173 = scmp.ne.s32.totalorder %s161, %s162
    %p174 = scmp.eq.s32.totalorder %s26, 4
    %p175 = por %p173, %p174
    %p177 = scmp.ne.s32.totalorder %s162, %s176
    %p178 = scmp.eq.s32.totalorder %s26, 0
    %p179 = por %p177, %p178
    %s181 = sadd.s32 %s180, 1
    %p184 = scmp.eq.s32.totalorder %s20, 4
    %p185 = scmp.ne.s32.totalorder %s180, %s182
    %p186 = scmp.eq.s32.totalorder %s20, 0
    %p187 = por %p185, %p186
    %p188 = scmp.ne.s32.totalorder %s180, %s182
    %p189 = scmp.eq.s32.totalorder %s25, 4
    %p190 = por %p188, %p189
    %p191 = scmp.ne.s32.totalorder %s182, %s183
    %p192 = scmp.eq.s32.totalorder %s25, 0
    %p193 = por %p191, %p192
    %p194 = scmp.ne.s32.totalorder %s182, %s183
    %p195 = scmp.eq.s32.totalorder %s26, 4
    %p196 = por %p194, %p195
    %p198 = scmp.ne.s32.totalorder %s183, %s197
    %p199 = scmp.eq.s32.totalorder %s26, 0
    %p200 = por %p198, %p199
    %s202 = sadd.s32 %s201, 1
    %p205 = scmp.eq.s32.totalorder %s20, 4
    %p206 = scmp.ne.s32.totalorder %s201, %s203
    %p207 = scmp.eq.s32.totalorder %s20, 0
    %p208 = por %p206, %p207
    %p209 = scmp.ne.s32.totalorder %s201, %s203
    %p210 = scmp.eq.s32.totalorder %s25, 4
    %p211 = por %p209, %p210
    %p212 = scmp.ne.s32.totalorder %s203, %s204
    %p213 = scmp.eq.s32.totalorder %s25, 0
    %p214 = por %p212, %p213
    %p215 = scmp.ne.s32.totalorder %s203, %s204
    %p216 = scmp.eq.s32.totalorder %s26, 4
    %p217 = por %p215, %p216
    %p219 = scmp.ne.s32.totalorder %s204, %s218
    %p220 = scmp.eq.s32.totalorder %s26, 0
    %p221 = por %p219, %p220
    %s222 = ssub.s32 %s20, %s27
    %p223 = scmp.eq.s32.totalorder %s222, 0
    %s225 = sadd.s32 %s224, 1
    %s226 = scalar_select %p223, %s224, %s225
    %p229 = pneg %p223
    %p230 = scmp.eq.s32.totalorder %s20, 4
    %p231 = por %p229, %p230
    %p232 = scmp.ne.s32.totalorder %s224, %s227
    %p233 = scmp.eq.s32.totalorder %s20, 0
    %p234 = por %p232, %p233
    %p235 = scmp.ne.s32.totalorder %s224, %s227
    %p236 = scmp.eq.s32.totalorder %s25, 4
    %p237 = por %p235, %p236
    %p238 = scmp.ne.s32.totalorder %s227, %s228
    %p239 = scmp.eq.s32.totalorder %s25, 0
    %p240 = por %p238, %p239
    %p241 = scmp.ne.s32.totalorder %s227, %s228
    %p242 = scmp.eq.s32.totalorder %s26, 4
    %p243 = por %p241, %p242
    %p245 = scmp.ne.s32.totalorder %s228, %s244
    %p246 = scmp.eq.s32.totalorder %s26, 0
    %p247 = por %p245, %p246
    %s248 = ssub.s32 %s20, %s27
    %p249 = scmp.eq.s32.totalorder %s248, 0
    %s251 = sadd.s32 %s250, 1
    %s252 = scalar_select %p249, %s250, %s251
    %p255 = pneg %p249
    %p256 = scmp.eq.s32.totalorder %s20, 4
    %p257 = por %p255, %p256
    %p258 = scmp.ne.s32.totalorder %s250, %s253
    %p259 = scmp.eq.s32.totalorder %s20, 0
    %p260 = por %p258, %p259
    %p261 = scmp.ne.s32.totalorder %s250, %s253
    %p262 = scmp.eq.s32.totalorder %s25, 4
    %p263 = por %p261, %p262
    %p264 = scmp.ne.s32.totalorder %s253, %s254
    %p265 = scmp.eq.s32.totalorder %s25, 0
    %p266 = por %p264, %p265
    %p267 = scmp.ne.s32.totalorder %s253, %s254
    %p268 = scmp.eq.s32.totalorder %s26, 4
    %p269 = por %p267, %p268
    %p271 = scmp.ne.s32.totalorder %s254, %s270
    %p272 = scmp.eq.s32.totalorder %s26, 0
    %p273 = por %p271, %p272
    %s274 = ssub.s32 %s20, %s27
    %p275 = scmp.eq.s32.totalorder %s274, 0
    %s277 = sadd.s32 %s276, 1
    %s278 = scalar_select %p275, %s276, %s277
    %p281 = pneg %p275
    %p282 = scmp.eq.s32.totalorder %s20, 4
    %p283 = por %p281, %p282
    %p284 = scmp.ne.s32.totalorder %s276, %s279
    %p285 = scmp.eq.s32.totalorder %s20, 0
    %p286 = por %p284, %p285
    %p287 = scmp.ne.s32.totalorder %s276, %s279
    %p288 = scmp.eq.s32.totalorder %s25, 4
    %p289 = por %p287, %p288
    %p290 = scmp.ne.s32.totalorder %s279, %s280
    %p291 = scmp.eq.s32.totalorder %s25, 0
    %p292 = por %p290, %p291
    %p293 = scmp.ne.s32.totalorder %s279, %s280
    %p294 = scmp.eq.s32.totalorder %s26, 4
    %p295 = por %p293, %p294
    %p297 = scmp.ne.s32.totalorder %s280, %s296
    %p298 = scmp.eq.s32.totalorder %s26, 0
    %p299 = por %p297, %p298
    %s300 = ssub.s32 %s20, %s27
    %p301 = scmp.eq.s32.totalorder %s300, 0
    %s303 = sadd.s32 %s302, 1
    %s304 = scalar_select %p301, %s302, %s303
    %p307 = pneg %p301
    %p308 = scmp.eq.s32.totalorder %s20, 4
    %p309 = por %p307, %p308
    %p310 = scmp.ne.s32.totalorder %s302, %s305
    %p311 = scmp.eq.s32.totalorder %s20, 0
    %p312 = por %p310, %p311
    %p313 = scmp.ne.s32.totalorder %s302, %s305
    %p314 = scmp.eq.s32.totalorder %s25, 4
    %p315 = por %p313, %p314
    %p316 = scmp.ne.s32.totalorder %s305, %s306
    %p317 = scmp.eq.s32.totalorder %s25, 0
    %p318 = por %p316, %p317
    %p319 = scmp.ne.s32.totalorder %s305, %s306
    %p320 = scmp.eq.s32.totalorder %s26, 4
    %p321 = por %p319, %p320
    %p323 = scmp.ne.s32.totalorder %s306, %s322
    %p324 = scmp.eq.s32.totalorder %s26, 0
    %p325 = por %p323, %p324
    %s326 = ssub.s32 %s20, %s27
    %p327 = scmp.eq.s32.totalorder %s326, 0
    %s329 = sadd.s32 %s328, 1
    %s330 = scalar_select %p327, %s328, %s329
    %p333 = pneg %p327
    %p334 = scmp.eq.s32.totalorder %s20, 4
    %p335 = por %p333, %p334
    %p336 = scmp.ne.s32.totalorder %s328, %s331
    %p337 = scmp.eq.s32.totalorder %s20, 0
    %p338 = por %p336, %p337
    %p339 = scmp.ne.s32.totalorder %s328, %s331
    %p340 = scmp.eq.s32.totalorder %s25, 4
    %p341 = por %p339, %p340
    %p342 = scmp.ne.s32.totalorder %s331, %s332
    %p343 = scmp.eq.s32.totalorder %s25, 0
    %p344 = por %p342, %p343
    %p345 = scmp.ne.s32.totalorder %s331, %s332
    %p346 = scmp.eq.s32.totalorder %s26, 4
    %p347 = por %p345, %p346
    %p349 = scmp.ne.s32.totalorder %s332, %s348
    %p350 = scmp.eq.s32.totalorder %s26, 0
    %p351 = por %p349, %p350
    %p352 = scmp.le.s32.totalorder 1, %s20
    %p353 = scmp.lt.s32.totalorder %s20, 6
    %p354 = pnand %p352, %p353
    %p355 = pneg %p354
    // Predicated region
    $region9: #{tpu_custom_call.1} parent=5 // pred_check
      _
    $region10: #{tpu_custom_call.1} parent=5 // pred_check_branch
      %357 = sbr.rel (%p354) target = $region12
    $region11: #{tpu_custom_call.1} parent=5 // pred_region
      %s358 = ssub.s32 %s20, 1
      // Predicated region
      $region13: #{tpu_custom_call.1} parent=11 // pred_check
        %p359 = pneg %p67
      $region14: #{tpu_custom_call.1} parent=11 // pred_check_branch
        %361 = sbr.rel (%p359) target = $region16
      $region15: #{tpu_custom_call.1} parent=11 // pred_region
        _
      $region16: #{tpu_custom_call.1} parent=11 // pred_fallthru
        _
      // Predicated region
      $region17: #{tpu_custom_call.1} parent=11 // pred_check
        %p362 = pneg %p88
      $region18: #{tpu_custom_call.1} parent=11 // pred_check_branch
        %364 = sbr.rel (%p362) target = $region20
      $region19: #{tpu_custom_call.1} parent=11 // pred_region
        _
      $region20: #{tpu_custom_call.1} parent=11 // pred_fallthru
        _
      // Predicated region
      $region21: #{tpu_custom_call.1} parent=11 // pred_check
        %p365 = pneg %p109
      $region22: #{tpu_custom_call.1} parent=11 // pred_check_branch
        %367 = sbr.rel (%p365) target = $region24
      $region23: #{tpu_custom_call.1} parent=11 // pred_region
        _
      $region24: #{tpu_custom_call.1} parent=11 // pred_fallthru
        _
      // Predicated region
      $region25: #{tpu_custom_call.1} parent=11 // pred_check
        %p368 = pneg %p130
      $region26: #{tpu_custom_call.1} parent=11 // pred_check_branch
        %370 = sbr.rel (%p368) target = $region28
      $region27: #{tpu_custom_call.1} parent=11 // pred_region
        _
      $region28: #{tpu_custom_call.1} parent=11 // pred_fallthru
        _
      // Predicated region
      $region29: #{tpu_custom_call.1} parent=11 // pred_check
        %p371 = pneg %p151
      $region30: #{tpu_custom_call.1} parent=11 // pred_check_branch
        %373 = sbr.rel (%p371) target = $region32
      $region31: #{tpu_custom_call.1} parent=11 // pred_region
        _
      $region32: #{tpu_custom_call.1} parent=11 // pred_fallthru
        _
      // Predicated region
      $region33: #{tpu_custom_call.1} parent=11 // pred_check
        %p374 = pneg %p172
      $region34: #{tpu_custom_call.1} parent=11 // pred_check_branch
        %376 = sbr.rel (%p374) target = $region36
      $region35: #{tpu_custom_call.1} parent=11 // pred_region
        _
      $region36: #{tpu_custom_call.1} parent=11 // pred_fallthru
        _
      // Predicated region
      $region37: #{tpu_custom_call.1} parent=11 // pred_check
        %p377 = pneg %p193
      $region38: #{tpu_custom_call.1} parent=11 // pred_check_branch
        %379 = sbr.rel (%p377) target = $region40
      $region39: #{tpu_custom_call.1} parent=11 // pred_region
        _
      $region40: #{tpu_custom_call.1} parent=11 // pred_fallthru
        _
      // Predicated region
      $region41: #{tpu_custom_call.1} parent=11 // pred_check
        %p380 = pneg %p214
      $region42: #{tpu_custom_call.1} parent=11 // pred_check_branch
        %382 = sbr.rel (%p380) target = $region44
      $region43: #{tpu_custom_call.1} parent=11 // pred_region
        _
      $region44: #{tpu_custom_call.1} parent=11 // pred_fallthru
        _
    $region12: #{tpu_custom_call.1} parent=5 // pred_fallthru
      _
    %p383 = scmp.lt.s32.totalorder %s20, 5
    // Predicated region
    $region45: #{tpu_custom_call.1} parent=5 // pred_check
      %p384 = pneg %p383
    $region46: #{tpu_custom_call.1} parent=5 // pred_check_branch
      %386 = sbr.rel (%p384) target = $region48
    $region47: #{tpu_custom_call.1} parent=5 // pred_region
      // Predicated region
      $region49: #{tpu_custom_call.1} parent=47 // pred_check
        %p387 = pneg %p40
      $region50: #{tpu_custom_call.1} parent=47 // pred_check_branch
        %389 = sbr.rel (%p387) target = $region52
      $region51: #{tpu_custom_call.1} parent=47 // pred_region
        %s390 = smul.u32 8, %s20
        %p391 = scmp.lt.s32.totalorder %s390, 39
        %s392 = scalar_select %p391, %s390, 39
        %s393 = smul.addr %s392, 2
        %s394 = scalar_lea.vmem %s0, %s393
        %s395 = smul.u32 8, %s20
      $region52: #{tpu_custom_call.1} parent=47 // pred_fallthru
        _
    $region48: #{tpu_custom_call.1} parent=5 // pred_fallthru
      _
    %p396 = scmp.le.s32.totalorder 1, %s20
    %p397 = scmp.lt.s32.totalorder %s20, 6
    %p398 = pnand %p396, %p397
    %p399 = pneg %p398
    // Predicated region
    $region53: #{tpu_custom_call.1} parent=5 // pred_check
      _
    $region54: #{tpu_custom_call.1} parent=5 // pred_check_branch
      %401 = sbr.rel (%p398) target = $region56
    $region55: #{tpu_custom_call.1} parent=5 // pred_region
      %s402 = ssub.s32 %s20, 1
      %s403 = smul.u32 8, %s25
      %p404 = scmp.lt.s32.totalorder %s403, 39
      %s405 = scalar_select %p404, %s403, 39
      %s406 = smul.addr %s405, 2
      %s407 = scalar_lea.vmem %s0, %s406
      %p408 = pneg %p46
      %p409 = pneg %p43
      %p410 = pneg %p67
      %p411 = pneg %p64
      %p412 = pneg %p88
      %p413 = pneg %p85
      %p414 = pneg %p109
      %p415 = pneg %p106
      %p416 = pneg %p130
      %p417 = pneg %p127
      %p418 = pneg %p151
      %p419 = pneg %p148
      %p420 = pneg %p172
      %p421 = pneg %p169
      %p422 = pneg %p193
      %p423 = pneg %p190
      %p424 = pneg %p214
      %p425 = pneg %p211
      %p426 = pneg %p240
      %p427 = pneg %p237
      %s428 = smul.u32 2, %s25
      %p429 = scmp.lt.s32.totalorder %s428, 9
      %s430 = scalar_select %p429, %s428, 9
      %s431 = smul.addr %s430, 8
      %s432 = scalar_lea.vmem %s9, %s431
      %p433 = pneg %p266
      %p434 = pneg %p263
      %s435 = smul.u32 2, %s25
      %p436 = scmp.lt.s32.totalorder %s435, 9
      %s437 = scalar_select %p436, %s435, 9
      %s438 = smul.addr %s437, 8
      %s439 = scalar_lea.vmem %s10, %s438
      %p440 = pneg %p292
      %p441 = pneg %p289
      %s442 = smul.u32 2, %s25
      %p443 = scmp.lt.s32.totalorder %s442, 9
      %s444 = scalar_select %p443, %s442, 9
      %s445 = smul.addr %s444, 8
      %s446 = scalar_lea.vmem %s11, %s445
      %p447 = pneg %p318
      %p448 = pneg %p315
      %s449 = smul.u32 2, %s25
      %p450 = scmp.lt.s32.totalorder %s449, 9
      %s451 = scalar_select %p450, %s449, 9
      %s452 = smul.addr %s451, 8
      %s453 = scalar_lea.vmem %s12, %s452
      %p454 = pneg %p344
      %p455 = pneg %p341
      %s456 = smul.u32 2, %s25
      %p457 = scmp.lt.s32.totalorder %s456, 9
      %s458 = scalar_select %p457, %s456, 9
      %s459 = smul.addr %s458, 8
      %s460 = scalar_lea.vmem %s13, %s459
      %s461 = smul.u32 8, %s25
      %p462 = scmp.lt.s32.totalorder %s461, 39
      %s463 = scalar_select %p462, %s461, 39
      %s464 = smul.addr %s463, 2
      %s465 = scalar_lea.vmem %s0, %s464
      %s466 = smul.u32 8, %s25
      %s467 = smul.u32 2, %s25
      %p468 = scmp.lt.s32.totalorder %s467, 9
      %s469 = scalar_select %p468, %s467, 9
      %s470 = smul.addr %s469, 8
      %s471 = scalar_lea.vmem %s9, %s470
      %s472 = smul.u32 2, %s25
      %s473 = smul.u32 2, %s25
      %p474 = scmp.lt.s32.totalorder %s473, 9
      %s475 = scalar_select %p474, %s473, 9
      %s476 = smul.addr %s475, 8
      %s477 = scalar_lea.vmem %s10, %s476
      %s478 = smul.u32 2, %s25
      %s479 = smul.u32 2, %s25
      %p480 = scmp.lt.s32.totalorder %s479, 9
      %s481 = scalar_select %p480, %s479, 9
      %s482 = smul.addr %s481, 8
      %s483 = scalar_lea.vmem %s11, %s482
      %s484 = smul.u32 2, %s25
      %s485 = smul.u32 2, %s25
      %p486 = scmp.lt.s32.totalorder %s485, 9
      %s487 = scalar_select %p486, %s485, 9
      %s488 = smul.addr %s487, 8
      %s489 = scalar_lea.vmem %s12, %s488
      %s490 = smul.u32 2, %s25
      %s491 = smul.u32 2, %s25
      %p492 = scmp.lt.s32.totalorder %s491, 9
      %s493 = scalar_select %p492, %s491, 9
      %s494 = smul.addr %s493, 8
      %s495 = scalar_lea.vmem %s13, %s494
      %s496 = smul.u32 2, %s25
      %p497 = scmp.eq.s32.totalorder %s25, 0
      // Predicated region
      $region57: #{tpu_custom_call.1} parent=55 // pred_check
        %p498 = pneg %p497
      $region58: #{tpu_custom_call.1} parent=55 // pred_check_branch
        %500 = sbr.rel (%p498) target = $region60
      $region59: #{tpu_custom_call.1} parent=55 // pred_region
        %vm501 = vcmask 254976
        %502 = vst.msk [vmem:[#allocation2] sm:$0x3] %vm501, 0.0
        %503 = vst.msk [vmem:[#allocation3] sm:$0x3] %vm501, 0.0
        %504 = vst.msk [vmem:[#allocation4] sm:$0x3] %vm501, 0.0
        %vm505 = vcmask 74752
        %506 = vst.msk [vmem:[#allocation5] sm:$0x3] %vm505, 0.0
      $region60: #{tpu_custom_call.1} parent=55 // pred_fallthru
        _
      %v507 = vld [vmem:[%s465] sm:$0x3]
      %v508 = vld [vmem:[%s465 + $0x2] sm:$0x3]
      %v509 = vld [vmem:[%s465 + $0x4] sm:$0x3]
      %v510 = vld [vmem:[%s465 + $0x6] sm:$0x3]
      %v511 = vld [vmem:[%s465 + $0x8] sm:$0x3]
      %v512 = vld [vmem:[%s465 + $0xa] sm:$0x3]
      %v513 = vld [vmem:[%s465 + $0xc] sm:$0x3]
      %v514 = vld [vmem:[%s465 + $0xe] sm:$0x3]
      %v515 = vrcp.pop 15.0
      %v516 = vmul.f32 %v507, %v515
      %v517 = vmul.f32 %v508, %v515
      %v518 = vmul.f32 %v509, %v515
      %v519 = vmul.f32 %v510, %v515
      %v520 = vmul.f32 %v511, %v515
      %v521 = vmul.f32 %v512, %v515
      %v522 = vmul.f32 %v513, %v515
      %v523 = vmul.f32 %v514, %v515
      %v524 = vld [vmem:[%s1] sm:$0xff]
      %v525 = vld [vmem:[%s1 + $0x8] sm:$0xff]
      %v526 = vld [vmem:[%s2] sm:$0xff]
      %v527 = vld [vmem:[%s2 + $0x8] sm:$0xff]
      %v528 = vld [vmem:[%s2 + $0x10] sm:$0xff]
      %v529 = vld [vmem:[%s2 + $0x18] sm:$0xff]
      %v530 = vld [vmem:[%s3] sm:$0xff]
      %v531 = vld [vmem:[%s3 + $0x8] sm:$0xff]
      %v532 = vld [vmem:[%s3 + $0x10] sm:$0xff]
      %v533 = vld [vmem:[%s3 + $0x18] sm:$0xff]
      %v534 = vld [vmem:[%s4] sm:$0xff]
      %v535 = vld [vmem:[%s4 + $0x8] sm:$0xff]
      %v536 = vld [vmem:[%s4 + $0x10] sm:$0xff]
      %v537 = vld [vmem:[%s4 + $0x18] sm:$0xff]
      %v538 = vld [vmem:[%s5] sm:$0x1]
      %v540 = vlaneseq
      %v541 = vshrl.u32 %v540, 7
      %v542 = vsub.s32 0, %v541
      %v543 = vrot.slane %v538, %v542
      %v545 = vld [vmem:[%s6] sm:$0x1]
      %v547 = vlaneseq
      %v548 = vshrl.u32 %v547, 7
      %v549 = vsub.s32 0, %v548
      %v550 = vrot.slane %v545, %v549
      %v552 = vld [vmem:[%s7] sm:$0x1]
      %v554 = vlaneseq
      %v555 = vshrl.u32 %v554, 7
      %v556 = vsub.s32 0, %v555
      %v557 = vrot.slane %v552, %v556
      %v559 = vld [vmem:[%s8] sm:$0x1]
      %v561 = vlaneseq
      %v562 = vshrl.u32 %v561, 7
      %v563 = vsub.s32 0, %v562
      %v564 = vrot.slane %v559, %v563
      %v566 = vld [vmem:[#allocation2] sm:$0x3]
      %v567 = vld [vmem:[#allocation3] sm:$0x3]
      %v568 = vld [vmem:[#allocation4] sm:$0x3]
      %v569 = vld [vmem:[#allocation5] sm:$0x3]
      %vm570 = vcmask 130048
      %v572 = vsel %vm570, %v516, 0
      %574 = vmatprep.subr.mxu0 0.0
      %575 = vmatpush1.msra.mxu0 %v524
      %576 = vmatprep.subr.mxu0 0.0
      %577 = vmatpush1.msra.mxu0 %v525
      %578 = vmatprep.subr.mxu0 0.0
      %579 = vmatpush1.msra.mxu0 0.0
      %580 = vmatprep.subr.mxu0 0.0
      %581 = vmatpush1.msra.mxu0 0.0
      %582 = vmatprep.subr.mxu0 0.0
      %583 = vmatpush1.msra.mxu0 0.0
      %584 = vmatprep.subr.mxu0 0.0
      %585 = vmatpush1.msra.mxu0 0.0
      %586 = vmatprep.subr.mxu0 0.0
      %587 = vmatpush1.msra.mxu0 0.0
      %588 = vmatprep.subr.mxu0 0.0
      %589 = vmatpush1.msra.mxu0 0.0
      %590 = vmatprep.subr.mxu0 0.0
      %591 = vmatpush1.msra.mxu0 0.0
      %592 = vmatprep.subr.mxu0 0.0
      %593 = vmatpush1.msra.mxu0 0.0
      %594 = vmatprep.subr.mxu0 0.0
      %595 = vmatpush1.msra.mxu0 0.0
      %596 = vmatprep.subr.mxu0 0.0
      %597 = vmatpush1.msra.mxu0 0.0
      %598 = vmatprep.subr.mxu0 0.0
      %599 = vmatpush1.msra.mxu0 0.0
      %600 = vmatprep.subr.mxu0 0.0
      %601 = vmatpush1.msra.mxu0 0.0
      %602 = vmatprep.subr.mxu0 0.0
      %603 = vmatpush1.msra.mxu0 0.0
      %604 = vmatprep.subr.mxu0 0.0
      %605 = vmatpush1.msra.mxu0 0.0
      %606 = vmatprep.subr.mxu0 0.0
      %607 = vmatpush1.msra.mxu0 0.0
      %608 = vmatprep.subr.mxu0 0.0
      %609 = vmatpush1.msra.mxu0 0.0
      %610 = vmatprep.subr.mxu0 0.0
      %611 = vmatpush1.msra.mxu0 0.0
      %612 = vmatprep.subr.mxu0 0.0
      %613 = vmatpush1.msra.mxu0 0.0
      %614 = vmatprep.subr.mxu0 0.0
      %615 = vmatpush1.msra.mxu0 0.0
      %616 = vmatprep.subr.mxu0 0.0
      %617 = vmatpush1.msra.mxu0 0.0
      %618 = vmatprep.subr.mxu0 0.0
      %619 = vmatpush1.msra.mxu0 0.0
      %620 = vmatprep.subr.mxu0 0.0
      %621 = vmatpush1.msra.mxu0 0.0
      %622 = vmatprep.subr.mxu0 0.0
      %623 = vmatpush1.msra.mxu0 0.0
      %624 = vmatprep.subr.mxu0 0.0
      %625 = vmatpush1.msra.mxu0 0.0
      %626 = vmatprep.subr.mxu0 0.0
      %627 = vmatpush1.msra.mxu0 0.0
      %628 = vmatprep.subr.mxu0 0.0
      %629 = vmatpush1.msra.mxu0 0.0
      %630 = vmatprep.subr.mxu0 0.0
      %631 = vmatpush1.msra.mxu0 0.0
      %632 = vmatprep.subr.mxu0 0.0
      %633 = vmatpush1.msra.mxu0 0.0
      %634 = vmatprep.subr.mxu0 0.0
      %635 = vmatpush1.msra.mxu0 0.0
      %636 = vmatprep.subr.mxu0 0.0
      %637 = vmatpush1.msra.mxu0 0.0
      %638 = vmatprep.mubr.f32.mxu0 0.0
      %639 = vmatmul.mubr.f32.gmra.mrb[0].mxu0 %v572
      %v640 = vpop.f32.mrb[0].mxu0
      %v641 = vadd.f32 0.0, %v640
      %v642 = vpop.f32.mrb[0].mxu0
      %643 = vdwg.mxu0
      %v644 = vmul.f32 %v543, %v566
      %v645 = vadd.f32 %v644, %v641
      %vm646 = vcmp.gt.f32.partialorder %v566, 1.0
      %v647 = vsub.f32 %v645, 1.0
      %v648 = vsel %vm646, %v647, %v645
      %vm649 = vcmp.gt.f32.partialorder %v648, 1.0
      %v650 = vsel %vm649, 1.0, 0.0
      %vm651 = vcmask 261120
      %v653 = vsel %vm651, %v650, 0
      %655 = vmatprep.subr.mxu0 0.0
      %656 = vmatpush1.msra.mxu0 %v526
      %657 = vmatprep.subr.mxu0 0.0
      %658 = vmatpush1.msra.mxu0 %v527
      %659 = vmatprep.subr.mxu0 0.0
      %660 = vmatpush1.msra.mxu0 %v528
      %661 = vmatprep.subr.mxu0 0.0
      %662 = vmatpush1.msra.mxu0 %v529
      %663 = vmatprep.subr.mxu0 0.0
      %664 = vmatpush1.msra.mxu0 0.0
      %665 = vmatprep.subr.mxu0 0.0
      %666 = vmatpush1.msra.mxu0 0.0
      %667 = vmatprep.subr.mxu0 0.0
      %668 = vmatpush1.msra.mxu0 0.0
      %669 = vmatprep.subr.mxu0 0.0
      %670 = vmatpush1.msra.mxu0 0.0
      %671 = vmatprep.subr.mxu0 0.0
      %672 = vmatpush1.msra.mxu0 0.0
      %673 = vmatprep.subr.mxu0 0.0
      %674 = vmatpush1.msra.mxu0 0.0
      %675 = vmatprep.subr.mxu0 0.0
      %676 = vmatpush1.msra.mxu0 0.0
      %677 = vmatprep.subr.mxu0 0.0
      %678 = vmatpush1.msra.mxu0 0.0
      %679 = vmatprep.subr.mxu0 0.0
      %680 = vmatpush1.msra.mxu0 0.0
      %681 = vmatprep.subr.mxu0 0.0
      %682 = vmatpush1.msra.mxu0 0.0
      %683 = vmatprep.subr.mxu0 0.0
      %684 = vmatpush1.msra.mxu0 0.0
      %685 = vmatprep.subr.mxu0 0.0
      %686 = vmatpush1.msra.mxu0 0.0
      %687 = vmatprep.subr.mxu0 0.0
      %688 = vmatpush1.msra.mxu0 0.0
      %689 = vmatprep.subr.mxu0 0.0
      %690 = vmatpush1.msra.mxu0 0.0
      %691 = vmatprep.subr.mxu0 0.0
      %692 = vmatpush1.msra.mxu0 0.0
      %693 = vmatprep.subr.mxu0 0.0
      %694 = vmatpush1.msra.mxu0 0.0
      %695 = vmatprep.subr.mxu0 0.0
      %696 = vmatpush1.msra.mxu0 0.0
      %697 = vmatprep.subr.mxu0 0.0
      %698 = vmatpush1.msra.mxu0 0.0
      %699 = vmatprep.subr.mxu0 0.0
      %700 = vmatpush1.msra.mxu0 0.0
      %701 = vmatprep.subr.mxu0 0.0
      %702 = vmatpush1.msra.mxu0 0.0
      %703 = vmatprep.subr.mxu0 0.0
      %704 = vmatpush1.msra.mxu0 0.0
      %705 = vmatprep.subr.mxu0 0.0
      %706 = vmatpush1.msra.mxu0 0.0
      %707 = vmatprep.subr.mxu0 0.0
      %708 = vmatpush1.msra.mxu0 0.0
      %709 = vmatprep.subr.mxu0 0.0
      %710 = vmatpush1.msra.mxu0 0.0
      %711 = vmatprep.subr.mxu0 0.0
      %712 = vmatpush1.msra.mxu0 0.0
      %713 = vmatprep.subr.mxu0 0.0
      %714 = vmatpush1.msra.mxu0 0.0
      %715 = vmatprep.subr.mxu0 0.0
      %716 = vmatpush1.msra.mxu0 0.0
      %717 = vmatprep.subr.mxu0 0.0
      %718 = vmatpush1.msra.mxu0 0.0
      %719 = vmatprep.mubr.f32.mxu0 0.0
      %720 = vmatmul.mubr.f32.gmra.mrb[0].mxu0 %v653
      %v721 = vpop.f32.mrb[0].mxu0
      %v722 = vadd.f32 0.0, %v721
      %v723 = vpop.f32.mrb[0].mxu0
      %724 = vdwg.mxu0
      %v725 = vmul.f32 %v550, %v567
      %v726 = vadd.f32 %v725, %v722
      %vm727 = vcmp.gt.f32.partialorder %v567, 1.0
      %v728 = vsub.f32 %v726, 1.0
      %v729 = vsel %vm727, %v728, %v726
      %vm730 = vcmp.gt.f32.partialorder %v729, 1.0
      %v731 = vsel %vm730, 1.0, 0.0
      %v733 = vsel %vm651, %v731, 0
      %735 = vmatprep.subr.mxu0 0.0
      %736 = vmatpush1.msra.mxu0 %v530
      %737 = vmatprep.subr.mxu0 0.0
      %738 = vmatpush1.msra.mxu0 %v531
      %739 = vmatprep.subr.mxu0 0.0
      %740 = vmatpush1.msra.mxu0 %v532
      %741 = vmatprep.subr.mxu0 0.0
      %742 = vmatpush1.msra.mxu0 %v533
      %743 = vmatprep.subr.mxu0 0.0
      %744 = vmatpush1.msra.mxu0 0.0
      %745 = vmatprep.subr.mxu0 0.0
      %746 = vmatpush1.msra.mxu0 0.0
      %747 = vmatprep.subr.mxu0 0.0
      %748 = vmatpush1.msra.mxu0 0.0
      %749 = vmatprep.subr.mxu0 0.0
      %750 = vmatpush1.msra.mxu0 0.0
      %751 = vmatprep.subr.mxu0 0.0
      %752 = vmatpush1.msra.mxu0 0.0
      %753 = vmatprep.subr.mxu0 0.0
      %754 = vmatpush1.msra.mxu0 0.0
      %755 = vmatprep.subr.mxu0 0.0
      %756 = vmatpush1.msra.mxu0 0.0
      %757 = vmatprep.subr.mxu0 0.0
      %758 = vmatpush1.msra.mxu0 0.0
      %759 = vmatprep.subr.mxu0 0.0
      %760 = vmatpush1.msra.mxu0 0.0
      %761 = vmatprep.subr.mxu0 0.0
      %762 = vmatpush1.msra.mxu0 0.0
      %763 = vmatprep.subr.mxu0 0.0
      %764 = vmatpush1.msra.mxu0 0.0
      %765 = vmatprep.subr.mxu0 0.0
      %766 = vmatpush1.msra.mxu0 0.0
      %767 = vmatprep.subr.mxu0 0.0
      %768 = vmatpush1.msra.mxu0 0.0
      %769 = vmatprep.subr.mxu0 0.0
      %770 = vmatpush1.msra.mxu0 0.0
      %771 = vmatprep.subr.mxu0 0.0
      %772 = vmatpush1.msra.mxu0 0.0
      %773 = vmatprep.subr.mxu0 0.0
      %774 = vmatpush1.msra.mxu0 0.0
      %775 = vmatprep.subr.mxu0 0.0
      %776 = vmatpush1.msra.mxu0 0.0
      %777 = vmatprep.subr.mxu0 0.0
      %778 = vmatpush1.msra.mxu0 0.0
      %779 = vmatprep.subr.mxu0 0.0
      %780 = vmatpush1.msra.mxu0 0.0
      %781 = vmatprep.subr.mxu0 0.0
      %782 = vmatpush1.msra.mxu0 0.0
      %783 = vmatprep.subr.mxu0 0.0
      %784 = vmatpush1.msra.mxu0 0.0
      %785 = vmatprep.subr.mxu0 0.0
      %786 = vmatpush1.msra.mxu0 0.0
      %787 = vmatprep.subr.mxu0 0.0
      %788 = vmatpush1.msra.mxu0 0.0
      %789 = vmatprep.subr.mxu0 0.0
      %790 = vmatpush1.msra.mxu0 0.0
      %791 = vmatprep.subr.mxu0 0.0
      %792 = vmatpush1.msra.mxu0 0.0
      %793 = vmatprep.subr.mxu0 0.0
      %794 = vmatpush1.msra.mxu0 0.0
      %795 = vmatprep.subr.mxu0 0.0
      %796 = vmatpush1.msra.mxu0 0.0
      %797 = vmatprep.subr.mxu0 0.0
      %798 = vmatpush1.msra.mxu0 0.0
      %799 = vmatprep.mubr.f32.mxu0 0.0
      %800 = vmatmul.mubr.f32.gmra.mrb[0].mxu0 %v733
      %v801 = vpop.f32.mrb[0].mxu0
      %v802 = vadd.f32 0.0, %v801
      %v803 = vpop.f32.mrb[0].mxu0
      %804 = vdwg.mxu0
      %v805 = vmul.f32 %v557, %v568
      %v806 = vadd.f32 %v805, %v802
      %vm807 = vcmp.gt.f32.partialorder %v568, 1.0
      %v808 = vsub.f32 %v806, 1.0
      %v809 = vsel %vm807, %v808, %v806
      %vm810 = vcmp.gt.f32.partialorder %v809, 1.0
      %v811 = vsel %vm810, 1.0, 0.0
      %v813 = vsel %vm651, %v811, 0
      %815 = vmatprep.subr.mxu0 0.0
      %816 = vmatpush1.msra.mxu0 %v534
      %817 = vmatprep.subr.mxu0 0.0
      %818 = vmatpush1.msra.mxu0 %v535
      %819 = vmatprep.subr.mxu0 0.0
      %820 = vmatpush1.msra.mxu0 %v536
      %821 = vmatprep.subr.mxu0 0.0
      %822 = vmatpush1.msra.mxu0 %v537
      %823 = vmatprep.subr.mxu0 0.0
      %824 = vmatpush1.msra.mxu0 0.0
      %825 = vmatprep.subr.mxu0 0.0
      %826 = vmatpush1.msra.mxu0 0.0
      %827 = vmatprep.subr.mxu0 0.0
      %828 = vmatpush1.msra.mxu0 0.0
      %829 = vmatprep.subr.mxu0 0.0
      %830 = vmatpush1.msra.mxu0 0.0
      %831 = vmatprep.subr.mxu0 0.0
      %832 = vmatpush1.msra.mxu0 0.0
      %833 = vmatprep.subr.mxu0 0.0
      %834 = vmatpush1.msra.mxu0 0.0
      %835 = vmatprep.subr.mxu0 0.0
      %836 = vmatpush1.msra.mxu0 0.0
      %837 = vmatprep.subr.mxu0 0.0
      %838 = vmatpush1.msra.mxu0 0.0
      %839 = vmatprep.subr.mxu0 0.0
      %840 = vmatpush1.msra.mxu0 0.0
      %841 = vmatprep.subr.mxu0 0.0
      %842 = vmatpush1.msra.mxu0 0.0
      %843 = vmatprep.subr.mxu0 0.0
      %844 = vmatpush1.msra.mxu0 0.0
      %845 = vmatprep.subr.mxu0 0.0
      %846 = vmatpush1.msra.mxu0 0.0
      %847 = vmatprep.subr.mxu0 0.0
      %848 = vmatpush1.msra.mxu0 0.0
      %849 = vmatprep.subr.mxu0 0.0
      %850 = vmatpush1.msra.mxu0 0.0
      %851 = vmatprep.subr.mxu0 0.0
      %852 = vmatpush1.msra.mxu0 0.0
      %853 = vmatprep.subr.mxu0 0.0
      %854 = vmatpush1.msra.mxu0 0.0
      %855 = vmatprep.subr.mxu0 0.0
      %856 = vmatpush1.msra.mxu0 0.0
      %857 = vmatprep.subr.mxu0 0.0
      %858 = vmatpush1.msra.mxu0 0.0
      %859 = vmatprep.subr.mxu0 0.0
      %860 = vmatpush1.msra.mxu0 0.0
      %861 = vmatprep.subr.mxu0 0.0
      %862 = vmatpush1.msra.mxu0 0.0
      %863 = vmatprep.subr.mxu0 0.0
      %864 = vmatpush1.msra.mxu0 0.0
      %865 = vmatprep.subr.mxu0 0.0
      %866 = vmatpush1.msra.mxu0 0.0
      %867 = vmatprep.subr.mxu0 0.0
      %868 = vmatpush1.msra.mxu0 0.0
      %869 = vmatprep.subr.mxu0 0.0
      %870 = vmatpush1.msra.mxu0 0.0
      %871 = vmatprep.subr.mxu0 0.0
      %872 = vmatpush1.msra.mxu0 0.0
      %873 = vmatprep.subr.mxu0 0.0
      %874 = vmatpush1.msra.mxu0 0.0
      %875 = vmatprep.subr.mxu0 0.0
      %876 = vmatpush1.msra.mxu0 0.0
      %877 = vmatprep.subr.mxu0 0.0
      %878 = vmatpush1.msra.mxu0 0.0
      %879 = vmatprep.mubr.f32.mxu0 0.0
      %880 = vmatmul.mubr.f32.gmra.mrb[0].mxu0 %v813
      %v881 = vpop.f32.mrb[0].mxu0
      %v882 = vadd.f32 0.0, %v881
      %v883 = vpop.f32.mrb[0].mxu0
      %884 = vdwg.mxu0
      %v885 = vmul.f32 %v564, %v569
      %v886 = vadd.f32 %v885, %v882
      %vm887 = vcmp.gt.f32.partialorder %v569, 1.0
      %v888 = vsub.f32 %v886, 1.0
      %v889 = vsel %vm887, %v888, %v886
      %vm890 = vcmp.gt.f32.partialorder %v889, 1.0
      %v891 = vsel %vm890, 1.0, 0.0
      %vm892 = vcmask 254976
      %893 = vst.msk [vmem:[%s471] sm:$0x3] %vm892, %v650
      %894 = vst.msk [vmem:[%s477] sm:$0x3] %vm892, %v731
      %895 = vst.msk [vmem:[%s483] sm:$0x3] %vm892, %v811
      %vm896 = vcmask 74752
      %897 = vst.msk [vmem:[%s489] sm:$0x3] %vm896, %v891
      %898 = vst.msk [vmem:[%s495] sm:$0x3] %vm896, %v889
      %v900 = vsel %vm570, %v517, 0
      %902 = vmatprep.subr.mxu0 0.0
      %903 = vmatpush1.msra.mxu0 %v524
      %904 = vmatprep.subr.mxu0 0.0
      %905 = vmatpush1.msra.mxu0 %v525
      %906 = vmatprep.subr.mxu0 0.0
      %907 = vmatpush1.msra.mxu0 0.0
      %908 = vmatprep.subr.mxu0 0.0
      %909 = vmatpush1.msra.mxu0 0.0
      %910 = vmatprep.subr.mxu0 0.0
      %911 = vmatpush1.msra.mxu0 0.0
      %912 = vmatprep.subr.mxu0 0.0
      %913 = vmatpush1.msra.mxu0 0.0
      %914 = vmatprep.subr.mxu0 0.0
      %915 = vmatpush1.msra.mxu0 0.0
      %916 = vmatprep.subr.mxu0 0.0
      %917 = vmatpush1.msra.mxu0 0.0
      %918 = vmatprep.subr.mxu0 0.0
      %919 = vmatpush1.msra.mxu0 0.0
      %920 = vmatprep.subr.mxu0 0.0
      %921 = vmatpush1.msra.mxu0 0.0
      %922 = vmatprep.subr.mxu0 0.0
      %923 = vmatpush1.msra.mxu0 0.0
      %924 = vmatprep.subr.mxu0 0.0
      %925 = vmatpush1.msra.mxu0 0.0
      %926 = vmatprep.subr.mxu0 0.0
      %927 = vmatpush1.msra.mxu0 0.0
      %928 = vmatprep.subr.mxu0 0.0
      %929 = vmatpush1.msra.mxu0 0.0
      %930 = vmatprep.subr.mxu0 0.0
      %931 = vmatpush1.msra.mxu0 0.0
      %932 = vmatprep.subr.mxu0 0.0
      %933 = vmatpush1.msra.mxu0 0.0
      %934 = vmatprep.subr.mxu0 0.0
      %935 = vmatpush1.msra.mxu0 0.0
      %936 = vmatprep.subr.mxu0 0.0
      %937 = vmatpush1.msra.mxu0 0.0
      %938 = vmatprep.subr.mxu0 0.0
      %939 = vmatpush1.msra.mxu0 0.0
      %940 = vmatprep.subr.mxu0 0.0
      %941 = vmatpush1.msra.mxu0 0.0
      %942 = vmatprep.subr.mxu0 0.0
      %943 = vmatpush1.msra.mxu0 0.0
      %944 = vmatprep.subr.mxu0 0.0
      %945 = vmatpush1.msra.mxu0 0.0
      %946 = vmatprep.subr.mxu0 0.0
      %947 = vmatpush1.msra.mxu0 0.0
      %948 = vmatprep.subr.mxu0 0.0
      %949 = vmatpush1.msra.mxu0 0.0
      %950 = vmatprep.subr.mxu0 0.0
      %951 = vmatpush1.msra.mxu0 0.0
      %952 = vmatprep.subr.mxu0 0.0
      %953 = vmatpush1.msra.mxu0 0.0
      %954 = vmatprep.subr.mxu0 0.0
      %955 = vmatpush1.msra.mxu0 0.0
      %956 = vmatprep.subr.mxu0 0.0
      %957 = vmatpush1.msra.mxu0 0.0
      %958 = vmatprep.subr.mxu0 0.0
      %959 = vmatpush1.msra.mxu0 0.0
      %960 = vmatprep.subr.mxu0 0.0
      %961 = vmatpush1.msra.mxu0 0.0
      %962 = vmatprep.subr.mxu0 0.0
      %963 = vmatpush1.msra.mxu0 0.0
      %964 = vmatprep.subr.mxu0 0.0
      %965 = vmatpush1.msra.mxu0 0.0
      %966 = vmatprep.mubr.f32.mxu0 0.0
      %967 = vmatmul.mubr.f32.gmra.mrb[0].mxu0 %v900
      %v968 = vpop.f32.mrb[0].mxu0
      %v969 = vadd.f32 0.0, %v968
      %v970 = vpop.f32.mrb[0].mxu0
      %971 = vdwg.mxu0
      %v972 = vmul.f32 %v543, %v648
      %v973 = vadd.f32 %v972, %v969
      %v974 = vsub.f32 %v973, 1.0
      %v975 = vsel %vm649, %v974, %v973
      %vm976 = vcmp.gt.f32.partialorder %v975, 1.0
      %v977 = vsel %vm976, 1.0, 0.0
      %v979 = vsel %vm651, %v977, 0
      %981 = vmatprep.subr.mxu0 0.0
      %982 = vmatpush1.msra.mxu0 %v526
      %983 = vmatprep.subr.mxu0 0.0
      %984 = vmatpush1.msra.mxu0 %v527
      %985 = vmatprep.subr.mxu0 0.0
      %986 = vmatpush1.msra.mxu0 %v528
      %987 = vmatprep.subr.mxu0 0.0
      %988 = vmatpush1.msra.mxu0 %v529
      %989 = vmatprep.subr.mxu0 0.0
      %990 = vmatpush1.msra.mxu0 0.0
      %991 = vmatprep.subr.mxu0 0.0
      %992 = vmatpush1.msra.mxu0 0.0
      %993 = vmatprep.subr.mxu0 0.0
      %994 = vmatpush1.msra.mxu0 0.0
      %995 = vmatprep.subr.mxu0 0.0
      %996 = vmatpush1.msra.mxu0 0.0
      %997 = vmatprep.subr.mxu0 0.0
      %998 = vmatpush1.msra.mxu0 0.0
      %999 = vmatprep.subr.mxu0 0.0
      %1000 = vmatpush1.msra.mxu0 0.0
      %1001 = vmatprep.subr.mxu0 0.0
      %1002 = vmatpush1.msra.mxu0 0.0
      %1003 = vmatprep.subr.mxu0 0.0
      %1004 = vmatpush1.msra.mxu0 0.0
      %1005 = vmatprep.subr.mxu0 0.0
      %1006 = vmatpush1.msra.mxu0 0.0
      %1007 = vmatprep.subr.mxu0 0.0
      %1008 = vmatpush1.msra.mxu0 0.0
      %1009 = vmatprep.subr.mxu0 0.0
      %1010 = vmatpush1.msra.mxu0 0.0
      %1011 = vmatprep.subr.mxu0 0.0
      %1012 = vmatpush1.msra.mxu0 0.0
      %1013 = vmatprep.subr.mxu0 0.0
      %1014 = vmatpush1.msra.mxu0 0.0
      %1015 = vmatprep.subr.mxu0 0.0
      %1016 = vmatpush1.msra.mxu0 0.0
      %1017 = vmatprep.subr.mxu0 0.0
      %1018 = vmatpush1.msra.mxu0 0.0
      %1019 = vmatprep.subr.mxu0 0.0
      %1020 = vmatpush1.msra.mxu0 0.0
      %1021 = vmatprep.subr.mxu0 0.0
      %1022 = vmatpush1.msra.mxu0 0.0
      %1023 = vmatprep.subr.mxu0 0.0
      %1024 = vmatpush1.msra.mxu0 0.0
      %1025 = vmatprep.subr.mxu0 0.0
      %1026 = vmatpush1.msra.mxu0 0.0
      %1027 = vmatprep.subr.mxu0 0.0
      %1028 = vmatpush1.msra.mxu0 0.0
      %1029 = vmatprep.subr.mxu0 0.0
      %1030 = vmatpush1.msra.mxu0 0.0
      %1031 = vmatprep.subr.mxu0 0.0
      %1032 = vmatpush1.msra.mxu0 0.0
      %1033 = vmatprep.subr.mxu0 0.0
      %1034 = vmatpush1.msra.mxu0 0.0
      %1035 = vmatprep.subr.mxu0 0.0
      %1036 = vmatpush1.msra.mxu0 0.0
      %1037 = vmatprep.subr.mxu0 0.0
      %1038 = vmatpush1.msra.mxu0 0.0
      %1039 = vmatprep.subr.mxu0 0.0
      %1040 = vmatpush1.msra.mxu0 0.0
      %1041 = vmatprep.subr.mxu0 0.0
      %1042 = vmatpush1.msra.mxu0 0.0
      %1043 = vmatprep.subr.mxu0 0.0
      %1044 = vmatpush1.msra.mxu0 0.0
      %1045 = vmatprep.mubr.f32.mxu0 0.0
      %1046 = vmatmul.mubr.f32.gmra.mrb[0].mxu0 %v979
      %v1047 = vpop.f32.mrb[0].mxu0
      %v1048 = vadd.f32 0.0, %v1047
      %v1049 = vpop.f32.mrb[0].mxu0
      %1050 = vdwg.mxu0
      %v1051 = vmul.f32 %v550, %v729
      %v1052 = vadd.f32 %v1051, %v1048
      %v1053 = vsub.f32 %v1052, 1.0
      %v1054 = vsel %vm730, %v1053, %v1052
      %vm1055 = vcmp.gt.f32.partialorder %v1054, 1.0
      %v1056 = vsel %vm1055, 1.0, 0.0
      %v1058 = vsel %vm651, %v1056, 0
      %1060 = vmatprep.subr.mxu0 0.0
      %1061 = vmatpush1.msra.mxu0 %v530
      %1062 = vmatprep.subr.mxu0 0.0
      %1063 = vmatpush1.msra.mxu0 %v531
      %1064 = vmatprep.subr.mxu0 0.0
      %1065 = vmatpush1.msra.mxu0 %v532
      %1066 = vmatprep.subr.mxu0 0.0
      %1067 = vmatpush1.msra.mxu0 %v533
      %1068 = vmatprep.subr.mxu0 0.0
      %1069 = vmatpush1.msra.mxu0 0.0
      %1070 = vmatprep.subr.mxu0 0.0
      %1071 = vmatpush1.msra.mxu0 0.0
      %1072 = vmatprep.subr.mxu0 0.0
      %1073 = vmatpush1.msra.mxu0 0.0
      %1074 = vmatprep.subr.mxu0 0.0
      %1075 = vmatpush1.msra.mxu0 0.0
      %1076 = vmatprep.subr.mxu0 0.0
      %1077 = vmatpush1.msra.mxu0 0.0
      %1078 = vmatprep.subr.mxu0 0.0
      %1079 = vmatpush1.msra.mxu0 0.0
      %1080 = vmatprep.subr.mxu0 0.0
      %1081 = vmatpush1.msra.mxu0 0.0
      %1082 = vmatprep.subr.mxu0 0.0
      %1083 = vmatpush1.msra.mxu0 0.0
      %1084 = vmatprep.subr.mxu0 0.0
      %1085 = vmatpush1.msra.mxu0 0.0
      %1086 = vmatprep.subr.mxu0 0.0
      %1087 = vmatpush1.msra.mxu0 0.0
      %1088 = vmatprep.subr.mxu0 0.0
      %1089 = vmatpush1.msra.mxu0 0.0
      %1090 = vmatprep.subr.mxu0 0.0
      %1091 = vmatpush1.msra.mxu0 0.0
      %1092 = vmatprep.subr.mxu0 0.0
      %1093 = vmatpush1.msra.mxu0 0.0
      %1094 = vmatprep.subr.mxu0 0.0
      %1095 = vmatpush1.msra.mxu0 0.0
      %1096 = vmatprep.subr.mxu0 0.0
      %1097 = vmatpush1.msra.mxu0 0.0
      %1098 = vmatprep.subr.mxu0 0.0
      %1099 = vmatpush1.msra.mxu0 0.0
      %1100 = vmatprep.subr.mxu0 0.0
      %1101 = vmatpush1.msra.mxu0 0.0
      %1102 = vmatprep.subr.mxu0 0.0
      %1103 = vmatpush1.msra.mxu0 0.0
      %1104 = vmatprep.subr.mxu0 0.0
      %1105 = vmatpush1.msra.mxu0 0.0
      %1106 = vmatprep.subr.mxu0 0.0
      %1107 = vmatpush1.msra.mxu0 0.0
      %1108 = vmatprep.subr.mxu0 0.0
      %1109 = vmatpush1.msra.mxu0 0.0
      %1110 = vmatprep.subr.mxu0 0.0
      %1111 = vmatpush1.msra.mxu0 0.0
      %1112 = vmatprep.subr.mxu0 0.0
      %1113 = vmatpush1.msra.mxu0 0.0
      %1114 = vmatprep.subr.mxu0 0.0
      %1115 = vmatpush1.msra.mxu0 0.0
      %1116 = vmatprep.subr.mxu0 0.0
      %1117 = vmatpush1.msra.mxu0 0.0
      %1118 = vmatprep.subr.mxu0 0.0
      %1119 = vmatpush1.msra.mxu0 0.0
      %1120 = vmatprep.subr.mxu0 0.0
      %1121 = vmatpush1.msra.mxu0 0.0
      %1122 = vmatprep.subr.mxu0 0.0
      %1123 = vmatpush1.msra.mxu0 0.0
      %1124 = vmatprep.mubr.f32.mxu0 0.0
      %1125 = vmatmul.mubr.f32.gmra.mrb[0].mxu0 %v1058
      %v1126 = vpop.f32.mrb[0].mxu0
      %v1127 = vadd.f32 0.0, %v1126
      %v1128 = vpop.f32.mrb[0].mxu0
      %1129 = vdwg.mxu0
      %v1130 = vmul.f32 %v557, %v809
      %v1131 = vadd.f32 %v1130, %v1127
      %v1132 = vsub.f32 %v1131, 1.0
      %v1133 = vsel %vm810, %v1132, %v1131
      %vm1134 = vcmp.gt.f32.partialorder %v1133, 1.0
      %v1135 = vsel %vm1134, 1.0, 0.0
      %v1137 = vsel %vm651, %v1135, 0
      %1139 = vmatprep.subr.mxu0 0.0
      %1140 = vmatpush1.msra.mxu0 %v534
      %1141 = vmatprep.subr.mxu0 0.0
      %1142 = vmatpush1.msra.mxu0 %v535
      %1143 = vmatprep.subr.mxu0 0.0
      %1144 = vmatpush1.msra.mxu0 %v536
      %1145 = vmatprep.subr.mxu0 0.0
      %1146 = vmatpush1.msra.mxu0 %v537
      %1147 = vmatprep.subr.mxu0 0.0
      %1148 = vmatpush1.msra.mxu0 0.0
      %1149 = vmatprep.subr.mxu0 0.0
      %1150 = vmatpush1.msra.mxu0 0.0
      %1151 = vmatprep.subr.mxu0 0.0
      %1152 = vmatpush1.msra.mxu0 0.0
      %1153 = vmatprep.subr.mxu0 0.0
      %1154 = vmatpush1.msra.mxu0 0.0
      %1155 = vmatprep.subr.mxu0 0.0
      %1156 = vmatpush1.msra.mxu0 0.0
      %1157 = vmatprep.subr.mxu0 0.0
      %1158 = vmatpush1.msra.mxu0 0.0
      %1159 = vmatprep.subr.mxu0 0.0
      %1160 = vmatpush1.msra.mxu0 0.0
      %1161 = vmatprep.subr.mxu0 0.0
      %1162 = vmatpush1.msra.mxu0 0.0
      %1163 = vmatprep.subr.mxu0 0.0
      %1164 = vmatpush1.msra.mxu0 0.0
      %1165 = vmatprep.subr.mxu0 0.0
      %1166 = vmatpush1.msra.mxu0 0.0
      %1167 = vmatprep.subr.mxu0 0.0
      %1168 = vmatpush1.msra.mxu0 0.0
      %1169 = vmatprep.subr.mxu0 0.0
      %1170 = vmatpush1.msra.mxu0 0.0
      %1171 = vmatprep.subr.mxu0 0.0
      %1172 = vmatpush1.msra.mxu0 0.0
      %1173 = vmatprep.subr.mxu0 0.0
      %1174 = vmatpush1.msra.mxu0 0.0
      %1175 = vmatprep.subr.mxu0 0.0
      %1176 = vmatpush1.msra.mxu0 0.0
      %1177 = vmatprep.subr.mxu0 0.0
      %1178 = vmatpush1.msra.mxu0 0.0
      %1179 = vmatprep.subr.mxu0 0.0
      %1180 = vmatpush1.msra.mxu0 0.0
      %1181 = vmatprep.subr.mxu0 0.0
      %1182 = vmatpush1.msra.mxu0 0.0
      %1183 = vmatprep.subr.mxu0 0.0
      %1184 = vmatpush1.msra.mxu0 0.0
      %1185 = vmatprep.subr.mxu0 0.0
      %1186 = vmatpush1.msra.mxu0 0.0
      %1187 = vmatprep.subr.mxu0 0.0
      %1188 = vmatpush1.msra.mxu0 0.0
      %1189 = vmatprep.subr.mxu0 0.0
      %1190 = vmatpush1.msra.mxu0 0.0
      %1191 = vmatprep.subr.mxu0 0.0
      %1192 = vmatpush1.msra.mxu0 0.0
      %1193 = vmatprep.subr.mxu0 0.0
      %1194 = vmatpush1.msra.mxu0 0.0
      %1195 = vmatprep.subr.mxu0 0.0
      %1196 = vmatpush1.msra.mxu0 0.0
      %1197 = vmatprep.subr.mxu0 0.0
      %1198 = vmatpush1.msra.mxu0 0.0
      %1199 = vmatprep.subr.mxu0 0.0
      %1200 = vmatpush1.msra.mxu0 0.0
      %1201 = vmatprep.subr.mxu0 0.0
      %1202 = vmatpush1.msra.mxu0 0.0
      %1203 = vmatprep.mubr.f32.mxu0 0.0
      %1204 = vmatmul.mubr.f32.gmra.mrb[0].mxu0 %v1137
      %v1205 = vpop.f32.mrb[0].mxu0
      %v1206 = vadd.f32 0.0, %v1205
      %v1207 = vpop.f32.mrb[0].mxu0
      %1208 = vdwg.mxu0
      %v1209 = vmul.f32 %v564, %v889
      %v1210 = vadd.f32 %v1209, %v1206
      %v1211 = vsub.f32 %v1210, 1.0
      %v1212 = vsel %vm890, %v1211, %v1210
      %vm1213 = vcmp.gt.f32.partialorder %v1212, 1.0
      %v1214 = vsel %vm1213, 1.0, 0.0
      %1215 = vst.msk [vmem:[%s471 + $0x2] sm:$0x3] %vm892, %v977
      %1216 = vst.msk [vmem:[%s477 + $0x2] sm:$0x3] %vm892, %v1056
      %1217 = vst.msk [vmem:[%s483 + $0x2] sm:$0x3] %vm892, %v1135
      %1218 = vst.msk [vmem:[%s489 + $0x2] sm:$0x3] %vm896, %v1214
      %1219 = vst.msk [vmem:[%s495 + $0x2] sm:$0x3] %vm896, %v1212
      %v1221 = vsel %vm570, %v518, 0
      %1223 = vmatprep.subr.mxu0 0.0
      %1224 = vmatpush1.msra.mxu0 %v524
      %1225 = vmatprep.subr.mxu0 0.0
      %1226 = vmatpush1.msra.mxu0 %v525
      %1227 = vmatprep.subr.mxu0 0.0
      %1228 = vmatpush1.msra.mxu0 0.0
      %1229 = vmatprep.subr.mxu0 0.0
      %1230 = vmatpush1.msra.mxu0 0.0
      %1231 = vmatprep.subr.mxu0 0.0
      %1232 = vmatpush1.msra.mxu0 0.0
      %1233 = vmatprep.subr.mxu0 0.0
      %1234 = vmatpush1.msra.mxu0 0.0
      %1235 = vmatprep.subr.mxu0 0.0
      %1236 = vmatpush1.msra.mxu0 0.0
      %1237 = vmatprep.subr.mxu0 0.0
      %1238 = vmatpush1.msra.mxu0 0.0
      %1239 = vmatprep.subr.mxu0 0.0
      %1240 = vmatpush1.msra.mxu0 0.0
      %1241 = vmatprep.subr.mxu0 0.0
      %1242 = vmatpush1.msra.mxu0 0.0
      %1243 = vmatprep.subr.mxu0 0.0
      %1244 = vmatpush1.msra.mxu0 0.0
      %1245 = vmatprep.subr.mxu0 0.0
      %1246 = vmatpush1.msra.mxu0 0.0
      %1247 = vmatprep.subr.mxu0 0.0
      %1248 = vmatpush1.msra.mxu0 0.0
      %1249 = vmatprep.subr.mxu0 0.0
      %1250 = vmatpush1.msra.mxu0 0.0
      %1251 = vmatprep.subr.mxu0 0.0
      %1252 = vmatpush1.msra.mxu0 0.0
      %1253 = vmatprep.subr.mxu0 0.0
      %1254 = vmatpush1.msra.mxu0 0.0
      %1255 = vmatprep.subr.mxu0 0.0
      %1256 = vmatpush1.msra.mxu0 0.0
      %1257 = vmatprep.subr.mxu0 0.0
      %1258 = vmatpush1.msra.mxu0 0.0
      %1259 = vmatprep.subr.mxu0 0.0
      %1260 = vmatpush1.msra.mxu0 0.0
      %1261 = vmatprep.subr.mxu0 0.0
      %1262 = vmatpush1.msra.mxu0 0.0
      %1263 = vmatprep.subr.mxu0 0.0
      %1264 = vmatpush1.msra.mxu0 0.0
      %1265 = vmatprep.subr.mxu0 0.0
      %1266 = vmatpush1.msra.mxu0 0.0
      %1267 = vmatprep.subr.mxu0 0.0
      %1268 = vmatpush1.msra.mxu0 0.0
      %1269 = vmatprep.subr.mxu0 0.0
      %1270 = vmatpush1.msra.mxu0 0.0
      %1271 = vmatprep.subr.mxu0 0.0
      %1272 = vmatpush1.msra.mxu0 0.0
      %1273 = vmatprep.subr.mxu0 0.0
      %1274 = vmatpush1.msra.mxu0 0.0
      %1275 = vmatprep.subr.mxu0 0.0
      %1276 = vmatpush1.msra.mxu0 0.0
      %1277 = vmatprep.subr.mxu0 0.0
      %1278 = vmatpush1.msra.mxu0 0.0
      %1279 = vmatprep.subr.mxu0 0.0
      %1280 = vmatpush1.msra.mxu0 0.0
      %1281 = vmatprep.subr.mxu0 0.0
      %1282 = vmatpush1.msra.mxu0 0.0
      %1283 = vmatprep.subr.mxu0 0.0
      %1284 = vmatpush1.msra.mxu0 0.0
      %1285 = vmatprep.subr.mxu0 0.0
      %1286 = vmatpush1.msra.mxu0 0.0
      %1287 = vmatprep.mubr.f32.mxu0 0.0
      %1288 = vmatmul.mubr.f32.gmra.mrb[0].mxu0 %v1221
      %v1289 = vpop.f32.mrb[0].mxu0
      %v1290 = vadd.f32 0.0, %v1289
      %v1291 = vpop.f32.mrb[0].mxu0
      %1292 = vdwg.mxu0
      %v1293 = vmul.f32 %v543, %v975
      %v1294 = vadd.f32 %v1293, %v1290
      %v1295 = vsub.f32 %v1294, 1.0
      %v1296 = vsel %vm976, %v1295, %v1294
      %vm1297 = vcmp.gt.f32.partialorder %v1296, 1.0
      %v1298 = vsel %vm1297, 1.0, 0.0
      %v1300 = vsel %vm651, %v1298, 0
      %1302 = vmatprep.subr.mxu0 0.0
      %1303 = vmatpush1.msra.mxu0 %v526
      %1304 = vmatprep.subr.mxu0 0.0
      %1305 = vmatpush1.msra.mxu0 %v527
      %1306 = vmatprep.subr.mxu0 0.0
      %1307 = vmatpush1.msra.mxu0 %v528
      %1308 = vmatprep.subr.mxu0 0.0
      %1309 = vmatpush1.msra.mxu0 %v529
      %1310 = vmatprep.subr.mxu0 0.0
      %1311 = vmatpush1.msra.mxu0 0.0
      %1312 = vmatprep.subr.mxu0 0.0
      %1313 = vmatpush1.msra.mxu0 0.0
      %1314 = vmatprep.subr.mxu0 0.0
      %1315 = vmatpush1.msra.mxu0 0.0
      %1316 = vmatprep.subr.mxu0 0.0
      %1317 = vmatpush1.msra.mxu0 0.0
      %1318 = vmatprep.subr.mxu0 0.0
      %1319 = vmatpush1.msra.mxu0 0.0
      %1320 = vmatprep.subr.mxu0 0.0
      %1321 = vmatpush1.msra.mxu0 0.0
      %1322 = vmatprep.subr.mxu0 0.0
      %1323 = vmatpush1.msra.mxu0 0.0
      %1324 = vmatprep.subr.mxu0 0.0
      %1325 = vmatpush1.msra.mxu0 0.0
      %1326 = vmatprep.subr.mxu0 0.0
      %1327 = vmatpush1.msra.mxu0 0.0
      %1328 = vmatprep.subr.mxu0 0.0
      %1329 = vmatpush1.msra.mxu0 0.0
      %1330 = vmatprep.subr.mxu0 0.0
      %1331 = vmatpush1.msra.mxu0 0.0
      %1332 = vmatprep.subr.mxu0 0.0
      %1333 = vmatpush1.msra.mxu0 0.0
      %1334 = vmatprep.subr.mxu0 0.0
      %1335 = vmatpush1.msra.mxu0 0.0
      %1336 = vmatprep.subr.mxu0 0.0
      %1337 = vmatpush1.msra.mxu0 0.0
      %1338 = vmatprep.subr.mxu0 0.0
      %1339 = vmatpush1.msra.mxu0 0.0
      %1340 = vmatprep.subr.mxu0 0.0
      %1341 = vmatpush1.msra.mxu0 0.0
      %1342 = vmatprep.subr.mxu0 0.0
      %1343 = vmatpush1.msra.mxu0 0.0
      %1344 = vmatprep.subr.mxu0 0.0
      %1345 = vmatpush1.msra.mxu0 0.0
      %1346 = vmatprep.subr.mxu0 0.0
      %1347 = vmatpush1.msra.mxu0 0.0
      %1348 = vmatprep.subr.mxu0 0.0
      %1349 = vmatpush1.msra.mxu0 0.0
      %1350 = vmatprep.subr.mxu0 0.0
      %1351 = vmatpush1.msra.mxu0 0.0
      %1352 = vmatprep.subr.mxu0 0.0
      %1353 = vmatpush1.msra.mxu0 0.0
      %1354 = vmatprep.subr.mxu0 0.0
      %1355 = vmatpush1.msra.mxu0 0.0
      %1356 = vmatprep.subr.mxu0 0.0
      %1357 = vmatpush1.msra.mxu0 0.0
      %1358 = vmatprep.subr.mxu0 0.0
      %1359 = vmatpush1.msra.mxu0 0.0
      %1360 = vmatprep.subr.mxu0 0.0
      %1361 = vmatpush1.msra.mxu0 0.0
      %1362 = vmatprep.subr.mxu0 0.0
      %1363 = vmatpush1.msra.mxu0 0.0
      %1364 = vmatprep.subr.mxu0 0.0
      %1365 = vmatpush1.msra.mxu0 0.0
      %1366 = vmatprep.mubr.f32.mxu0 0.0
      %1367 = vmatmul.mubr.f32.gmra.mrb[0].mxu0 %v1300
      %v1368 = vpop.f32.mrb[0].mxu0
      %v1369 = vadd.f32 0.0, %v1368
      %v1370 = vpop.f32.mrb[0].mxu0
      %1371 = vdwg.mxu0
      %v1372 = vmul.f32 %v550, %v1054
      %v1373 = vadd.f32 %v1372, %v1369
      %v1374 = vsub.f32 %v1373, 1.0
      %v1375 = vsel %vm1055, %v1374, %v1373
      %vm1376 = vcmp.gt.f32.partialorder %v1375, 1.0
      %v1377 = vsel %vm1376, 1.0, 0.0
      %v1379 = vsel %vm651, %v1377, 0
      %1381 = vmatprep.subr.mxu0 0.0
      %1382 = vmatpush1.msra.mxu0 %v530
      %1383 = vmatprep.subr.mxu0 0.0
      %1384 = vmatpush1.msra.mxu0 %v531
      %1385 = vmatprep.subr.mxu0 0.0
      %1386 = vmatpush1.msra.mxu0 %v532
      %1387 = vmatprep.subr.mxu0 0.0
      %1388 = vmatpush1.msra.mxu0 %v533
      %1389 = vmatprep.subr.mxu0 0.0
      %1390 = vmatpush1.msra.mxu0 0.0
      %1391 = vmatprep.subr.mxu0 0.0
      %1392 = vmatpush1.msra.mxu0 0.0
      %1393 = vmatprep.subr.mxu0 0.0
      %1394 = vmatpush1.msra.mxu0 0.0
      %1395 = vmatprep.subr.mxu0 0.0
      %1396 = vmatpush1.msra.mxu0 0.0
      %1397 = vmatprep.subr.mxu0 0.0
      %1398 = vmatpush1.msra.mxu0 0.0
      %1399 = vmatprep.subr.mxu0 0.0
      %1400 = vmatpush1.msra.mxu0 0.0
      %1401 = vmatprep.subr.mxu0 0.0
      %1402 = vmatpush1.msra.mxu0 0.0
      %1403 = vmatprep.subr.mxu0 0.0
      %1404 = vmatpush1.msra.mxu0 0.0
      %1405 = vmatprep.subr.mxu0 0.0
      %1406 = vmatpush1.msra.mxu0 0.0
      %1407 = vmatprep.subr.mxu0 0.0
      %1408 = vmatpush1.msra.mxu0 0.0
      %1409 = vmatprep.subr.mxu0 0.0
      %1410 = vmatpush1.msra.mxu0 0.0
      %1411 = vmatprep.subr.mxu0 0.0
      %1412 = vmatpush1.msra.mxu0 0.0
      %1413 = vmatprep.subr.mxu0 0.0
      %1414 = vmatpush1.msra.mxu0 0.0
      %1415 = vmatprep.subr.mxu0 0.0
      %1416 = vmatpush1.msra.mxu0 0.0
      %1417 = vmatprep.subr.mxu0 0.0
      %1418 = vmatpush1.msra.mxu0 0.0
      %1419 = vmatprep.subr.mxu0 0.0
      %1420 = vmatpush1.msra.mxu0 0.0
      %1421 = vmatprep.subr.mxu0 0.0
      %1422 = vmatpush1.msra.mxu0 0.0
      %1423 = vmatprep.subr.mxu0 0.0
      %1424 = vmatpush1.msra.mxu0 0.0
      %1425 = vmatprep.subr.mxu0 0.0
      %1426 = vmatpush1.msra.mxu0 0.0
      %1427 = vmatprep.subr.mxu0 0.0
      %1428 = vmatpush1.msra.mxu0 0.0
      %1429 = vmatprep.subr.mxu0 0.0
      %1430 = vmatpush1.msra.mxu0 0.0
      %1431 = vmatprep.subr.mxu0 0.0
      %1432 = vmatpush1.msra.mxu0 0.0
      %1433 = vmatprep.subr.mxu0 0.0
      %1434 = vmatpush1.msra.mxu0 0.0
      %1435 = vmatprep.subr.mxu0 0.0
      %1436 = vmatpush1.msra.mxu0 0.0
      %1437 = vmatprep.subr.mxu0 0.0
      %1438 = vmatpush1.msra.mxu0 0.0
      %1439 = vmatprep.subr.mxu0 0.0
      %1440 = vmatpush1.msra.mxu0 0.0
      %1441 = vmatprep.subr.mxu0 0.0
      %1442 = vmatpush1.msra.mxu0 0.0
      %1443 = vmatprep.subr.mxu0 0.0
      %1444 = vmatpush1.msra.mxu0 0.0
      %1445 = vmatprep.mubr.f32.mxu0 0.0
      %1446 = vmatmul.mubr.f32.gmra.mrb[0].mxu0 %v1379
      %v1447 = vpop.f32.mrb[0].mxu0
      %v1448 = vadd.f32 0.0, %v1447
      %v1449 = vpop.f32.mrb[0].mxu0
      %1450 = vdwg.mxu0
      %v1451 = vmul.f32 %v557, %v1133
      %v1452 = vadd.f32 %v1451, %v1448
      %v1453 = vsub.f32 %v1452, 1.0
      %v1454 = vsel %vm1134, %v1453, %v1452
      %vm1455 = vcmp.gt.f32.partialorder %v1454, 1.0
      %v1456 = vsel %vm1455, 1.0, 0.0
      %v1458 = vsel %vm651, %v1456, 0
      %1460 = vmatprep.subr.mxu0 0.0
      %1461 = vmatpush1.msra.mxu0 %v534
      %1462 = vmatprep.subr.mxu0 0.0
      %1463 = vmatpush1.msra.mxu0 %v535
      %1464 = vmatprep.subr.mxu0 0.0
      %1465 = vmatpush1.msra.mxu0 %v536
      %1466 = vmatprep.subr.mxu0 0.0
      %1467 = vmatpush1.msra.mxu0 %v537
      %1468 = vmatprep.subr.mxu0 0.0
      %1469 = vmatpush1.msra.mxu0 0.0
      %1470 = vmatprep.subr.mxu0 0.0
      %1471 = vmatpush1.msra.mxu0 0.0
      %1472 = vmatprep.subr.mxu0 0.0
      %1473 = vmatpush1.msra.mxu0 0.0
      %1474 = vmatprep.subr.mxu0 0.0
      %1475 = vmatpush1.msra.mxu0 0.0
      %1476 = vmatprep.subr.mxu0 0.0
      %1477 = vmatpush1.msra.mxu0 0.0
      %1478 = vmatprep.subr.mxu0 0.0
      %1479 = vmatpush1.msra.mxu0 0.0
      %1480 = vmatprep.subr.mxu0 0.0
      %1481 = vmatpush1.msra.mxu0 0.0
      %1482 = vmatprep.subr.mxu0 0.0
      %1483 = vmatpush1.msra.mxu0 0.0
      %1484 = vmatprep.subr.mxu0 0.0
      %1485 = vmatpush1.msra.mxu0 0.0
      %1486 = vmatprep.subr.mxu0 0.0
      %1487 = vmatpush1.msra.mxu0 0.0
      %1488 = vmatprep.subr.mxu0 0.0
      %1489 = vmatpush1.msra.mxu0 0.0
      %1490 = vmatprep.subr.mxu0 0.0
      %1491 = vmatpush1.msra.mxu0 0.0
      %1492 = vmatprep.subr.mxu0 0.0
      %1493 = vmatpush1.msra.mxu0 0.0
      %1494 = vmatprep.subr.mxu0 0.0
      %1495 = vmatpush1.msra.mxu0 0.0
      %1496 = vmatprep.subr.mxu0 0.0
      %1497 = vmatpush1.msra.mxu0 0.0
      %1498 = vmatprep.subr.mxu0 0.0
      %1499 = vmatpush1.msra.mxu0 0.0
      %1500 = vmatprep.subr.mxu0 0.0
      %1501 = vmatpush1.msra.mxu0 0.0
      %1502 = vmatprep.subr.mxu0 0.0
      %1503 = vmatpush1.msra.mxu0 0.0
      %1504 = vmatprep.subr.mxu0 0.0
      %1505 = vmatpush1.msra.mxu0 0.0
      %1506 = vmatprep.subr.mxu0 0.0
      %1507 = vmatpush1.msra.mxu0 0.0
      %1508 = vmatprep.subr.mxu0 0.0
      %1509 = vmatpush1.msra.mxu0 0.0
      %1510 = vmatprep.subr.mxu0 0.0
      %1511 = vmatpush1.msra.mxu0 0.0
      %1512 = vmatprep.subr.mxu0 0.0
      %1513 = vmatpush1.msra.mxu0 0.0
      %1514 = vmatprep.subr.mxu0 0.0
      %1515 = vmatpush1.msra.mxu0 0.0
      %1516 = vmatprep.subr.mxu0 0.0
      %1517 = vmatpush1.msra.mxu0 0.0
      %1518 = vmatprep.subr.mxu0 0.0
      %1519 = vmatpush1.msra.mxu0 0.0
      %1520 = vmatprep.subr.mxu0 0.0
      %1521 = vmatpush1.msra.mxu0 0.0
      %1522 = vmatprep.subr.mxu0 0.0
      %1523 = vmatpush1.msra.mxu0 0.0
      %1524 = vmatprep.mubr.f32.mxu0 0.0
      %1525 = vmatmul.mubr.f32.gmra.mrb[0].mxu0 %v1458
      %v1526 = vpop.f32.mrb[0].mxu0
      %v1527 = vadd.f32 0.0, %v1526
      %v1528 = vpop.f32.mrb[0].mxu0
      %1529 = vdwg.mxu0
      %v1530 = vmul.f32 %v564, %v1212
      %v1531 = vadd.f32 %v1530, %v1527
      %v1532 = vsub.f32 %v1531, 1.0
      %v1533 = vsel %vm1213, %v1532, %v1531
      %vm1534 = vcmp.gt.f32.partialorder %v1533, 1.0
      %v1535 = vsel %vm1534, 1.0, 0.0
      %1536 = vst.msk [vmem:[%s471 + $0x4] sm:$0x3] %vm892, %v1298
      %1537 = vst.msk [vmem:[%s477 + $0x4] sm:$0x3] %vm892, %v1377
      %1538 = vst.msk [vmem:[%s483 + $0x4] sm:$0x3] %vm892, %v1456
      %1539 = vst.msk [vmem:[%s489 + $0x4] sm:$0x3] %vm896, %v1535
      %1540 = vst.msk [vmem:[%s495 + $0x4] sm:$0x3] %vm896, %v1533
      %v1542 = vsel %vm570, %v519, 0
      %1544 = vmatprep.subr.mxu0 0.0
      %1545 = vmatpush1.msra.mxu0 %v524
      %1546 = vmatprep.subr.mxu0 0.0
      %1547 = vmatpush1.msra.mxu0 %v525
      %1548 = vmatprep.subr.mxu0 0.0
      %1549 = vmatpush1.msra.mxu0 0.0
      %1550 = vmatprep.subr.mxu0 0.0
      %1551 = vmatpush1.msra.mxu0 0.0
      %1552 = vmatprep.subr.mxu0 0.0
      %1553 = vmatpush1.msra.mxu0 0.0
      %1554 = vmatprep.subr.mxu0 0.0
      %1555 = vmatpush1.msra.mxu0 0.0
      %1556 = vmatprep.subr.mxu0 0.0
      %1557 = vmatpush1.msra.mxu0 0.0
      %1558 = vmatprep.subr.mxu0 0.0
      %1559 = vmatpush1.msra.mxu0 0.0
      %1560 = vmatprep.subr.mxu0 0.0
      %1561 = vmatpush1.msra.mxu0 0.0
      %1562 = vmatprep.subr.mxu0 0.0
      %1563 = vmatpush1.msra.mxu0 0.0
      %1564 = vmatprep.subr.mxu0 0.0
      %1565 = vmatpush1.msra.mxu0 0.0
      %1566 = vmatprep.subr.mxu0 0.0
      %1567 = vmatpush1.msra.mxu0 0.0
      %1568 = vmatprep.subr.mxu0 0.0
      %1569 = vmatpush1.msra.mxu0 0.0
      %1570 = vmatprep.subr.mxu0 0.0
      %1571 = vmatpush1.msra.mxu0 0.0
      %1572 = vmatprep.subr.mxu0 0.0
      %1573 = vmatpush1.msra.mxu0 0.0
      %1574 = vmatprep.subr.mxu0 0.0
      %1575 = vmatpush1.msra.mxu0 0.0
      %1576 = vmatprep.subr.mxu0 0.0
      %1577 = vmatpush1.msra.mxu0 0.0
      %1578 = vmatprep.subr.mxu0 0.0
      %1579 = vmatpush1.msra.mxu0 0.0
      %1580 = vmatprep.subr.mxu0 0.0
      %1581 = vmatpush1.msra.mxu0 0.0
      %1582 = vmatprep.subr.mxu0 0.0
      %1583 = vmatpush1.msra.mxu0 0.0
      %1584 = vmatprep.subr.mxu0 0.0
      %1585 = vmatpush1.msra.mxu0 0.0
      %1586 = vmatprep.subr.mxu0 0.0
      %1587 = vmatpush1.msra.mxu0 0.0
      %1588 = vmatprep.subr.mxu0 0.0
      %1589 = vmatpush1.msra.mxu0 0.0
      %1590 = vmatprep.subr.mxu0 0.0
      %1591 = vmatpush1.msra.mxu0 0.0
      %1592 = vmatprep.subr.mxu0 0.0
      %1593 = vmatpush1.msra.mxu0 0.0
      %1594 = vmatprep.subr.mxu0 0.0
      %1595 = vmatpush1.msra.mxu0 0.0
      %1596 = vmatprep.subr.mxu0 0.0
      %1597 = vmatpush1.msra.mxu0 0.0
      %1598 = vmatprep.subr.mxu0 0.0
      %1599 = vmatpush1.msra.mxu0 0.0
      %1600 = vmatprep.subr.mxu0 0.0
      %1601 = vmatpush1.msra.mxu0 0.0
      %1602 = vmatprep.subr.mxu0 0.0
      %1603 = vmatpush1.msra.mxu0 0.0
      %1604 = vmatprep.subr.mxu0 0.0
      %1605 = vmatpush1.msra.mxu0 0.0
      %1606 = vmatprep.subr.mxu0 0.0
      %1607 = vmatpush1.msra.mxu0 0.0
      %1608 = vmatprep.mubr.f32.mxu0 0.0
      %1609 = vmatmul.mubr.f32.gmra.mrb[0].mxu0 %v1542
      %v1610 = vpop.f32.mrb[0].mxu0
      %v1611 = vadd.f32 0.0, %v1610
      %v1612 = vpop.f32.mrb[0].mxu0
      %1613 = vdwg.mxu0
      %v1614 = vmul.f32 %v543, %v1296
      %v1615 = vadd.f32 %v1614, %v1611
      %v1616 = vsub.f32 %v1615, 1.0
      %v1617 = vsel %vm1297, %v1616, %v1615
      %vm1618 = vcmp.gt.f32.partialorder %v1617, 1.0
      %v1619 = vsel %vm1618, 1.0, 0.0
      %v1621 = vsel %vm651, %v1619, 0
      %1623 = vmatprep.subr.mxu0 0.0
      %1624 = vmatpush1.msra.mxu0 %v526
      %1625 = vmatprep.subr.mxu0 0.0
      %1626 = vmatpush1.msra.mxu0 %v527
      %1627 = vmatprep.subr.mxu0 0.0
      %1628 = vmatpush1.msra.mxu0 %v528
      %1629 = vmatprep.subr.mxu0 0.0
      %1630 = vmatpush1.msra.mxu0 %v529
      %1631 = vmatprep.subr.mxu0 0.0
      %1632 = vmatpush1.msra.mxu0 0.0
      %1633 = vmatprep.subr.mxu0 0.0
      %1634 = vmatpush1.msra.mxu0 0.0
      %1635 = vmatprep.subr.mxu0 0.0
      %1636 = vmatpush1.msra.mxu0 0.0
      %1637 = vmatprep.subr.mxu0 0.0
      %1638 = vmatpush1.msra.mxu0 0.0
      %1639 = vmatprep.subr.mxu0 0.0
      %1640 = vmatpush1.msra.mxu0 0.0
      %1641 = vmatprep.subr.mxu0 0.0
      %1642 = vmatpush1.msra.mxu0 0.0
      %1643 = vmatprep.subr.mxu0 0.0
      %1644 = vmatpush1.msra.mxu0 0.0
      %1645 = vmatprep.subr.mxu0 0.0
      %1646 = vmatpush1.msra.mxu0 0.0
      %1647 = vmatprep.subr.mxu0 0.0
      %1648 = vmatpush1.msra.mxu0 0.0
      %1649 = vmatprep.subr.mxu0 0.0
      %1650 = vmatpush1.msra.mxu0 0.0
      %1651 = vmatprep.subr.mxu0 0.0
      %1652 = vmatpush1.msra.mxu0 0.0
      %1653 = vmatprep.subr.mxu0 0.0
      %1654 = vmatpush1.msra.mxu0 0.0
      %1655 = vmatprep.subr.mxu0 0.0
      %1656 = vmatpush1.msra.mxu0 0.0
      %1657 = vmatprep.subr.mxu0 0.0
      %1658 = vmatpush1.msra.mxu0 0.0
      %1659 = vmatprep.subr.mxu0 0.0
      %1660 = vmatpush1.msra.mxu0 0.0
      %1661 = vmatprep.subr.mxu0 0.0
      %1662 = vmatpush1.msra.mxu0 0.0
      %1663 = vmatprep.subr.mxu0 0.0
      %1664 = vmatpush1.msra.mxu0 0.0
      %1665 = vmatprep.subr.mxu0 0.0
      %1666 = vmatpush1.msra.mxu0 0.0
      %1667 = vmatprep.subr.mxu0 0.0
      %1668 = vmatpush1.msra.mxu0 0.0
      %1669 = vmatprep.subr.mxu0 0.0
      %1670 = vmatpush1.msra.mxu0 0.0
      %1671 = vmatprep.subr.mxu0 0.0
      %1672 = vmatpush1.msra.mxu0 0.0
      %1673 = vmatprep.subr.mxu0 0.0
      %1674 = vmatpush1.msra.mxu0 0.0
      %1675 = vmatprep.subr.mxu0 0.0
      %1676 = vmatpush1.msra.mxu0 0.0
      %1677 = vmatprep.subr.mxu0 0.0
      %1678 = vmatpush1.msra.mxu0 0.0
      %1679 = vmatprep.subr.mxu0 0.0
      %1680 = vmatpush1.msra.mxu0 0.0
      %1681 = vmatprep.subr.mxu0 0.0
      %1682 = vmatpush1.msra.mxu0 0.0
      %1683 = vmatprep.subr.mxu0 0.0
      %1684 = vmatpush1.msra.mxu0 0.0
      %1685 = vmatprep.subr.mxu0 0.0
      %1686 = vmatpush1.msra.mxu0 0.0
      %1687 = vmatprep.mubr.f32.mxu0 0.0
      %1688 = vmatmul.mubr.f32.gmra.mrb[0].mxu0 %v1621
      %v1689 = vpop.f32.mrb[0].mxu0
      %v1690 = vadd.f32 0.0, %v1689
      %v1691 = vpop.f32.mrb[0].mxu0
      %1692 = vdwg.mxu0
      %v1693 = vmul.f32 %v550, %v1375
      %v1694 = vadd.f32 %v1693, %v1690
      %v1695 = vsub.f32 %v1694, 1.0
      %v1696 = vsel %vm1376, %v1695, %v1694
      %vm1697 = vcmp.gt.f32.partialorder %v1696, 1.0
      %v1698 = vsel %vm1697, 1.0, 0.0
      %v1700 = vsel %vm651, %v1698, 0
      %1702 = vmatprep.subr.mxu0 0.0
      %1703 = vmatpush1.msra.mxu0 %v530
      %1704 = vmatprep.subr.mxu0 0.0
      %1705 = vmatpush1.msra.mxu0 %v531
      %1706 = vmatprep.subr.mxu0 0.0
      %1707 = vmatpush1.msra.mxu0 %v532
      %1708 = vmatprep.subr.mxu0 0.0
      %1709 = vmatpush1.msra.mxu0 %v533
      %1710 = vmatprep.subr.mxu0 0.0
      %1711 = vmatpush1.msra.mxu0 0.0
      %1712 = vmatprep.subr.mxu0 0.0
      %1713 = vmatpush1.msra.mxu0 0.0
      %1714 = vmatprep.subr.mxu0 0.0
      %1715 = vmatpush1.msra.mxu0 0.0
      %1716 = vmatprep.subr.mxu0 0.0
      %1717 = vmatpush1.msra.mxu0 0.0
      %1718 = vmatprep.subr.mxu0 0.0
      %1719 = vmatpush1.msra.mxu0 0.0
      %1720 = vmatprep.subr.mxu0 0.0
      %1721 = vmatpush1.msra.mxu0 0.0
      %1722 = vmatprep.subr.mxu0 0.0
      %1723 = vmatpush1.msra.mxu0 0.0
      %1724 = vmatprep.subr.mxu0 0.0
      %1725 = vmatpush1.msra.mxu0 0.0
      %1726 = vmatprep.subr.mxu0 0.0
      %1727 = vmatpush1.msra.mxu0 0.0
      %1728 = vmatprep.subr.mxu0 0.0
      %1729 = vmatpush1.msra.mxu0 0.0
      %1730 = vmatprep.subr.mxu0 0.0
      %1731 = vmatpush1.msra.mxu0 0.0
      %1732 = vmatprep.subr.mxu0 0.0
      %1733 = vmatpush1.msra.mxu0 0.0
      %1734 = vmatprep.subr.mxu0 0.0
      %1735 = vmatpush1.msra.mxu0 0.0
      %1736 = vmatprep.subr.mxu0 0.0
      %1737 = vmatpush1.msra.mxu0 0.0
      %1738 = vmatprep.subr.mxu0 0.0
      %1739 = vmatpush1.msra.mxu0 0.0
      %1740 = vmatprep.subr.mxu0 0.0
      %1741 = vmatpush1.msra.mxu0 0.0
      %1742 = vmatprep.subr.mxu0 0.0
      %1743 = vmatpush1.msra.mxu0 0.0
      %1744 = vmatprep.subr.mxu0 0.0
      %1745 = vmatpush1.msra.mxu0 0.0
      %1746 = vmatprep.subr.mxu0 0.0
      %1747 = vmatpush1.msra.mxu0 0.0
      %1748 = vmatprep.subr.mxu0 0.0
      %1749 = vmatpush1.msra.mxu0 0.0
      %1750 = vmatprep.subr.mxu0 0.0
      %1751 = vmatpush1.msra.mxu0 0.0
      %1752 = vmatprep.subr.mxu0 0.0
      %1753 = vmatpush1.msra.mxu0 0.0
      %1754 = vmatprep.subr.mxu0 0.0
      %1755 = vmatpush1.msra.mxu0 0.0
      %1756 = vmatprep.subr.mxu0 0.0
      %1757 = vmatpush1.msra.mxu0 0.0
      %1758 = vmatprep.subr.mxu0 0.0
      %1759 = vmatpush1.msra.mxu0 0.0
      %1760 = vmatprep.subr.mxu0 0.0
      %1761 = vmatpush1.msra.mxu0 0.0
      %1762 = vmatprep.subr.mxu0 0.0
      %1763 = vmatpush1.msra.mxu0 0.0
      %1764 = vmatprep.subr.mxu0 0.0
      %1765 = vmatpush1.msra.mxu0 0.0
      %1766 = vmatprep.mubr.f32.mxu0 0.0
      %1767 = vmatmul.mubr.f32.gmra.mrb[0].mxu0 %v1700
      %v1768 = vpop.f32.mrb[0].mxu0
      %v1769 = vadd.f32 0.0, %v1768
      %v1770 = vpop.f32.mrb[0].mxu0
      %1771 = vdwg.mxu0
      %v1772 = vmul.f32 %v557, %v1454
      %v1773 = vadd.f32 %v1772, %v1769
      %v1774 = vsub.f32 %v1773, 1.0
      %v1775 = vsel %vm1455, %v1774, %v1773
      %vm1776 = vcmp.gt.f32.partialorder %v1775, 1.0
      %v1777 = vsel %vm1776, 1.0, 0.0
      %v1779 = vsel %vm651, %v1777, 0
      %1781 = vmatprep.subr.mxu0 0.0
      %1782 = vmatpush1.msra.mxu0 %v534
      %1783 = vmatprep.subr.mxu0 0.0
      %1784 = vmatpush1.msra.mxu0 %v535
      %1785 = vmatprep.subr.mxu0 0.0
      %1786 = vmatpush1.msra.mxu0 %v536
      %1787 = vmatprep.subr.mxu0 0.0
      %1788 = vmatpush1.msra.mxu0 %v537
      %1789 = vmatprep.subr.mxu0 0.0
      %1790 = vmatpush1.msra.mxu0 0.0
      %1791 = vmatprep.subr.mxu0 0.0
      %1792 = vmatpush1.msra.mxu0 0.0
      %1793 = vmatprep.subr.mxu0 0.0
      %1794 = vmatpush1.msra.mxu0 0.0
      %1795 = vmatprep.subr.mxu0 0.0
      %1796 = vmatpush1.msra.mxu0 0.0
      %1797 = vmatprep.subr.mxu0 0.0
      %1798 = vmatpush1.msra.mxu0 0.0
      %1799 = vmatprep.subr.mxu0 0.0
      %1800 = vmatpush1.msra.mxu0 0.0
      %1801 = vmatprep.subr.mxu0 0.0
      %1802 = vmatpush1.msra.mxu0 0.0
      %1803 = vmatprep.subr.mxu0 0.0
      %1804 = vmatpush1.msra.mxu0 0.0
      %1805 = vmatprep.subr.mxu0 0.0
      %1806 = vmatpush1.msra.mxu0 0.0
      %1807 = vmatprep.subr.mxu0 0.0
      %1808 = vmatpush1.msra.mxu0 0.0
      %1809 = vmatprep.subr.mxu0 0.0
      %1810 = vmatpush1.msra.mxu0 0.0
      %1811 = vmatprep.subr.mxu0 0.0
      %1812 = vmatpush1.msra.mxu0 0.0
      %1813 = vmatprep.subr.mxu0 0.0
      %1814 = vmatpush1.msra.mxu0 0.0
      %1815 = vmatprep.subr.mxu0 0.0
      %1816 = vmatpush1.msra.mxu0 0.0
      %1817 = vmatprep.subr.mxu0 0.0
      %1818 = vmatpush1.msra.mxu0 0.0
      %1819 = vmatprep.subr.mxu0 0.0
      %1820 = vmatpush1.msra.mxu0 0.0
      %1821 = vmatprep.subr.mxu0 0.0
      %1822 = vmatpush1.msra.mxu0 0.0
      %1823 = vmatprep.subr.mxu0 0.0
      %1824 = vmatpush1.msra.mxu0 0.0
      %1825 = vmatprep.subr.mxu0 0.0
      %1826 = vmatpush1.msra.mxu0 0.0
      %1827 = vmatprep.subr.mxu0 0.0
      %1828 = vmatpush1.msra.mxu0 0.0
      %1829 = vmatprep.subr.mxu0 0.0
      %1830 = vmatpush1.msra.mxu0 0.0
      %1831 = vmatprep.subr.mxu0 0.0
      %1832 = vmatpush1.msra.mxu0 0.0
      %1833 = vmatprep.subr.mxu0 0.0
      %1834 = vmatpush1.msra.mxu0 0.0
      %1835 = vmatprep.subr.mxu0 0.0
      %1836 = vmatpush1.msra.mxu0 0.0
      %1837 = vmatprep.subr.mxu0 0.0
      %1838 = vmatpush1.msra.mxu0 0.0
      %1839 = vmatprep.subr.mxu0 0.0
      %1840 = vmatpush1.msra.mxu0 0.0
      %1841 = vmatprep.subr.mxu0 0.0
      %1842 = vmatpush1.msra.mxu0 0.0
      %1843 = vmatprep.subr.mxu0 0.0
      %1844 = vmatpush1.msra.mxu0 0.0
      %1845 = vmatprep.mubr.f32.mxu0 0.0
      %1846 = vmatmul.mubr.f32.gmra.mrb[0].mxu0 %v1779
      %v1847 = vpop.f32.mrb[0].mxu0
      %v1848 = vadd.f32 0.0, %v1847
      %v1849 = vpop.f32.mrb[0].mxu0
      %1850 = vdwg.mxu0
      %v1851 = vmul.f32 %v564, %v1533
      %v1852 = vadd.f32 %v1851, %v1848
      %v1853 = vsub.f32 %v1852, 1.0
      %v1854 = vsel %vm1534, %v1853, %v1852
      %vm1855 = vcmp.gt.f32.partialorder %v1854, 1.0
      %v1856 = vsel %vm1855, 1.0, 0.0
      %1857 = vst.msk [vmem:[%s471 + $0x6] sm:$0x3] %vm892, %v1619
      %1858 = vst.msk [vmem:[%s477 + $0x6] sm:$0x3] %vm892, %v1698
      %1859 = vst.msk [vmem:[%s483 + $0x6] sm:$0x3] %vm892, %v1777
      %1860 = vst.msk [vmem:[%s489 + $0x6] sm:$0x3] %vm896, %v1856
      %1861 = vst.msk [vmem:[%s495 + $0x6] sm:$0x3] %vm896, %v1854
      %v1863 = vsel %vm570, %v520, 0
      %1865 = vmatprep.subr.mxu0 0.0
      %1866 = vmatpush1.msra.mxu0 %v524
      %1867 = vmatprep.subr.mxu0 0.0
      %1868 = vmatpush1.msra.mxu0 %v525
      %1869 = vmatprep.subr.mxu0 0.0
      %1870 = vmatpush1.msra.mxu0 0.0
      %1871 = vmatprep.subr.mxu0 0.0
      %1872 = vmatpush1.msra.mxu0 0.0
      %1873 = vmatprep.subr.mxu0 0.0
      %1874 = vmatpush1.msra.mxu0 0.0
      %1875 = vmatprep.subr.mxu0 0.0
      %1876 = vmatpush1.msra.mxu0 0.0
      %1877 = vmatprep.subr.mxu0 0.0
      %1878 = vmatpush1.msra.mxu0 0.0
      %1879 = vmatprep.subr.mxu0 0.0
      %1880 = vmatpush1.msra.mxu0 0.0
      %1881 = vmatprep.subr.mxu0 0.0
      %1882 = vmatpush1.msra.mxu0 0.0
      %1883 = vmatprep.subr.mxu0 0.0
      %1884 = vmatpush1.msra.mxu0 0.0
      %1885 = vmatprep.subr.mxu0 0.0
      %1886 = vmatpush1.msra.mxu0 0.0
      %1887 = vmatprep.subr.mxu0 0.0
      %1888 = vmatpush1.msra.mxu0 0.0
      %1889 = vmatprep.subr.mxu0 0.0
      %1890 = vmatpush1.msra.mxu0 0.0
      %1891 = vmatprep.subr.mxu0 0.0
      %1892 = vmatpush1.msra.mxu0 0.0
      %1893 = vmatprep.subr.mxu0 0.0
      %1894 = vmatpush1.msra.mxu0 0.0
      %1895 = vmatprep.subr.mxu0 0.0
      %1896 = vmatpush1.msra.mxu0 0.0
      %1897 = vmatprep.subr.mxu0 0.0
      %1898 = vmatpush1.msra.mxu0 0.0
      %1899 = vmatprep.subr.mxu0 0.0
      %1900 = vmatpush1.msra.mxu0 0.0
      %1901 = vmatprep.subr.mxu0 0.0
      %1902 = vmatpush1.msra.mxu0 0.0
      %1903 = vmatprep.subr.mxu0 0.0
      %1904 = vmatpush1.msra.mxu0 0.0
      %1905 = vmatprep.subr.mxu0 0.0
      %1906 = vmatpush1.msra.mxu0 0.0
      %1907 = vmatprep.subr.mxu0 0.0
      %1908 = vmatpush1.msra.mxu0 0.0
      %1909 = vmatprep.subr.mxu0 0.0
      %1910 = vmatpush1.msra.mxu0 0.0
      %1911 = vmatprep.subr.mxu0 0.0
      %1912 = vmatpush1.msra.mxu0 0.0
      %1913 = vmatprep.subr.mxu0 0.0
      %1914 = vmatpush1.msra.mxu0 0.0
      %1915 = vmatprep.subr.mxu0 0.0
      %1916 = vmatpush1.msra.mxu0 0.0
      %1917 = vmatprep.subr.mxu0 0.0
      %1918 = vmatpush1.msra.mxu0 0.0
      %1919 = vmatprep.subr.mxu0 0.0
      %1920 = vmatpush1.msra.mxu0 0.0
      %1921 = vmatprep.subr.mxu0 0.0
      %1922 = vmatpush1.msra.mxu0 0.0
      %1923 = vmatprep.subr.mxu0 0.0
      %1924 = vmatpush1.msra.mxu0 0.0
      %1925 = vmatprep.subr.mxu0 0.0
      %1926 = vmatpush1.msra.mxu0 0.0
      %1927 = vmatprep.subr.mxu0 0.0
      %1928 = vmatpush1.msra.mxu0 0.0
      %1929 = vmatprep.mubr.f32.mxu0 0.0
      %1930 = vmatmul.mubr.f32.gmra.mrb[0].mxu0 %v1863
      %v1931 = vpop.f32.mrb[0].mxu0
      %v1932 = vadd.f32 0.0, %v1931
      %v1933 = vpop.f32.mrb[0].mxu0
      %1934 = vdwg.mxu0
      %v1935 = vmul.f32 %v543, %v1617
      %v1936 = vadd.f32 %v1935, %v1932
      %v1937 = vsub.f32 %v1936, 1.0
      %v1938 = vsel %vm1618, %v1937, %v1936
      %vm1939 = vcmp.gt.f32.partialorder %v1938, 1.0
      %v1940 = vsel %vm1939, 1.0, 0.0
      %v1942 = vsel %vm651, %v1940, 0
      %1944 = vmatprep.subr.mxu0 0.0
      %1945 = vmatpush1.msra.mxu0 %v526
      %1946 = vmatprep.subr.mxu0 0.0
      %1947 = vmatpush1.msra.mxu0 %v527
      %1948 = vmatprep.subr.mxu0 0.0
      %1949 = vmatpush1.msra.mxu0 %v528
      %1950 = vmatprep.subr.mxu0 0.0
      %1951 = vmatpush1.msra.mxu0 %v529
      %1952 = vmatprep.subr.mxu0 0.0
      %1953 = vmatpush1.msra.mxu0 0.0
      %1954 = vmatprep.subr.mxu0 0.0
      %1955 = vmatpush1.msra.mxu0 0.0
      %1956 = vmatprep.subr.mxu0 0.0
      %1957 = vmatpush1.msra.mxu0 0.0
      %1958 = vmatprep.subr.mxu0 0.0
      %1959 = vmatpush1.msra.mxu0 0.0
      %1960 = vmatprep.subr.mxu0 0.0
      %1961 = vmatpush1.msra.mxu0 0.0
      %1962 = vmatprep.subr.mxu0 0.0
      %1963 = vmatpush1.msra.mxu0 0.0
      %1964 = vmatprep.subr.mxu0 0.0
      %1965 = vmatpush1.msra.mxu0 0.0
      %1966 = vmatprep.subr.mxu0 0.0
      %1967 = vmatpush1.msra.mxu0 0.0
      %1968 = vmatprep.subr.mxu0 0.0
      %1969 = vmatpush1.msra.mxu0 0.0
      %1970 = vmatprep.subr.mxu0 0.0
      %1971 = vmatpush1.msra.mxu0 0.0
      %1972 = vmatprep.subr.mxu0 0.0
      %1973 = vmatpush1.msra.mxu0 0.0
      %1974 = vmatprep.subr.mxu0 0.0
      %1975 = vmatpush1.msra.mxu0 0.0
      %1976 = vmatprep.subr.mxu0 0.0
      %1977 = vmatpush1.msra.mxu0 0.0
      %1978 = vmatprep.subr.mxu0 0.0
      %1979 = vmatpush1.msra.mxu0 0.0
      %1980 = vmatprep.subr.mxu0 0.0
      %1981 = vmatpush1.msra.mxu0 0.0
      %1982 = vmatprep.subr.mxu0 0.0
      %1983 = vmatpush1.msra.mxu0 0.0
      %1984 = vmatprep.subr.mxu0 0.0
      %1985 = vmatpush1.msra.mxu0 0.0
      %1986 = vmatprep.subr.mxu0 0.0
      %1987 = vmatpush1.msra.mxu0 0.0
      %1988 = vmatprep.subr.mxu0 0.0
      %1989 = vmatpush1.msra.mxu0 0.0
      %1990 = vmatprep.subr.mxu0 0.0
      %1991 = vmatpush1.msra.mxu0 0.0
      %1992 = vmatprep.subr.mxu0 0.0
      %1993 = vmatpush1.msra.mxu0 0.0
      %1994 = vmatprep.subr.mxu0 0.0
      %1995 = vmatpush1.msra.mxu0 0.0
      %1996 = vmatprep.subr.mxu0 0.0
      %1997 = vmatpush1.msra.mxu0 0.0
      %1998 = vmatprep.subr.mxu0 0.0
      %1999 = vmatpush1.msra.mxu0 0.0
      %2000 = vmatprep.subr.mxu0 0.0
      %2001 = vmatpush1.msra.mxu0 0.0
      %2002 = vmatprep.subr.mxu0 0.0
      %2003 = vmatpush1.msra.mxu0 0.0
      %2004 = vmatprep.subr.mxu0 0.0
      %2005 = vmatpush1.msra.mxu0 0.0
      %2006 = vmatprep.subr.mxu0 0.0
      %2007 = vmatpush1.msra.mxu0 0.0
      %2008 = vmatprep.mubr.f32.mxu0 0.0
      %2009 = vmatmul.mubr.f32.gmra.mrb[0].mxu0 %v1942
      %v2010 = vpop.f32.mrb[0].mxu0
      %v2011 = vadd.f32 0.0, %v2010
      %v2012 = vpop.f32.mrb[0].mxu0
      %2013 = vdwg.mxu0
      %v2014 = vmul.f32 %v550, %v1696
      %v2015 = vadd.f32 %v2014, %v2011
      %v2016 = vsub.f32 %v2015, 1.0
      %v2017 = vsel %vm1697, %v2016, %v2015
      %vm2018 = vcmp.gt.f32.partialorder %v2017, 1.0
      %v2019 = vsel %vm2018, 1.0, 0.0
      %v2021 = vsel %vm651, %v2019, 0
      %2023 = vmatprep.subr.mxu0 0.0
      %2024 = vmatpush1.msra.mxu0 %v530
      %2025 = vmatprep.subr.mxu0 0.0
      %2026 = vmatpush1.msra.mxu0 %v531
      %2027 = vmatprep.subr.mxu0 0.0
      %2028 = vmatpush1.msra.mxu0 %v532
      %2029 = vmatprep.subr.mxu0 0.0
      %2030 = vmatpush1.msra.mxu0 %v533
      %2031 = vmatprep.subr.mxu0 0.0
      %2032 = vmatpush1.msra.mxu0 0.0
      %2033 = vmatprep.subr.mxu0 0.0
      %2034 = vmatpush1.msra.mxu0 0.0
      %2035 = vmatprep.subr.mxu0 0.0
      %2036 = vmatpush1.msra.mxu0 0.0
      %2037 = vmatprep.subr.mxu0 0.0
      %2038 = vmatpush1.msra.mxu0 0.0
      %2039 = vmatprep.subr.mxu0 0.0
      %2040 = vmatpush1.msra.mxu0 0.0
      %2041 = vmatprep.subr.mxu0 0.0
      %2042 = vmatpush1.msra.mxu0 0.0
      %2043 = vmatprep.subr.mxu0 0.0
      %2044 = vmatpush1.msra.mxu0 0.0
      %2045 = vmatprep.subr.mxu0 0.0
      %2046 = vmatpush1.msra.mxu0 0.0
      %2047 = vmatprep.subr.mxu0 0.0
      %2048 = vmatpush1.msra.mxu0 0.0
      %2049 = vmatprep.subr.mxu0 0.0
      %2050 = vmatpush1.msra.mxu0 0.0
      %2051 = vmatprep.subr.mxu0 0.0
      %2052 = vmatpush1.msra.mxu0 0.0
      %2053 = vmatprep.subr.mxu0 0.0
      %2054 = vmatpush1.msra.mxu0 0.0
      %2055 = vmatprep.subr.mxu0 0.0
      %2056 = vmatpush1.msra.mxu0 0.0
      %2057 = vmatprep.subr.mxu0 0.0
      %2058 = vmatpush1.msra.mxu0 0.0
      %2059 = vmatprep.subr.mxu0 0.0
      %2060 = vmatpush1.msra.mxu0 0.0
      %2061 = vmatprep.subr.mxu0 0.0
      %2062 = vmatpush1.msra.mxu0 0.0
      %2063 = vmatprep.subr.mxu0 0.0
      %2064 = vmatpush1.msra.mxu0 0.0
      %2065 = vmatprep.subr.mxu0 0.0
      %2066 = vmatpush1.msra.mxu0 0.0
      %2067 = vmatprep.subr.mxu0 0.0
      %2068 = vmatpush1.msra.mxu0 0.0
      %2069 = vmatprep.subr.mxu0 0.0
      %2070 = vmatpush1.msra.mxu0 0.0
      %2071 = vmatprep.subr.mxu0 0.0
      %2072 = vmatpush1.msra.mxu0 0.0
      %2073 = vmatprep.subr.mxu0 0.0
      %2074 = vmatpush1.msra.mxu0 0.0
      %2075 = vmatprep.subr.mxu0 0.0
      %2076 = vmatpush1.msra.mxu0 0.0
      %2077 = vmatprep.subr.mxu0 0.0
      %2078 = vmatpush1.msra.mxu0 0.0
      %2079 = vmatprep.subr.mxu0 0.0
      %2080 = vmatpush1.msra.mxu0 0.0
      %2081 = vmatprep.subr.mxu0 0.0
      %2082 = vmatpush1.msra.mxu0 0.0
      %2083 = vmatprep.subr.mxu0 0.0
      %2084 = vmatpush1.msra.mxu0 0.0
      %2085 = vmatprep.subr.mxu0 0.0
      %2086 = vmatpush1.msra.mxu0 0.0
      %2087 = vmatprep.mubr.f32.mxu0 0.0
      %2088 = vmatmul.mubr.f32.gmra.mrb[0].mxu0 %v2021
      %v2089 = vpop.f32.mrb[0].mxu0
      %v2090 = vadd.f32 0.0, %v2089
      %v2091 = vpop.f32.mrb[0].mxu0
      %2092 = vdwg.mxu0
      %v2093 = vmul.f32 %v557, %v1775
      %v2094 = vadd.f32 %v2093, %v2090
      %v2095 = vsub.f32 %v2094, 1.0
      %v2096 = vsel %vm1776, %v2095, %v2094
      %vm2097 = vcmp.gt.f32.partialorder %v2096, 1.0
      %v2098 = vsel %vm2097, 1.0, 0.0
      %v2100 = vsel %vm651, %v2098, 0
      %2102 = vmatprep.subr.mxu0 0.0
      %2103 = vmatpush1.msra.mxu0 %v534
      %2104 = vmatprep.subr.mxu0 0.0
      %2105 = vmatpush1.msra.mxu0 %v535
      %2106 = vmatprep.subr.mxu0 0.0
      %2107 = vmatpush1.msra.mxu0 %v536
      %2108 = vmatprep.subr.mxu0 0.0
      %2109 = vmatpush1.msra.mxu0 %v537
      %2110 = vmatprep.subr.mxu0 0.0
      %2111 = vmatpush1.msra.mxu0 0.0
      %2112 = vmatprep.subr.mxu0 0.0
      %2113 = vmatpush1.msra.mxu0 0.0
      %2114 = vmatprep.subr.mxu0 0.0
      %2115 = vmatpush1.msra.mxu0 0.0
      %2116 = vmatprep.subr.mxu0 0.0
      %2117 = vmatpush1.msra.mxu0 0.0
      %2118 = vmatprep.subr.mxu0 0.0
      %2119 = vmatpush1.msra.mxu0 0.0
      %2120 = vmatprep.subr.mxu0 0.0
      %2121 = vmatpush1.msra.mxu0 0.0
      %2122 = vmatprep.subr.mxu0 0.0
      %2123 = vmatpush1.msra.mxu0 0.0
      %2124 = vmatprep.subr.mxu0 0.0
      %2125 = vmatpush1.msra.mxu0 0.0
      %2126 = vmatprep.subr.mxu0 0.0
      %2127 = vmatpush1.msra.mxu0 0.0
      %2128 = vmatprep.subr.mxu0 0.0
      %2129 = vmatpush1.msra.mxu0 0.0
      %2130 = vmatprep.subr.mxu0 0.0
      %2131 = vmatpush1.msra.mxu0 0.0
      %2132 = vmatprep.subr.mxu0 0.0
      %2133 = vmatpush1.msra.mxu0 0.0
      %2134 = vmatprep.subr.mxu0 0.0
      %2135 = vmatpush1.msra.mxu0 0.0
      %2136 = vmatprep.subr.mxu0 0.0
      %2137 = vmatpush1.msra.mxu0 0.0
      %2138 = vmatprep.subr.mxu0 0.0
      %2139 = vmatpush1.msra.mxu0 0.0
      %2140 = vmatprep.subr.mxu0 0.0
      %2141 = vmatpush1.msra.mxu0 0.0
      %2142 = vmatprep.subr.mxu0 0.0
      %2143 = vmatpush1.msra.mxu0 0.0
      %2144 = vmatprep.subr.mxu0 0.0
      %2145 = vmatpush1.msra.mxu0 0.0
      %2146 = vmatprep.subr.mxu0 0.0
      %2147 = vmatpush1.msra.mxu0 0.0
      %2148 = vmatprep.subr.mxu0 0.0
      %2149 = vmatpush1.msra.mxu0 0.0
      %2150 = vmatprep.subr.mxu0 0.0
      %2151 = vmatpush1.msra.mxu0 0.0
      %2152 = vmatprep.subr.mxu0 0.0
      %2153 = vmatpush1.msra.mxu0 0.0
      %2154 = vmatprep.subr.mxu0 0.0
      %2155 = vmatpush1.msra.mxu0 0.0
      %2156 = vmatprep.subr.mxu0 0.0
      %2157 = vmatpush1.msra.mxu0 0.0
      %2158 = vmatprep.subr.mxu0 0.0
      %2159 = vmatpush1.msra.mxu0 0.0
      %2160 = vmatprep.subr.mxu0 0.0
      %2161 = vmatpush1.msra.mxu0 0.0
      %2162 = vmatprep.subr.mxu0 0.0
      %2163 = vmatpush1.msra.mxu0 0.0
      %2164 = vmatprep.subr.mxu0 0.0
      %2165 = vmatpush1.msra.mxu0 0.0
      %2166 = vmatprep.mubr.f32.mxu0 0.0
      %2167 = vmatmul.mubr.f32.gmra.mrb[0].mxu0 %v2100
      %v2168 = vpop.f32.mrb[0].mxu0
      %v2169 = vadd.f32 0.0, %v2168
      %v2170 = vpop.f32.mrb[0].mxu0
      %2171 = vdwg.mxu0
      %v2172 = vmul.f32 %v564, %v1854
      %v2173 = vadd.f32 %v2172, %v2169
      %v2174 = vsub.f32 %v2173, 1.0
      %v2175 = vsel %vm1855, %v2174, %v2173
      %vm2176 = vcmp.gt.f32.partialorder %v2175, 1.0
      %v2177 = vsel %vm2176, 1.0, 0.0
      %2178 = vst.msk [vmem:[%s471 + $0x8] sm:$0x3] %vm892, %v1940
      %2179 = vst.msk [vmem:[%s477 + $0x8] sm:$0x3] %vm892, %v2019
      %2180 = vst.msk [vmem:[%s483 + $0x8] sm:$0x3] %vm892, %v2098
      %2181 = vst.msk [vmem:[%s489 + $0x8] sm:$0x3] %vm896, %v2177
      %2182 = vst.msk [vmem:[%s495 + $0x8] sm:$0x3] %vm896, %v2175
      %v2184 = vsel %vm570, %v521, 0
      %2186 = vmatprep.subr.mxu0 0.0
      %2187 = vmatpush1.msra.mxu0 %v524
      %2188 = vmatprep.subr.mxu0 0.0
      %2189 = vmatpush1.msra.mxu0 %v525
      %2190 = vmatprep.subr.mxu0 0.0
      %2191 = vmatpush1.msra.mxu0 0.0
      %2192 = vmatprep.subr.mxu0 0.0
      %2193 = vmatpush1.msra.mxu0 0.0
      %2194 = vmatprep.subr.mxu0 0.0
      %2195 = vmatpush1.msra.mxu0 0.0
      %2196 = vmatprep.subr.mxu0 0.0
      %2197 = vmatpush1.msra.mxu0 0.0
      %2198 = vmatprep.subr.mxu0 0.0
      %2199 = vmatpush1.msra.mxu0 0.0
      %2200 = vmatprep.subr.mxu0 0.0
      %2201 = vmatpush1.msra.mxu0 0.0
      %2202 = vmatprep.subr.mxu0 0.0
      %2203 = vmatpush1.msra.mxu0 0.0
      %2204 = vmatprep.subr.mxu0 0.0
      %2205 = vmatpush1.msra.mxu0 0.0
      %2206 = vmatprep.subr.mxu0 0.0
      %2207 = vmatpush1.msra.mxu0 0.0
      %2208 = vmatprep.subr.mxu0 0.0
      %2209 = vmatpush1.msra.mxu0 0.0
      %2210 = vmatprep.subr.mxu0 0.0
      %2211 = vmatpush1.msra.mxu0 0.0
      %2212 = vmatprep.subr.mxu0 0.0
      %2213 = vmatpush1.msra.mxu0 0.0
      %2214 = vmatprep.subr.mxu0 0.0
      %2215 = vmatpush1.msra.mxu0 0.0
      %2216 = vmatprep.subr.mxu0 0.0
      %2217 = vmatpush1.msra.mxu0 0.0
      %2218 = vmatprep.subr.mxu0 0.0
      %2219 = vmatpush1.msra.mxu0 0.0
      %2220 = vmatprep.subr.mxu0 0.0
      %2221 = vmatpush1.msra.mxu0 0.0
      %2222 = vmatprep.subr.mxu0 0.0
      %2223 = vmatpush1.msra.mxu0 0.0
      %2224 = vmatprep.subr.mxu0 0.0
      %2225 = vmatpush1.msra.mxu0 0.0
      %2226 = vmatprep.subr.mxu0 0.0
      %2227 = vmatpush1.msra.mxu0 0.0
      %2228 = vmatprep.subr.mxu0 0.0
      %2229 = vmatpush1.msra.mxu0 0.0
      %2230 = vmatprep.subr.mxu0 0.0
      %2231 = vmatpush1.msra.mxu0 0.0
      %2232 = vmatprep.subr.mxu0 0.0
      %2233 = vmatpush1.msra.mxu0 0.0
      %2234 = vmatprep.subr.mxu0 0.0
      %2235 = vmatpush1.msra.mxu0 0.0
      %2236 = vmatprep.subr.mxu0 0.0
      %2237 = vmatpush1.msra.mxu0 0.0
      %2238 = vmatprep.subr.mxu0 0.0
      %2239 = vmatpush1.msra.mxu0 0.0
      %2240 = vmatprep.subr.mxu0 0.0
      %2241 = vmatpush1.msra.mxu0 0.0
      %2242 = vmatprep.subr.mxu0 0.0
      %2243 = vmatpush1.msra.mxu0 0.0
      %2244 = vmatprep.subr.mxu0 0.0
      %2245 = vmatpush1.msra.mxu0 0.0
      %2246 = vmatprep.subr.mxu0 0.0
      %2247 = vmatpush1.msra.mxu0 0.0
      %2248 = vmatprep.subr.mxu0 0.0
      %2249 = vmatpush1.msra.mxu0 0.0
      %2250 = vmatprep.mubr.f32.mxu0 0.0
      %2251 = vmatmul.mubr.f32.gmra.mrb[0].mxu0 %v2184
      %v2252 = vpop.f32.mrb[0].mxu0
      %v2253 = vadd.f32 0.0, %v2252
      %v2254 = vpop.f32.mrb[0].mxu0
      %2255 = vdwg.mxu0
      %v2256 = vmul.f32 %v543, %v1938
      %v2257 = vadd.f32 %v2256, %v2253
      %v2258 = vsub.f32 %v2257, 1.0
      %v2259 = vsel %vm1939, %v2258, %v2257
      %vm2260 = vcmp.gt.f32.partialorder %v2259, 1.0
      %v2261 = vsel %vm2260, 1.0, 0.0
      %v2263 = vsel %vm651, %v2261, 0
      %2265 = vmatprep.subr.mxu0 0.0
      %2266 = vmatpush1.msra.mxu0 %v526
      %2267 = vmatprep.subr.mxu0 0.0
      %2268 = vmatpush1.msra.mxu0 %v527
      %2269 = vmatprep.subr.mxu0 0.0
      %2270 = vmatpush1.msra.mxu0 %v528
      %2271 = vmatprep.subr.mxu0 0.0
      %2272 = vmatpush1.msra.mxu0 %v529
      %2273 = vmatprep.subr.mxu0 0.0
      %2274 = vmatpush1.msra.mxu0 0.0
      %2275 = vmatprep.subr.mxu0 0.0
      %2276 = vmatpush1.msra.mxu0 0.0
      %2277 = vmatprep.subr.mxu0 0.0
      %2278 = vmatpush1.msra.mxu0 0.0
      %2279 = vmatprep.subr.mxu0 0.0
      %2280 = vmatpush1.msra.mxu0 0.0
      %2281 = vmatprep.subr.mxu0 0.0
      %2282 = vmatpush1.msra.mxu0 0.0
      %2283 = vmatprep.subr.mxu0 0.0
      %2284 = vmatpush1.msra.mxu0 0.0
      %2285 = vmatprep.subr.mxu0 0.0
      %2286 = vmatpush1.msra.mxu0 0.0
      %2287 = vmatprep.subr.mxu0 0.0
      %2288 = vmatpush1.msra.mxu0 0.0
      %2289 = vmatprep.subr.mxu0 0.0
      %2290 = vmatpush1.msra.mxu0 0.0
      %2291 = vmatprep.subr.mxu0 0.0
      %2292 = vmatpush1.msra.mxu0 0.0
      %2293 = vmatprep.subr.mxu0 0.0
      %2294 = vmatpush1.msra.mxu0 0.0
      %2295 = vmatprep.subr.mxu0 0.0
      %2296 = vmatpush1.msra.mxu0 0.0
      %2297 = vmatprep.subr.mxu0 0.0
      %2298 = vmatpush1.msra.mxu0 0.0
      %2299 = vmatprep.subr.mxu0 0.0
      %2300 = vmatpush1.msra.mxu0 0.0
      %2301 = vmatprep.subr.mxu0 0.0
      %2302 = vmatpush1.msra.mxu0 0.0
      %2303 = vmatprep.subr.mxu0 0.0
      %2304 = vmatpush1.msra.mxu0 0.0
      %2305 = vmatprep.subr.mxu0 0.0
      %2306 = vmatpush1.msra.mxu0 0.0
      %2307 = vmatprep.subr.mxu0 0.0
      %2308 = vmatpush1.msra.mxu0 0.0
      %2309 = vmatprep.subr.mxu0 0.0
      %2310 = vmatpush1.msra.mxu0 0.0
      %2311 = vmatprep.subr.mxu0 0.0
      %2312 = vmatpush1.msra.mxu0 0.0
      %2313 = vmatprep.subr.mxu0 0.0
      %2314 = vmatpush1.msra.mxu0 0.0
      %2315 = vmatprep.subr.mxu0 0.0
      %2316 = vmatpush1.msra.mxu0 0.0
      %2317 = vmatprep.subr.mxu0 0.0
      %2318 = vmatpush1.msra.mxu0 0.0
      %2319 = vmatprep.subr.mxu0 0.0
      %2320 = vmatpush1.msra.mxu0 0.0
      %2321 = vmatprep.subr.mxu0 0.0
      %2322 = vmatpush1.msra.mxu0 0.0
      %2323 = vmatprep.subr.mxu0 0.0
      %2324 = vmatpush1.msra.mxu0 0.0
      %2325 = vmatprep.subr.mxu0 0.0
      %2326 = vmatpush1.msra.mxu0 0.0
      %2327 = vmatprep.subr.mxu0 0.0
      %2328 = vmatpush1.msra.mxu0 0.0
      %2329 = vmatprep.mubr.f32.mxu0 0.0
      %2330 = vmatmul.mubr.f32.gmra.mrb[0].mxu0 %v2263
      %v2331 = vpop.f32.mrb[0].mxu0
      %v2332 = vadd.f32 0.0, %v2331
      %v2333 = vpop.f32.mrb[0].mxu0
      %2334 = vdwg.mxu0
      %v2335 = vmul.f32 %v550, %v2017
      %v2336 = vadd.f32 %v2335, %v2332
      %v2337 = vsub.f32 %v2336, 1.0
      %v2338 = vsel %vm2018, %v2337, %v2336
      %vm2339 = vcmp.gt.f32.partialorder %v2338, 1.0
      %v2340 = vsel %vm2339, 1.0, 0.0
      %v2342 = vsel %vm651, %v2340, 0
      %2344 = vmatprep.subr.mxu0 0.0
      %2345 = vmatpush1.msra.mxu0 %v530
      %2346 = vmatprep.subr.mxu0 0.0
      %2347 = vmatpush1.msra.mxu0 %v531
      %2348 = vmatprep.subr.mxu0 0.0
      %2349 = vmatpush1.msra.mxu0 %v532
      %2350 = vmatprep.subr.mxu0 0.0
      %2351 = vmatpush1.msra.mxu0 %v533
      %2352 = vmatprep.subr.mxu0 0.0
      %2353 = vmatpush1.msra.mxu0 0.0
      %2354 = vmatprep.subr.mxu0 0.0
      %2355 = vmatpush1.msra.mxu0 0.0
      %2356 = vmatprep.subr.mxu0 0.0
      %2357 = vmatpush1.msra.mxu0 0.0
      %2358 = vmatprep.subr.mxu0 0.0
      %2359 = vmatpush1.msra.mxu0 0.0
      %2360 = vmatprep.subr.mxu0 0.0
      %2361 = vmatpush1.msra.mxu0 0.0
      %2362 = vmatprep.subr.mxu0 0.0
      %2363 = vmatpush1.msra.mxu0 0.0
      %2364 = vmatprep.subr.mxu0 0.0
      %2365 = vmatpush1.msra.mxu0 0.0
      %2366 = vmatprep.subr.mxu0 0.0
      %2367 = vmatpush1.msra.mxu0 0.0
      %2368 = vmatprep.subr.mxu0 0.0
      %2369 = vmatpush1.msra.mxu0 0.0
      %2370 = vmatprep.subr.mxu0 0.0
      %2371 = vmatpush1.msra.mxu0 0.0
      %2372 = vmatprep.subr.mxu0 0.0
      %2373 = vmatpush1.msra.mxu0 0.0
      %2374 = vmatprep.subr.mxu0 0.0
      %2375 = vmatpush1.msra.mxu0 0.0
      %2376 = vmatprep.subr.mxu0 0.0
      %2377 = vmatpush1.msra.mxu0 0.0
      %2378 = vmatprep.subr.mxu0 0.0
      %2379 = vmatpush1.msra.mxu0 0.0
      %2380 = vmatprep.subr.mxu0 0.0
      %2381 = vmatpush1.msra.mxu0 0.0
      %2382 = vmatprep.subr.mxu0 0.0
      %2383 = vmatpush1.msra.mxu0 0.0
      %2384 = vmatprep.subr.mxu0 0.0
      %2385 = vmatpush1.msra.mxu0 0.0
      %2386 = vmatprep.subr.mxu0 0.0
      %2387 = vmatpush1.msra.mxu0 0.0
      %2388 = vmatprep.subr.mxu0 0.0
      %2389 = vmatpush1.msra.mxu0 0.0
      %2390 = vmatprep.subr.mxu0 0.0
      %2391 = vmatpush1.msra.mxu0 0.0
      %2392 = vmatprep.subr.mxu0 0.0
      %2393 = vmatpush1.msra.mxu0 0.0
      %2394 = vmatprep.subr.mxu0 0.0
      %2395 = vmatpush1.msra.mxu0 0.0
      %2396 = vmatprep.subr.mxu0 0.0
      %2397 = vmatpush1.msra.mxu0 0.0
      %2398 = vmatprep.subr.mxu0 0.0
      %2399 = vmatpush1.msra.mxu0 0.0
      %2400 = vmatprep.subr.mxu0 0.0
      %2401 = vmatpush1.msra.mxu0 0.0
      %2402 = vmatprep.subr.mxu0 0.0
      %2403 = vmatpush1.msra.mxu0 0.0
      %2404 = vmatprep.subr.mxu0 0.0
      %2405 = vmatpush1.msra.mxu0 0.0
      %2406 = vmatprep.subr.mxu0 0.0
      %2407 = vmatpush1.msra.mxu0 0.0
      %2408 = vmatprep.mubr.f32.mxu0 0.0
      %2409 = vmatmul.mubr.f32.gmra.mrb[0].mxu0 %v2342
      %v2410 = vpop.f32.mrb[0].mxu0
      %v2411 = vadd.f32 0.0, %v2410
      %v2412 = vpop.f32.mrb[0].mxu0
      %2413 = vdwg.mxu0
      %v2414 = vmul.f32 %v557, %v2096
      %v2415 = vadd.f32 %v2414, %v2411
      %v2416 = vsub.f32 %v2415, 1.0
      %v2417 = vsel %vm2097, %v2416, %v2415
      %vm2418 = vcmp.gt.f32.partialorder %v2417, 1.0
      %v2419 = vsel %vm2418, 1.0, 0.0
      %v2421 = vsel %vm651, %v2419, 0
      %2423 = vmatprep.subr.mxu0 0.0
      %2424 = vmatpush1.msra.mxu0 %v534
      %2425 = vmatprep.subr.mxu0 0.0
      %2426 = vmatpush1.msra.mxu0 %v535
      %2427 = vmatprep.subr.mxu0 0.0
      %2428 = vmatpush1.msra.mxu0 %v536
      %2429 = vmatprep.subr.mxu0 0.0
      %2430 = vmatpush1.msra.mxu0 %v537
      %2431 = vmatprep.subr.mxu0 0.0
      %2432 = vmatpush1.msra.mxu0 0.0
      %2433 = vmatprep.subr.mxu0 0.0
      %2434 = vmatpush1.msra.mxu0 0.0
      %2435 = vmatprep.subr.mxu0 0.0
      %2436 = vmatpush1.msra.mxu0 0.0
      %2437 = vmatprep.subr.mxu0 0.0
      %2438 = vmatpush1.msra.mxu0 0.0
      %2439 = vmatprep.subr.mxu0 0.0
      %2440 = vmatpush1.msra.mxu0 0.0
      %2441 = vmatprep.subr.mxu0 0.0
      %2442 = vmatpush1.msra.mxu0 0.0
      %2443 = vmatprep.subr.mxu0 0.0
      %2444 = vmatpush1.msra.mxu0 0.0
      %2445 = vmatprep.subr.mxu0 0.0
      %2446 = vmatpush1.msra.mxu0 0.0
      %2447 = vmatprep.subr.mxu0 0.0
      %2448 = vmatpush1.msra.mxu0 0.0
      %2449 = vmatprep.subr.mxu0 0.0
      %2450 = vmatpush1.msra.mxu0 0.0
      %2451 = vmatprep.subr.mxu0 0.0
      %2452 = vmatpush1.msra.mxu0 0.0
      %2453 = vmatprep.subr.mxu0 0.0
      %2454 = vmatpush1.msra.mxu0 0.0
      %2455 = vmatprep.subr.mxu0 0.0
      %2456 = vmatpush1.msra.mxu0 0.0
      %2457 = vmatprep.subr.mxu0 0.0
      %2458 = vmatpush1.msra.mxu0 0.0
      %2459 = vmatprep.subr.mxu0 0.0
      %2460 = vmatpush1.msra.mxu0 0.0
      %2461 = vmatprep.subr.mxu0 0.0
      %2462 = vmatpush1.msra.mxu0 0.0
      %2463 = vmatprep.subr.mxu0 0.0
      %2464 = vmatpush1.msra.mxu0 0.0
      %2465 = vmatprep.subr.mxu0 0.0
      %2466 = vmatpush1.msra.mxu0 0.0
      %2467 = vmatprep.subr.mxu0 0.0
      %2468 = vmatpush1.msra.mxu0 0.0
      %2469 = vmatprep.subr.mxu0 0.0
      %2470 = vmatpush1.msra.mxu0 0.0
      %2471 = vmatprep.subr.mxu0 0.0
      %2472 = vmatpush1.msra.mxu0 0.0
      %2473 = vmatprep.subr.mxu0 0.0
      %2474 = vmatpush1.msra.mxu0 0.0
      %2475 = vmatprep.subr.mxu0 0.0
      %2476 = vmatpush1.msra.mxu0 0.0
      %2477 = vmatprep.subr.mxu0 0.0
      %2478 = vmatpush1.msra.mxu0 0.0
      %2479 = vmatprep.subr.mxu0 0.0
      %2480 = vmatpush1.msra.mxu0 0.0
      %2481 = vmatprep.subr.mxu0 0.0
      %2482 = vmatpush1.msra.mxu0 0.0
      %2483 = vmatprep.subr.mxu0 0.0
      %2484 = vmatpush1.msra.mxu0 0.0
      %2485 = vmatprep.subr.mxu0 0.0
      %2486 = vmatpush1.msra.mxu0 0.0
      %2487 = vmatprep.mubr.f32.mxu0 0.0
      %2488 = vmatmul.mubr.f32.gmra.mrb[0].mxu0 %v2421
      %v2489 = vpop.f32.mrb[0].mxu0
      %v2490 = vadd.f32 0.0, %v2489
      %v2491 = vpop.f32.mrb[0].mxu0
      %2492 = vdwg.mxu0
      %v2493 = vmul.f32 %v564, %v2175
      %v2494 = vadd.f32 %v2493, %v2490
      %v2495 = vsub.f32 %v2494, 1.0
      %v2496 = vsel %vm2176, %v2495, %v2494
      %vm2497 = vcmp.gt.f32.partialorder %v2496, 1.0
      %v2498 = vsel %vm2497, 1.0, 0.0
      %2499 = vst.msk [vmem:[%s471 + $0xa] sm:$0x3] %vm892, %v2261
      %2500 = vst.msk [vmem:[%s477 + $0xa] sm:$0x3] %vm892, %v2340
      %2501 = vst.msk [vmem:[%s483 + $0xa] sm:$0x3] %vm892, %v2419
      %2502 = vst.msk [vmem:[%s489 + $0xa] sm:$0x3] %vm896, %v2498
      %2503 = vst.msk [vmem:[%s495 + $0xa] sm:$0x3] %vm896, %v2496
      %v2505 = vsel %vm570, %v522, 0
      %2507 = vmatprep.subr.mxu0 0.0
      %2508 = vmatpush1.msra.mxu0 %v524
      %2509 = vmatprep.subr.mxu0 0.0
      %2510 = vmatpush1.msra.mxu0 %v525
      %2511 = vmatprep.subr.mxu0 0.0
      %2512 = vmatpush1.msra.mxu0 0.0
      %2513 = vmatprep.subr.mxu0 0.0
      %2514 = vmatpush1.msra.mxu0 0.0
      %2515 = vmatprep.subr.mxu0 0.0
      %2516 = vmatpush1.msra.mxu0 0.0
      %2517 = vmatprep.subr.mxu0 0.0
      %2518 = vmatpush1.msra.mxu0 0.0
      %2519 = vmatprep.subr.mxu0 0.0
      %2520 = vmatpush1.msra.mxu0 0.0
      %2521 = vmatprep.subr.mxu0 0.0
      %2522 = vmatpush1.msra.mxu0 0.0
      %2523 = vmatprep.subr.mxu0 0.0
      %2524 = vmatpush1.msra.mxu0 0.0
      %2525 = vmatprep.subr.mxu0 0.0
      %2526 = vmatpush1.msra.mxu0 0.0
      %2527 = vmatprep.subr.mxu0 0.0
      %2528 = vmatpush1.msra.mxu0 0.0
      %2529 = vmatprep.subr.mxu0 0.0
      %2530 = vmatpush1.msra.mxu0 0.0
      %2531 = vmatprep.subr.mxu0 0.0
      %2532 = vmatpush1.msra.mxu0 0.0
      %2533 = vmatprep.subr.mxu0 0.0
      %2534 = vmatpush1.msra.mxu0 0.0
      %2535 = vmatprep.subr.mxu0 0.0
      %2536 = vmatpush1.msra.mxu0 0.0
      %2537 = vmatprep.subr.mxu0 0.0
      %2538 = vmatpush1.msra.mxu0 0.0
      %2539 = vmatprep.subr.mxu0 0.0
      %2540 = vmatpush1.msra.mxu0 0.0
      %2541 = vmatprep.subr.mxu0 0.0
      %2542 = vmatpush1.msra.mxu0 0.0
      %2543 = vmatprep.subr.mxu0 0.0
      %2544 = vmatpush1.msra.mxu0 0.0
      %2545 = vmatprep.subr.mxu0 0.0
      %2546 = vmatpush1.msra.mxu0 0.0
      %2547 = vmatprep.subr.mxu0 0.0
      %2548 = vmatpush1.msra.mxu0 0.0
      %2549 = vmatprep.subr.mxu0 0.0
      %2550 = vmatpush1.msra.mxu0 0.0
      %2551 = vmatprep.subr.mxu0 0.0
      %2552 = vmatpush1.msra.mxu0 0.0
      %2553 = vmatprep.subr.mxu0 0.0
      %2554 = vmatpush1.msra.mxu0 0.0
      %2555 = vmatprep.subr.mxu0 0.0
      %2556 = vmatpush1.msra.mxu0 0.0
      %2557 = vmatprep.subr.mxu0 0.0
      %2558 = vmatpush1.msra.mxu0 0.0
      %2559 = vmatprep.subr.mxu0 0.0
      %2560 = vmatpush1.msra.mxu0 0.0
      %2561 = vmatprep.subr.mxu0 0.0
      %2562 = vmatpush1.msra.mxu0 0.0
      %2563 = vmatprep.subr.mxu0 0.0
      %2564 = vmatpush1.msra.mxu0 0.0
      %2565 = vmatprep.subr.mxu0 0.0
      %2566 = vmatpush1.msra.mxu0 0.0
      %2567 = vmatprep.subr.mxu0 0.0
      %2568 = vmatpush1.msra.mxu0 0.0
      %2569 = vmatprep.subr.mxu0 0.0
      %2570 = vmatpush1.msra.mxu0 0.0
      %2571 = vmatprep.mubr.f32.mxu0 0.0
      %2572 = vmatmul.mubr.f32.gmra.mrb[0].mxu0 %v2505
      %v2573 = vpop.f32.mrb[0].mxu0
      %v2574 = vadd.f32 0.0, %v2573
      %v2575 = vpop.f32.mrb[0].mxu0
      %2576 = vdwg.mxu0
      %v2577 = vmul.f32 %v543, %v2259
      %v2578 = vadd.f32 %v2577, %v2574
      %v2579 = vsub.f32 %v2578, 1.0
      %v2580 = vsel %vm2260, %v2579, %v2578
      %vm2581 = vcmp.gt.f32.partialorder %v2580, 1.0
      %v2582 = vsel %vm2581, 1.0, 0.0
      %v2584 = vsel %vm651, %v2582, 0
      %2586 = vmatprep.subr.mxu0 0.0
      %2587 = vmatpush1.msra.mxu0 %v526
      %2588 = vmatprep.subr.mxu0 0.0
      %2589 = vmatpush1.msra.mxu0 %v527
      %2590 = vmatprep.subr.mxu0 0.0
      %2591 = vmatpush1.msra.mxu0 %v528
      %2592 = vmatprep.subr.mxu0 0.0
      %2593 = vmatpush1.msra.mxu0 %v529
      %2594 = vmatprep.subr.mxu0 0.0
      %2595 = vmatpush1.msra.mxu0 0.0
      %2596 = vmatprep.subr.mxu0 0.0
      %2597 = vmatpush1.msra.mxu0 0.0
      %2598 = vmatprep.subr.mxu0 0.0
      %2599 = vmatpush1.msra.mxu0 0.0
      %2600 = vmatprep.subr.mxu0 0.0
      %2601 = vmatpush1.msra.mxu0 0.0
      %2602 = vmatprep.subr.mxu0 0.0
      %2603 = vmatpush1.msra.mxu0 0.0
      %2604 = vmatprep.subr.mxu0 0.0
      %2605 = vmatpush1.msra.mxu0 0.0
      %2606 = vmatprep.subr.mxu0 0.0
      %2607 = vmatpush1.msra.mxu0 0.0
      %2608 = vmatprep.subr.mxu0 0.0
      %2609 = vmatpush1.msra.mxu0 0.0
      %2610 = vmatprep.subr.mxu0 0.0
      %2611 = vmatpush1.msra.mxu0 0.0
      %2612 = vmatprep.subr.mxu0 0.0
      %2613 = vmatpush1.msra.mxu0 0.0
      %2614 = vmatprep.subr.mxu0 0.0
      %2615 = vmatpush1.msra.mxu0 0.0
      %2616 = vmatprep.subr.mxu0 0.0
      %2617 = vmatpush1.msra.mxu0 0.0
      %2618 = vmatprep.subr.mxu0 0.0
      %2619 = vmatpush1.msra.mxu0 0.0
      %2620 = vmatprep.subr.mxu0 0.0
      %2621 = vmatpush1.msra.mxu0 0.0
      %2622 = vmatprep.subr.mxu0 0.0
      %2623 = vmatpush1.msra.mxu0 0.0
      %2624 = vmatprep.subr.mxu0 0.0
      %2625 = vmatpush1.msra.mxu0 0.0
      %2626 = vmatprep.subr.mxu0 0.0
      %2627 = vmatpush1.msra.mxu0 0.0
      %2628 = vmatprep.subr.mxu0 0.0
      %2629 = vmatpush1.msra.mxu0 0.0
      %2630 = vmatprep.subr.mxu0 0.0
      %2631 = vmatpush1.msra.mxu0 0.0
      %2632 = vmatprep.subr.mxu0 0.0
      %2633 = vmatpush1.msra.mxu0 0.0
      %2634 = vmatprep.subr.mxu0 0.0
      %2635 = vmatpush1.msra.mxu0 0.0
      %2636 = vmatprep.subr.mxu0 0.0
      %2637 = vmatpush1.msra.mxu0 0.0
      %2638 = vmatprep.subr.mxu0 0.0
      %2639 = vmatpush1.msra.mxu0 0.0
      %2640 = vmatprep.subr.mxu0 0.0
      %2641 = vmatpush1.msra.mxu0 0.0
      %2642 = vmatprep.subr.mxu0 0.0
      %2643 = vmatpush1.msra.mxu0 0.0
      %2644 = vmatprep.subr.mxu0 0.0
      %2645 = vmatpush1.msra.mxu0 0.0
      %2646 = vmatprep.subr.mxu0 0.0
      %2647 = vmatpush1.msra.mxu0 0.0
      %2648 = vmatprep.subr.mxu0 0.0
      %2649 = vmatpush1.msra.mxu0 0.0
      %2650 = vmatprep.mubr.f32.mxu0 0.0
      %2651 = vmatmul.mubr.f32.gmra.mrb[0].mxu0 %v2584
      %v2652 = vpop.f32.mrb[0].mxu0
      %v2653 = vadd.f32 0.0, %v2652
      %v2654 = vpop.f32.mrb[0].mxu0
      %2655 = vdwg.mxu0
      %v2656 = vmul.f32 %v550, %v2338
      %v2657 = vadd.f32 %v2656, %v2653
      %v2658 = vsub.f32 %v2657, 1.0
      %v2659 = vsel %vm2339, %v2658, %v2657
      %vm2660 = vcmp.gt.f32.partialorder %v2659, 1.0
      %v2661 = vsel %vm2660, 1.0, 0.0
      %v2663 = vsel %vm651, %v2661, 0
      %2665 = vmatprep.subr.mxu0 0.0
      %2666 = vmatpush1.msra.mxu0 %v530
      %2667 = vmatprep.subr.mxu0 0.0
      %2668 = vmatpush1.msra.mxu0 %v531
      %2669 = vmatprep.subr.mxu0 0.0
      %2670 = vmatpush1.msra.mxu0 %v532
      %2671 = vmatprep.subr.mxu0 0.0
      %2672 = vmatpush1.msra.mxu0 %v533
      %2673 = vmatprep.subr.mxu0 0.0
      %2674 = vmatpush1.msra.mxu0 0.0
      %2675 = vmatprep.subr.mxu0 0.0
      %2676 = vmatpush1.msra.mxu0 0.0
      %2677 = vmatprep.subr.mxu0 0.0
      %2678 = vmatpush1.msra.mxu0 0.0
      %2679 = vmatprep.subr.mxu0 0.0
      %2680 = vmatpush1.msra.mxu0 0.0
      %2681 = vmatprep.subr.mxu0 0.0
      %2682 = vmatpush1.msra.mxu0 0.0
      %2683 = vmatprep.subr.mxu0 0.0
      %2684 = vmatpush1.msra.mxu0 0.0
      %2685 = vmatprep.subr.mxu0 0.0
      %2686 = vmatpush1.msra.mxu0 0.0
      %2687 = vmatprep.subr.mxu0 0.0
      %2688 = vmatpush1.msra.mxu0 0.0
      %2689 = vmatprep.subr.mxu0 0.0
      %2690 = vmatpush1.msra.mxu0 0.0
      %2691 = vmatprep.subr.mxu0 0.0
      %2692 = vmatpush1.msra.mxu0 0.0
      %2693 = vmatprep.subr.mxu0 0.0
      %2694 = vmatpush1.msra.mxu0 0.0
      %2695 = vmatprep.subr.mxu0 0.0
      %2696 = vmatpush1.msra.mxu0 0.0
      %2697 = vmatprep.subr.mxu0 0.0
      %2698 = vmatpush1.msra.mxu0 0.0
      %2699 = vmatprep.subr.mxu0 0.0
      %2700 = vmatpush1.msra.mxu0 0.0
      %2701 = vmatprep.subr.mxu0 0.0
      %2702 = vmatpush1.msra.mxu0 0.0
      %2703 = vmatprep.subr.mxu0 0.0
      %2704 = vmatpush1.msra.mxu0 0.0
      %2705 = vmatprep.subr.mxu0 0.0
      %2706 = vmatpush1.msra.mxu0 0.0
      %2707 = vmatprep.subr.mxu0 0.0
      %2708 = vmatpush1.msra.mxu0 0.0
      %2709 = vmatprep.subr.mxu0 0.0
      %2710 = vmatpush1.msra.mxu0 0.0
      %2711 = vmatprep.subr.mxu0 0.0
      %2712 = vmatpush1.msra.mxu0 0.0
      %2713 = vmatprep.subr.mxu0 0.0
      %2714 = vmatpush1.msra.mxu0 0.0
      %2715 = vmatprep.subr.mxu0 0.0
      %2716 = vmatpush1.msra.mxu0 0.0
      %2717 = vmatprep.subr.mxu0 0.0
      %2718 = vmatpush1.msra.mxu0 0.0
      %2719 = vmatprep.subr.mxu0 0.0
      %2720 = vmatpush1.msra.mxu0 0.0
      %2721 = vmatprep.subr.mxu0 0.0
      %2722 = vmatpush1.msra.mxu0 0.0
      %2723 = vmatprep.subr.mxu0 0.0
      %2724 = vmatpush1.msra.mxu0 0.0
      %2725 = vmatprep.subr.mxu0 0.0
      %2726 = vmatpush1.msra.mxu0 0.0
      %2727 = vmatprep.subr.mxu0 0.0
      %2728 = vmatpush1.msra.mxu0 0.0
      %2729 = vmatprep.mubr.f32.mxu0 0.0
      %2730 = vmatmul.mubr.f32.gmra.mrb[0].mxu0 %v2663
      %v2731 = vpop.f32.mrb[0].mxu0
      %v2732 = vadd.f32 0.0, %v2731
      %v2733 = vpop.f32.mrb[0].mxu0
      %2734 = vdwg.mxu0
      %v2735 = vmul.f32 %v557, %v2417
      %v2736 = vadd.f32 %v2735, %v2732
      %v2737 = vsub.f32 %v2736, 1.0
      %v2738 = vsel %vm2418, %v2737, %v2736
      %vm2739 = vcmp.gt.f32.partialorder %v2738, 1.0
      %v2740 = vsel %vm2739, 1.0, 0.0
      %v2742 = vsel %vm651, %v2740, 0
      %2744 = vmatprep.subr.mxu0 0.0
      %2745 = vmatpush1.msra.mxu0 %v534
      %2746 = vmatprep.subr.mxu0 0.0
      %2747 = vmatpush1.msra.mxu0 %v535
      %2748 = vmatprep.subr.mxu0 0.0
      %2749 = vmatpush1.msra.mxu0 %v536
      %2750 = vmatprep.subr.mxu0 0.0
      %2751 = vmatpush1.msra.mxu0 %v537
      %2752 = vmatprep.subr.mxu0 0.0
      %2753 = vmatpush1.msra.mxu0 0.0
      %2754 = vmatprep.subr.mxu0 0.0
      %2755 = vmatpush1.msra.mxu0 0.0
      %2756 = vmatprep.subr.mxu0 0.0
      %2757 = vmatpush1.msra.mxu0 0.0
      %2758 = vmatprep.subr.mxu0 0.0
      %2759 = vmatpush1.msra.mxu0 0.0
      %2760 = vmatprep.subr.mxu0 0.0
      %2761 = vmatpush1.msra.mxu0 0.0
      %2762 = vmatprep.subr.mxu0 0.0
      %2763 = vmatpush1.msra.mxu0 0.0
      %2764 = vmatprep.subr.mxu0 0.0
      %2765 = vmatpush1.msra.mxu0 0.0
      %2766 = vmatprep.subr.mxu0 0.0
      %2767 = vmatpush1.msra.mxu0 0.0
      %2768 = vmatprep.subr.mxu0 0.0
      %2769 = vmatpush1.msra.mxu0 0.0
      %2770 = vmatprep.subr.mxu0 0.0
      %2771 = vmatpush1.msra.mxu0 0.0
      %2772 = vmatprep.subr.mxu0 0.0
      %2773 = vmatpush1.msra.mxu0 0.0
      %2774 = vmatprep.subr.mxu0 0.0
      %2775 = vmatpush1.msra.mxu0 0.0
      %2776 = vmatprep.subr.mxu0 0.0
      %2777 = vmatpush1.msra.mxu0 0.0
      %2778 = vmatprep.subr.mxu0 0.0
      %2779 = vmatpush1.msra.mxu0 0.0
      %2780 = vmatprep.subr.mxu0 0.0
      %2781 = vmatpush1.msra.mxu0 0.0
      %2782 = vmatprep.subr.mxu0 0.0
      %2783 = vmatpush1.msra.mxu0 0.0
      %2784 = vmatprep.subr.mxu0 0.0
      %2785 = vmatpush1.msra.mxu0 0.0
      %2786 = vmatprep.subr.mxu0 0.0
      %2787 = vmatpush1.msra.mxu0 0.0
      %2788 = vmatprep.subr.mxu0 0.0
      %2789 = vmatpush1.msra.mxu0 0.0
      %2790 = vmatprep.subr.mxu0 0.0
      %2791 = vmatpush1.msra.mxu0 0.0
      %2792 = vmatprep.subr.mxu0 0.0
      %2793 = vmatpush1.msra.mxu0 0.0
      %2794 = vmatprep.subr.mxu0 0.0
      %2795 = vmatpush1.msra.mxu0 0.0
      %2796 = vmatprep.subr.mxu0 0.0
      %2797 = vmatpush1.msra.mxu0 0.0
      %2798 = vmatprep.subr.mxu0 0.0
      %2799 = vmatpush1.msra.mxu0 0.0
      %2800 = vmatprep.subr.mxu0 0.0
      %2801 = vmatpush1.msra.mxu0 0.0
      %2802 = vmatprep.subr.mxu0 0.0
      %2803 = vmatpush1.msra.mxu0 0.0
      %2804 = vmatprep.subr.mxu0 0.0
      %2805 = vmatpush1.msra.mxu0 0.0
      %2806 = vmatprep.subr.mxu0 0.0
      %2807 = vmatpush1.msra.mxu0 0.0
      %2808 = vmatprep.mubr.f32.mxu0 0.0
      %2809 = vmatmul.mubr.f32.gmra.mrb[0].mxu0 %v2742
      %v2810 = vpop.f32.mrb[0].mxu0
      %v2811 = vadd.f32 0.0, %v2810
      %v2812 = vpop.f32.mrb[0].mxu0
      %2813 = vdwg.mxu0
      %v2814 = vmul.f32 %v564, %v2496
      %v2815 = vadd.f32 %v2814, %v2811
      %v2816 = vsub.f32 %v2815, 1.0
      %v2817 = vsel %vm2497, %v2816, %v2815
      %vm2818 = vcmp.gt.f32.partialorder %v2817, 1.0
      %v2819 = vsel %vm2818, 1.0, 0.0
      %2820 = vst.msk [vmem:[%s471 + $0xc] sm:$0x3] %vm892, %v2582
      %2821 = vst.msk [vmem:[%s477 + $0xc] sm:$0x3] %vm892, %v2661
      %2822 = vst.msk [vmem:[%s483 + $0xc] sm:$0x3] %vm892, %v2740
      %2823 = vst.msk [vmem:[%s489 + $0xc] sm:$0x3] %vm896, %v2819
      %2824 = vst.msk [vmem:[%s495 + $0xc] sm:$0x3] %vm896, %v2817
      %v2826 = vsel %vm570, %v523, 0
      %2828 = vmatprep.subr.mxu0 0.0
      %2829 = vmatpush1.msra.mxu0 %v524
      %2830 = vmatprep.subr.mxu0 0.0
      %2831 = vmatpush1.msra.mxu0 %v525
      %2832 = vmatprep.subr.mxu0 0.0
      %2833 = vmatpush1.msra.mxu0 0.0
      %2834 = vmatprep.subr.mxu0 0.0
      %2835 = vmatpush1.msra.mxu0 0.0
      %2836 = vmatprep.subr.mxu0 0.0
      %2837 = vmatpush1.msra.mxu0 0.0
      %2838 = vmatprep.subr.mxu0 0.0
      %2839 = vmatpush1.msra.mxu0 0.0
      %2840 = vmatprep.subr.mxu0 0.0
      %2841 = vmatpush1.msra.mxu0 0.0
      %2842 = vmatprep.subr.mxu0 0.0
      %2843 = vmatpush1.msra.mxu0 0.0
      %2844 = vmatprep.subr.mxu0 0.0
      %2845 = vmatpush1.msra.mxu0 0.0
      %2846 = vmatprep.subr.mxu0 0.0
      %2847 = vmatpush1.msra.mxu0 0.0
      %2848 = vmatprep.subr.mxu0 0.0
      %2849 = vmatpush1.msra.mxu0 0.0
      %2850 = vmatprep.subr.mxu0 0.0
      %2851 = vmatpush1.msra.mxu0 0.0
      %2852 = vmatprep.subr.mxu0 0.0
      %2853 = vmatpush1.msra.mxu0 0.0
      %2854 = vmatprep.subr.mxu0 0.0
      %2855 = vmatpush1.msra.mxu0 0.0
      %2856 = vmatprep.subr.mxu0 0.0
      %2857 = vmatpush1.msra.mxu0 0.0
      %2858 = vmatprep.subr.mxu0 0.0
      %2859 = vmatpush1.msra.mxu0 0.0
      %2860 = vmatprep.subr.mxu0 0.0
      %2861 = vmatpush1.msra.mxu0 0.0
      %2862 = vmatprep.subr.mxu0 0.0
      %2863 = vmatpush1.msra.mxu0 0.0
      %2864 = vmatprep.subr.mxu0 0.0
      %2865 = vmatpush1.msra.mxu0 0.0
      %2866 = vmatprep.subr.mxu0 0.0
      %2867 = vmatpush1.msra.mxu0 0.0
      %2868 = vmatprep.subr.mxu0 0.0
      %2869 = vmatpush1.msra.mxu0 0.0
      %2870 = vmatprep.subr.mxu0 0.0
      %2871 = vmatpush1.msra.mxu0 0.0
      %2872 = vmatprep.subr.mxu0 0.0
      %2873 = vmatpush1.msra.mxu0 0.0
      %2874 = vmatprep.subr.mxu0 0.0
      %2875 = vmatpush1.msra.mxu0 0.0
      %2876 = vmatprep.subr.mxu0 0.0
      %2877 = vmatpush1.msra.mxu0 0.0
      %2878 = vmatprep.subr.mxu0 0.0
      %2879 = vmatpush1.msra.mxu0 0.0
      %2880 = vmatprep.subr.mxu0 0.0
      %2881 = vmatpush1.msra.mxu0 0.0
      %2882 = vmatprep.subr.mxu0 0.0
      %2883 = vmatpush1.msra.mxu0 0.0
      %2884 = vmatprep.subr.mxu0 0.0
      %2885 = vmatpush1.msra.mxu0 0.0
      %2886 = vmatprep.subr.mxu0 0.0
      %2887 = vmatpush1.msra.mxu0 0.0
      %2888 = vmatprep.subr.mxu0 0.0
      %2889 = vmatpush1.msra.mxu0 0.0
      %2890 = vmatprep.subr.mxu0 0.0
      %2891 = vmatpush1.msra.mxu0 0.0
      %2892 = vmatprep.mubr.f32.mxu0 0.0
      %2893 = vmatmul.mubr.f32.gmra.mrb[0].mxu0 %v2826
      %v2894 = vpop.f32.mrb[0].mxu0
      %v2895 = vadd.f32 0.0, %v2894
      %v2896 = vpop.f32.mrb[0].mxu0
      %2897 = vdwg.mxu0
      %v2898 = vmul.f32 %v543, %v2580
      %v2899 = vadd.f32 %v2898, %v2895
      %v2900 = vsub.f32 %v2899, 1.0
      %v2901 = vsel %vm2581, %v2900, %v2899
      %vm2902 = vcmp.gt.f32.partialorder %v2901, 1.0
      %v2903 = vsel %vm2902, 1.0, 0.0
      %v2905 = vsel %vm651, %v2903, 0
      %2907 = vmatprep.subr.mxu0 0.0
      %2908 = vmatpush1.msra.mxu0 %v526
      %2909 = vmatprep.subr.mxu0 0.0
      %2910 = vmatpush1.msra.mxu0 %v527
      %2911 = vmatprep.subr.mxu0 0.0
      %2912 = vmatpush1.msra.mxu0 %v528
      %2913 = vmatprep.subr.mxu0 0.0
      %2914 = vmatpush1.msra.mxu0 %v529
      %2915 = vmatprep.subr.mxu0 0.0
      %2916 = vmatpush1.msra.mxu0 0.0
      %2917 = vmatprep.subr.mxu0 0.0
      %2918 = vmatpush1.msra.mxu0 0.0
      %2919 = vmatprep.subr.mxu0 0.0
      %2920 = vmatpush1.msra.mxu0 0.0
      %2921 = vmatprep.subr.mxu0 0.0
      %2922 = vmatpush1.msra.mxu0 0.0
      %2923 = vmatprep.subr.mxu0 0.0
      %2924 = vmatpush1.msra.mxu0 0.0
      %2925 = vmatprep.subr.mxu0 0.0
      %2926 = vmatpush1.msra.mxu0 0.0
      %2927 = vmatprep.subr.mxu0 0.0
      %2928 = vmatpush1.msra.mxu0 0.0
      %2929 = vmatprep.subr.mxu0 0.0
      %2930 = vmatpush1.msra.mxu0 0.0
      %2931 = vmatprep.subr.mxu0 0.0
      %2932 = vmatpush1.msra.mxu0 0.0
      %2933 = vmatprep.subr.mxu0 0.0
      %2934 = vmatpush1.msra.mxu0 0.0
      %2935 = vmatprep.subr.mxu0 0.0
      %2936 = vmatpush1.msra.mxu0 0.0
      %2937 = vmatprep.subr.mxu0 0.0
      %2938 = vmatpush1.msra.mxu0 0.0
      %2939 = vmatprep.subr.mxu0 0.0
      %2940 = vmatpush1.msra.mxu0 0.0
      %2941 = vmatprep.subr.mxu0 0.0
      %2942 = vmatpush1.msra.mxu0 0.0
      %2943 = vmatprep.subr.mxu0 0.0
      %2944 = vmatpush1.msra.mxu0 0.0
      %2945 = vmatprep.subr.mxu0 0.0
      %2946 = vmatpush1.msra.mxu0 0.0
      %2947 = vmatprep.subr.mxu0 0.0
      %2948 = vmatpush1.msra.mxu0 0.0
      %2949 = vmatprep.subr.mxu0 0.0
      %2950 = vmatpush1.msra.mxu0 0.0
      %2951 = vmatprep.subr.mxu0 0.0
      %2952 = vmatpush1.msra.mxu0 0.0
      %2953 = vmatprep.subr.mxu0 0.0
      %2954 = vmatpush1.msra.mxu0 0.0
      %2955 = vmatprep.subr.mxu0 0.0
      %2956 = vmatpush1.msra.mxu0 0.0
      %2957 = vmatprep.subr.mxu0 0.0
      %2958 = vmatpush1.msra.mxu0 0.0
      %2959 = vmatprep.subr.mxu0 0.0
      %2960 = vmatpush1.msra.mxu0 0.0
      %2961 = vmatprep.subr.mxu0 0.0
      %2962 = vmatpush1.msra.mxu0 0.0
      %2963 = vmatprep.subr.mxu0 0.0
      %2964 = vmatpush1.msra.mxu0 0.0
      %2965 = vmatprep.subr.mxu0 0.0
      %2966 = vmatpush1.msra.mxu0 0.0
      %2967 = vmatprep.subr.mxu0 0.0
      %2968 = vmatpush1.msra.mxu0 0.0
      %2969 = vmatprep.subr.mxu0 0.0
      %2970 = vmatpush1.msra.mxu0 0.0
      %2971 = vmatprep.mubr.f32.mxu0 0.0
      %2972 = vmatmul.mubr.f32.gmra.mrb[0].mxu0 %v2905
      %v2973 = vpop.f32.mrb[0].mxu0
      %v2974 = vadd.f32 0.0, %v2973
      %v2975 = vpop.f32.mrb[0].mxu0
      %2976 = vdwg.mxu0
      %v2977 = vmul.f32 %v550, %v2659
      %v2978 = vadd.f32 %v2977, %v2974
      %v2979 = vsub.f32 %v2978, 1.0
      %v2980 = vsel %vm2660, %v2979, %v2978
      %vm2981 = vcmp.gt.f32.partialorder %v2980, 1.0
      %v2982 = vsel %vm2981, 1.0, 0.0
      %v2984 = vsel %vm651, %v2982, 0
      %2986 = vmatprep.subr.mxu0 0.0
      %2987 = vmatpush1.msra.mxu0 %v530
      %2988 = vmatprep.subr.mxu0 0.0
      %2989 = vmatpush1.msra.mxu0 %v531
      %2990 = vmatprep.subr.mxu0 0.0
      %2991 = vmatpush1.msra.mxu0 %v532
      %2992 = vmatprep.subr.mxu0 0.0
      %2993 = vmatpush1.msra.mxu0 %v533
      %2994 = vmatprep.subr.mxu0 0.0
      %2995 = vmatpush1.msra.mxu0 0.0
      %2996 = vmatprep.subr.mxu0 0.0
      %2997 = vmatpush1.msra.mxu0 0.0
      %2998 = vmatprep.subr.mxu0 0.0
      %2999 = vmatpush1.msra.mxu0 0.0
      %3000 = vmatprep.subr.mxu0 0.0
      %3001 = vmatpush1.msra.mxu0 0.0
      %3002 = vmatprep.subr.mxu0 0.0
      %3003 = vmatpush1.msra.mxu0 0.0
      %3004 = vmatprep.subr.mxu0 0.0
      %3005 = vmatpush1.msra.mxu0 0.0
      %3006 = vmatprep.subr.mxu0 0.0
      %3007 = vmatpush1.msra.mxu0 0.0
      %3008 = vmatprep.subr.mxu0 0.0
      %3009 = vmatpush1.msra.mxu0 0.0
      %3010 = vmatprep.subr.mxu0 0.0
      %3011 = vmatpush1.msra.mxu0 0.0
      %3012 = vmatprep.subr.mxu0 0.0
      %3013 = vmatpush1.msra.mxu0 0.0
      %3014 = vmatprep.subr.mxu0 0.0
      %3015 = vmatpush1.msra.mxu0 0.0
      %3016 = vmatprep.subr.mxu0 0.0
      %3017 = vmatpush1.msra.mxu0 0.0
      %3018 = vmatprep.subr.mxu0 0.0
      %3019 = vmatpush1.msra.mxu0 0.0
      %3020 = vmatprep.subr.mxu0 0.0
      %3021 = vmatpush1.msra.mxu0 0.0
      %3022 = vmatprep.subr.mxu0 0.0
      %3023 = vmatpush1.msra.mxu0 0.0
      %3024 = vmatprep.subr.mxu0 0.0
      %3025 = vmatpush1.msra.mxu0 0.0
      %3026 = vmatprep.subr.mxu0 0.0
      %3027 = vmatpush1.msra.mxu0 0.0
      %3028 = vmatprep.subr.mxu0 0.0
      %3029 = vmatpush1.msra.mxu0 0.0
      %3030 = vmatprep.subr.mxu0 0.0
      %3031 = vmatpush1.msra.mxu0 0.0
      %3032 = vmatprep.subr.mxu0 0.0
      %3033 = vmatpush1.msra.mxu0 0.0
      %3034 = vmatprep.subr.mxu0 0.0
      %3035 = vmatpush1.msra.mxu0 0.0
      %3036 = vmatprep.subr.mxu0 0.0
      %3037 = vmatpush1.msra.mxu0 0.0
      %3038 = vmatprep.subr.mxu0 0.0
      %3039 = vmatpush1.msra.mxu0 0.0
      %3040 = vmatprep.subr.mxu0 0.0
      %3041 = vmatpush1.msra.mxu0 0.0
      %3042 = vmatprep.subr.mxu0 0.0
      %3043 = vmatpush1.msra.mxu0 0.0
      %3044 = vmatprep.subr.mxu0 0.0
      %3045 = vmatpush1.msra.mxu0 0.0
      %3046 = vmatprep.subr.mxu0 0.0
      %3047 = vmatpush1.msra.mxu0 0.0
      %3048 = vmatprep.subr.mxu0 0.0
      %3049 = vmatpush1.msra.mxu0 0.0
      %3050 = vmatprep.mubr.f32.mxu0 0.0
      %3051 = vmatmul.mubr.f32.gmra.mrb[0].mxu0 %v2984
      %v3052 = vpop.f32.mrb[0].mxu0
      %v3053 = vadd.f32 0.0, %v3052
      %v3054 = vpop.f32.mrb[0].mxu0
      %3055 = vdwg.mxu0
      %v3056 = vmul.f32 %v557, %v2738
      %v3057 = vadd.f32 %v3056, %v3053
      %v3058 = vsub.f32 %v3057, 1.0
      %v3059 = vsel %vm2739, %v3058, %v3057
      %vm3060 = vcmp.gt.f32.partialorder %v3059, 1.0
      %v3061 = vsel %vm3060, 1.0, 0.0
      %v3063 = vsel %vm651, %v3061, 0
      %3065 = vmatprep.subr.mxu0 0.0
      %3066 = vmatpush1.msra.mxu0 %v534
      %3067 = vmatprep.subr.mxu0 0.0
      %3068 = vmatpush1.msra.mxu0 %v535
      %3069 = vmatprep.subr.mxu0 0.0
      %3070 = vmatpush1.msra.mxu0 %v536
      %3071 = vmatprep.subr.mxu0 0.0
      %3072 = vmatpush1.msra.mxu0 %v537
      %3073 = vmatprep.subr.mxu0 0.0
      %3074 = vmatpush1.msra.mxu0 0.0
      %3075 = vmatprep.subr.mxu0 0.0
      %3076 = vmatpush1.msra.mxu0 0.0
      %3077 = vmatprep.subr.mxu0 0.0
      %3078 = vmatpush1.msra.mxu0 0.0
      %3079 = vmatprep.subr.mxu0 0.0
      %3080 = vmatpush1.msra.mxu0 0.0
      %3081 = vmatprep.subr.mxu0 0.0
      %3082 = vmatpush1.msra.mxu0 0.0
      %3083 = vmatprep.subr.mxu0 0.0
      %3084 = vmatpush1.msra.mxu0 0.0
      %3085 = vmatprep.subr.mxu0 0.0
      %3086 = vmatpush1.msra.mxu0 0.0
      %3087 = vmatprep.subr.mxu0 0.0
      %3088 = vmatpush1.msra.mxu0 0.0
      %3089 = vmatprep.subr.mxu0 0.0
      %3090 = vmatpush1.msra.mxu0 0.0
      %3091 = vmatprep.subr.mxu0 0.0
      %3092 = vmatpush1.msra.mxu0 0.0
      %3093 = vmatprep.subr.mxu0 0.0
      %3094 = vmatpush1.msra.mxu0 0.0
      %3095 = vmatprep.subr.mxu0 0.0
      %3096 = vmatpush1.msra.mxu0 0.0
      %3097 = vmatprep.subr.mxu0 0.0
      %3098 = vmatpush1.msra.mxu0 0.0
      %3099 = vmatprep.subr.mxu0 0.0
      %3100 = vmatpush1.msra.mxu0 0.0
      %3101 = vmatprep.subr.mxu0 0.0
      %3102 = vmatpush1.msra.mxu0 0.0
      %3103 = vmatprep.subr.mxu0 0.0
      %3104 = vmatpush1.msra.mxu0 0.0
      %3105 = vmatprep.subr.mxu0 0.0
      %3106 = vmatpush1.msra.mxu0 0.0
      %3107 = vmatprep.subr.mxu0 0.0
      %3108 = vmatpush1.msra.mxu0 0.0
      %3109 = vmatprep.subr.mxu0 0.0
      %3110 = vmatpush1.msra.mxu0 0.0
      %3111 = vmatprep.subr.mxu0 0.0
      %3112 = vmatpush1.msra.mxu0 0.0
      %3113 = vmatprep.subr.mxu0 0.0
      %3114 = vmatpush1.msra.mxu0 0.0
      %3115 = vmatprep.subr.mxu0 0.0
      %3116 = vmatpush1.msra.mxu0 0.0
      %3117 = vmatprep.subr.mxu0 0.0
      %3118 = vmatpush1.msra.mxu0 0.0
      %3119 = vmatprep.subr.mxu0 0.0
      %3120 = vmatpush1.msra.mxu0 0.0
      %3121 = vmatprep.subr.mxu0 0.0
      %3122 = vmatpush1.msra.mxu0 0.0
      %3123 = vmatprep.subr.mxu0 0.0
      %3124 = vmatpush1.msra.mxu0 0.0
      %3125 = vmatprep.subr.mxu0 0.0
      %3126 = vmatpush1.msra.mxu0 0.0
      %3127 = vmatprep.subr.mxu0 0.0
      %3128 = vmatpush1.msra.mxu0 0.0
      %3129 = vmatprep.mubr.f32.mxu0 0.0
      %3130 = vmatmul.mubr.f32.gmra.mrb[0].mxu0 %v3063
      %v3131 = vpop.f32.mrb[0].mxu0
      %v3132 = vadd.f32 0.0, %v3131
      %v3133 = vpop.f32.mrb[0].mxu0
      %3134 = vdwg.mxu0
      %v3135 = vmul.f32 %v564, %v2817
      %v3136 = vadd.f32 %v3135, %v3132
      %v3137 = vsub.f32 %v3136, 1.0
      %v3138 = vsel %vm2818, %v3137, %v3136
      %vm3139 = vcmp.gt.f32.partialorder %v3138, 1.0
      %v3140 = vsel %vm3139, 1.0, 0.0
      %3141 = vst.msk [vmem:[%s471 + $0xe] sm:$0x3] %vm892, %v2903
      %3142 = vst.msk [vmem:[%s477 + $0xe] sm:$0x3] %vm892, %v2982
      %3143 = vst.msk [vmem:[%s483 + $0xe] sm:$0x3] %vm892, %v3061
      %3144 = vst.msk [vmem:[%s489 + $0xe] sm:$0x3] %vm896, %v3140
      %3145 = vst.msk [vmem:[%s495 + $0xe] sm:$0x3] %vm896, %v3138
      %3146 = vst.msk [vmem:[#allocation2] sm:$0x3] %vm892, %v2901
      %3147 = vst.msk [vmem:[#allocation3] sm:$0x3] %vm892, %v2980
      %3148 = vst.msk [vmem:[#allocation4] sm:$0x3] %vm892, %v3059
      %3149 = vst.msk [vmem:[#allocation5] sm:$0x3] %vm896, %v3138
      %s3150 = smul.u32 2, %s25
      %p3151 = scmp.lt.s32.totalorder %s3150, 9
      %s3152 = scalar_select %p3151, %s3150, 9
      %s3153 = smul.addr %s3152, 8
      %s3154 = scalar_lea.vmem %s9, %s3153
      %s3155 = smul.u32 2, %s25
      %p3156 = scmp.lt.s32.totalorder %s3155, 9
      %s3157 = scalar_select %p3156, %s3155, 9
      %s3158 = smul.addr %s3157, 8
      %s3159 = scalar_lea.vmem %s10, %s3158
      %s3160 = smul.u32 2, %s25
      %p3161 = scmp.lt.s32.totalorder %s3160, 9
      %s3162 = scalar_select %p3161, %s3160, 9
      %s3163 = smul.addr %s3162, 8
      %s3164 = scalar_lea.vmem %s11, %s3163
      %s3165 = smul.u32 2, %s25
      %p3166 = scmp.lt.s32.totalorder %s3165, 9
      %s3167 = scalar_select %p3166, %s3165, 9
      %s3168 = smul.addr %s3167, 8
      %s3169 = scalar_lea.vmem %s12, %s3168
      %s3170 = smul.u32 2, %s25
      %p3171 = scmp.lt.s32.totalorder %s3170, 9
      %s3172 = scalar_select %p3171, %s3170, 9
      %s3173 = smul.addr %s3172, 8
      %s3174 = scalar_lea.vmem %s13, %s3173
      // Predicated region
      $region61: #{tpu_custom_call.1} parent=55 // pred_check
        %p3175 = pneg %p237
      $region62: #{tpu_custom_call.1} parent=55 // pred_check_branch
        %3177 = sbr.rel (%p3175) target = $region64
      $region63: #{tpu_custom_call.1} parent=55 // pred_region
        %s3178 = smul.u32 2, %s25
      $region64: #{tpu_custom_call.1} parent=55 // pred_fallthru
        _
      // Predicated region
      $region65: #{tpu_custom_call.1} parent=55 // pred_check
        %p3179 = pneg %p263
      $region66: #{tpu_custom_call.1} parent=55 // pred_check_branch
        %3181 = sbr.rel (%p3179) target = $region68
      $region67: #{tpu_custom_call.1} parent=55 // pred_region
        %s3182 = smul.u32 2, %s25
      $region68: #{tpu_custom_call.1} parent=55 // pred_fallthru
        _
      // Predicated region
      $region69: #{tpu_custom_call.1} parent=55 // pred_check
        %p3183 = pneg %p289
      $region70: #{tpu_custom_call.1} parent=55 // pred_check_branch
        %3185 = sbr.rel (%p3183) target = $region72
      $region71: #{tpu_custom_call.1} parent=55 // pred_region
        %s3186 = smul.u32 2, %s25
      $region72: #{tpu_custom_call.1} parent=55 // pred_fallthru
        _
      // Predicated region
      $region73: #{tpu_custom_call.1} parent=55 // pred_check
        %p3187 = pneg %p315
      $region74: #{tpu_custom_call.1} parent=55 // pred_check_branch
        %3189 = sbr.rel (%p3187) target = $region76
      $region75: #{tpu_custom_call.1} parent=55 // pred_region
        %s3190 = smul.u32 2, %s25
      $region76: #{tpu_custom_call.1} parent=55 // pred_fallthru
        _
      // Predicated region
      $region77: #{tpu_custom_call.1} parent=55 // pred_check
        %p3191 = pneg %p341
      $region78: #{tpu_custom_call.1} parent=55 // pred_check_branch
        %3193 = sbr.rel (%p3191) target = $region80
      $region79: #{tpu_custom_call.1} parent=55 // pred_region
        %s3194 = smul.u32 2, %s25
      $region80: #{tpu_custom_call.1} parent=55 // pred_fallthru
        _
    $region56: #{tpu_custom_call.1} parent=5 // pred_fallthru
      _
    %p3195 = scmp.le.s32.totalorder 2, %s20
    // Predicated region
    $region81: #{tpu_custom_call.1} parent=5 // pred_check
      %p3196 = pneg %p3195
    $region82: #{tpu_custom_call.1} parent=5 // pred_check_branch
      %3198 = sbr.rel (%p3196) target = $region84
    $region83: #{tpu_custom_call.1} parent=5 // pred_region
      %s3199 = ssub.s32 %s20, 2
      // Predicated region
      $region85: #{tpu_custom_call.1} parent=83 // pred_check
        %p3200 = pneg %p243
      $region86: #{tpu_custom_call.1} parent=83 // pred_check_branch
        %3202 = sbr.rel (%p3200) target = $region88
      $region87: #{tpu_custom_call.1} parent=83 // pred_region
        %s3203 = smul.u32 2, %s26
        %p3204 = scmp.lt.s32.totalorder %s3203, 9
        %s3205 = scalar_select %p3204, %s3203, 9
        %s3206 = smul.addr %s3205, 8
        %s3207 = scalar_lea.vmem %s9, %s3206
      $region88: #{tpu_custom_call.1} parent=83 // pred_fallthru
        _
      // Predicated region
      $region89: #{tpu_custom_call.1} parent=83 // pred_check
        %p3208 = pneg %p269
      $region90: #{tpu_custom_call.1} parent=83 // pred_check_branch
        %3210 = sbr.rel (%p3208) target = $region92
      $region91: #{tpu_custom_call.1} parent=83 // pred_region
        %s3211 = smul.u32 2, %s26
        %p3212 = scmp.lt.s32.totalorder %s3211, 9
        %s3213 = scalar_select %p3212, %s3211, 9
        %s3214 = smul.addr %s3213, 8
        %s3215 = scalar_lea.vmem %s10, %s3214
      $region92: #{tpu_custom_call.1} parent=83 // pred_fallthru
        _
      // Predicated region
      $region93: #{tpu_custom_call.1} parent=83 // pred_check
        %p3216 = pneg %p295
      $region94: #{tpu_custom_call.1} parent=83 // pred_check_branch
        %3218 = sbr.rel (%p3216) target = $region96
      $region95: #{tpu_custom_call.1} parent=83 // pred_region
        %s3219 = smul.u32 2, %s26
        %p3220 = scmp.lt.s32.totalorder %s3219, 9
        %s3221 = scalar_select %p3220, %s3219, 9
        %s3222 = smul.addr %s3221, 8
        %s3223 = scalar_lea.vmem %s11, %s3222
      $region96: #{tpu_custom_call.1} parent=83 // pred_fallthru
        _
      // Predicated region
      $region97: #{tpu_custom_call.1} parent=83 // pred_check
        %p3224 = pneg %p321
      $region98: #{tpu_custom_call.1} parent=83 // pred_check_branch
        %3226 = sbr.rel (%p3224) target = $region100
      $region99: #{tpu_custom_call.1} parent=83 // pred_region
        %s3227 = smul.u32 2, %s26
        %p3228 = scmp.lt.s32.totalorder %s3227, 9
        %s3229 = scalar_select %p3228, %s3227, 9
        %s3230 = smul.addr %s3229, 8
        %s3231 = scalar_lea.vmem %s12, %s3230
      $region100: #{tpu_custom_call.1} parent=83 // pred_fallthru
        _
      // Predicated region
      $region101: #{tpu_custom_call.1} parent=83 // pred_check
        %p3232 = pneg %p347
      $region102: #{tpu_custom_call.1} parent=83 // pred_check_branch
        %3234 = sbr.rel (%p3232) target = $region104
      $region103: #{tpu_custom_call.1} parent=83 // pred_region
        %s3235 = smul.u32 2, %s26
        %p3236 = scmp.lt.s32.totalorder %s3235, 9
        %s3237 = scalar_select %p3236, %s3235, 9
        %s3238 = smul.addr %s3237, 8
        %s3239 = scalar_lea.vmem %s13, %s3238
      $region104: #{tpu_custom_call.1} parent=83 // pred_fallthru
        _
    $region84: #{tpu_custom_call.1} parent=5 // pred_fallthru
      _
  $region6: #{tpu_custom_call.1} parent=0 // loop_footer
    %s24 = sadd.s32 1, %s20
  $region7: #{tpu_custom_call.1} parent=0 // loop_footer_branch
    %19 = sbr.rel target = $region3
  $region8: #{tpu_custom_call.1} parent=0 // loop_exit
    _

</llo_original>
